<compile_context>
chip_gen: v7x
topology: tpu7x:2x2x1
jax: 0.10.0
libtpu: 0.0.40
codegen_flags: <defaults>
</compile_context>

<pallas_src>
import jax
import jax.numpy as jnp
from jax.experimental import pallas as pl
from jax.experimental.pallas import tpu as pltpu

K = 4
INPUT_SIZE = 1 * K            # 4
HIDDEN = 128
OUTPUT_SIZE = 1 * K           # 4

PACK = 128 // INPUT_SIZE      # 32 batch samples packed per 128-lane row
LANES_IN = PACK * INPUT_SIZE  # 128
LANES_HID = PACK * HIDDEN     # 4096
LANES_OUT = PACK * OUTPUT_SIZE  # 128


def _mlp_kernel(x_ref, w1_ref, b1_ref, w2_ref, b2_ref, o_ref):
    # x_ref: (rb, 128) = 32 samples per row; w1_ref: (128, 4096) block-diag.
    h = jnp.dot(x_ref[...], w1_ref[...], preferred_element_type=jnp.float32)
    h = jnp.maximum(h + b1_ref[...], 0.0)          # (rb, 4096) + (1, 4096)
    y = jnp.dot(h, w2_ref[...], preferred_element_type=jnp.float32)
    o_ref[...] = jnp.maximum(y + b2_ref[...], 0.0).astype(o_ref.dtype)


def prepare_params(w1, b1, w2, b2):
    """Expand the tiny (4,128)/(128,4) weights into the packed block-diagonal
    form used by the kernel. Do this once (it constant-folds under jit)."""
    eye = jnp.eye(PACK, dtype=w1.dtype)
    w1e = jnp.kron(eye, w1)           # (128, 4096)
    w2e = jnp.kron(eye, w2)           # (4096, 128)
    b1e = jnp.tile(b1, (1, PACK))     # (1, 4096)
    b2e = jnp.tile(b2, (1, PACK))     # (1, 128)
    return w1e, b1e, w2e, b2e


def simple_net_forward(x, w1e, b1e, w2e, b2e, *, block_rows=64):
    """x: (B, 4) f32 -> (B, 4) f32.

    block_rows = packed rows per grid step (= 32*block_rows batch samples per
    tile; default 64 -> batch tile of 2048). Sweep 16..256 per chip."""
    B = x.shape[0]
    Bp = -(-B // PACK) * PACK                    # round batch up to mult of 32
    if Bp != B:
        x = jnp.pad(x, ((0, Bp - B), (0, 0)))
    R = Bp // PACK
    xd = x.reshape(R, LANES_IN)                  # free row-major view

    rb = min(block_rows, R)
    if rb < R:                                   # tiled path: obey (8,128) rule
        rb = max(8, (rb // 8) * 8)
    grid = ((R + rb - 1) // rb,)

    out_d = pl.pallas_call(
        _mlp_kernel,
        out_shape=jax.ShapeDtypeStruct((R, LANES_OUT), jnp.float32),
        grid_spec=pltpu.PrefetchScalarGridSpec(
            num_scalar_prefetch=0,
            grid=grid,
            in_specs=[
                pl.BlockSpec((rb, LANES_IN), lambda i: (i, 0)),
                # Constant index_maps -> weights/biases stay resident in VMEM.
                pl.BlockSpec((LANES_IN, LANES_HID), lambda i: (0, 0)),
                pl.BlockSpec((1, LANES_HID), lambda i: (0, 0)),
                pl.BlockSpec((LANES_HID, LANES_OUT), lambda i: (0, 0)),
                pl.BlockSpec((1, LANES_OUT), lambda i: (0, 0)),
            ],
            out_specs=pl.BlockSpec((rb, LANES_OUT), lambda i: (i, 0)),
        ),
        compiler_params=pltpu.CompilerParams(
            dimension_semantics=("parallel",),
            vmem_limit_bytes=32 * 1024 * 1024,
        ),
    )(xd, w1e, b1e, w2e, b2e)

    out = out_d.reshape(Bp, OUTPUT_SIZE)
    return out[:B] if Bp != B else out


def init_params(key):
    """Kaiming-normal (fan_in, relu) weights, zero biases — matches init_weights().
    Weights stored as (in, out), i.e. transposed vs. PyTorch's (out, in)."""
    k1, k2 = jax.random.split(key)
    std1 = (2.0 / INPUT_SIZE) ** 0.5
    std2 = (2.0 / HIDDEN) ** 0.5
    w1 = jax.random.normal(k1, (INPUT_SIZE, HIDDEN), jnp.float32) * std1
    w2 = jax.random.normal(k2, (HIDDEN, OUTPUT_SIZE), jnp.float32) * std2
    b1 = jnp.zeros((1, HIDDEN), jnp.float32)
    b2 = jnp.zeros((1, OUTPUT_SIZE), jnp.float32)
    return w1, b1, w2, b2


def reference_forward(x, w1, b1, w2, b2):
    h = jnp.maximum(x @ w1 + b1, 0.0)
    return jnp.maximum(h @ w2 + b2, 0.0)


if __name__ == "__main__":
    key = jax.random.PRNGKey(0)
    kx1, kx2, kp = jax.random.split(key, 3)

    w1, b1, w2, b2 = init_params(kp)
    params = prepare_params(w1, b1, w2, b2)

    # Multi-tile case: batch 1024, 8 packed rows (=256 samples) per grid step
    # -> 4 pipelined, parallel grid steps.
    x = jax.random.normal(kx1, (1024, INPUT_SIZE), jnp.float32)
    out = jax.block_until_ready(simple_net_forward(x, *params, block_rows=8))
    ref = reference_forward(x, w1, b1, w2, b2)
    assert out.shape == (1024, OUTPUT_SIZE)
    assert jnp.allclose(out, ref, atol=1e-5, rtol=1e-4), \
        float(jnp.max(jnp.abs(out - ref)))

    # Small, ragged batch (exercises the pad-to-32 + single-block path).
    x2 = jax.random.normal(kx2, (50, INPUT_SIZE), jnp.float32)
    out2 = jax.block_until_ready(simple_net_forward(x2, *params))
    ref2 = reference_forward(x2, w1, b1, w2, b2)
    assert out2.shape == (50, OUTPUT_SIZE)
    assert jnp.allclose(out2, ref2, atol=1e-5, rtol=1e-4), \
        float(jnp.max(jnp.abs(out2 - ref2)))

    print("KERNEL_OK")
</pallas_src>

<mosaic_0001>
module attributes {stable_mosaic.version = 11 : i64} {
  func.func @_mlp_kernel(%arg0: i32, %arg1: memref<8x128xf32, #tpu.memory_space<vmem>>, %arg2: memref<128x4096xf32, #tpu.memory_space<vmem>>, %arg3: memref<1x4096xf32, #tpu.memory_space<vmem>>, %arg4: memref<4096x128xf32, #tpu.memory_space<vmem>>, %arg5: memref<1x128xf32, #tpu.memory_space<vmem>>, %arg6: memref<8x128xf32, #tpu.memory_space<vmem>>) attributes {dimension_semantics = [#tpu.dimension_semantics<parallel>], iteration_bounds = array<i64: 4>, scalar_prefetch = 0 : i64, scratch_operands = 0 : i64, tpu.core_type = #tpu.core_type<tc>, window_params = [{transform_indices = @transform_0, window_bounds = array<i64: 8, 128>}, {pipeline_mode = #tpu.pipeline_mode<synchronous>, transform_indices = @transform_1, window_bounds = array<i64: 128, 4096>}, {pipeline_mode = #tpu.pipeline_mode<synchronous>, transform_indices = @transform_2, window_bounds = array<i64: 1, 4096>}, {pipeline_mode = #tpu.pipeline_mode<synchronous>, transform_indices = @transform_3, window_bounds = array<i64: 4096, 128>}, {pipeline_mode = #tpu.pipeline_mode<synchronous>, transform_indices = @transform_4, window_bounds = array<i64: 1, 128>}, {transform_indices = @transform_5, window_bounds = array<i64: 8, 128>}]} {
    %c0 = arith.constant 0 : index
    %c0_0 = arith.constant 0 : index
    %0 = vector.load %arg1[%c0, %c0_0] : memref<8x128xf32, #tpu.memory_space<vmem>>, vector<8x128xf32>
    %c0_1 = arith.constant 0 : index
    %c0_2 = arith.constant 0 : index
    %1 = vector.load %arg2[%c0_1, %c0_2] : memref<128x4096xf32, #tpu.memory_space<vmem>>, vector<128x4096xf32>
    %cst = arith.constant dense<0.000000e+00> : vector<8x4096xf32>
    %2 = tpu.matmul %0, %1, %cst {dimension_numbers = #tpu.dot_dimension_numbers<[1], [0], [0], [1], [0, 0, 1, 1], [], []>} : vector<8x128xf32>, vector<128x4096xf32>, vector<8x4096xf32> -> vector<8x4096xf32>
    %c0_3 = arith.constant 0 : index
    %c0_4 = arith.constant 0 : index
    %3 = vector.load %arg3[%c0_3, %c0_4] : memref<1x4096xf32, #tpu.memory_space<vmem>>, vector<1x4096xf32>
    %4 = vector.broadcast %3 : vector<1x4096xf32> to vector<8x4096xf32>
    %5 = arith.addf %2, %4 : vector<8x4096xf32>
    %cst_5 = arith.constant 0.000000e+00 : f32
    %6 = vector.broadcast %cst_5 : f32 to vector<8x4096xf32>
    %7 = arith.maximumf %5, %6 : vector<8x4096xf32>
    %c0_6 = arith.constant 0 : index
    %c0_7 = arith.constant 0 : index
    %8 = vector.load %arg4[%c0_6, %c0_7] : memref<4096x128xf32, #tpu.memory_space<vmem>>, vector<4096x128xf32>
    %cst_8 = arith.constant dense<0.000000e+00> : vector<8x128xf32>
    %9 = tpu.matmul %7, %8, %cst_8 {dimension_numbers = #tpu.dot_dimension_numbers<[1], [0], [0], [1], [0, 0, 1, 1], [], []>} : vector<8x4096xf32>, vector<4096x128xf32>, vector<8x128xf32> -> vector<8x128xf32>
    %c0_9 = arith.constant 0 : index
    %c0_10 = arith.constant 0 : index
    %10 = vector.load %arg5[%c0_9, %c0_10] : memref<1x128xf32, #tpu.memory_space<vmem>>, vector<1x128xf32>
    %11 = vector.broadcast %10 : vector<1x128xf32> to vector<8x128xf32>
    %12 = arith.addf %9, %11 : vector<8x128xf32>
    %cst_11 = arith.constant 0.000000e+00 : f32
    %13 = vector.broadcast %cst_11 : f32 to vector<8x128xf32>
    %14 = arith.maximumf %12, %13 : vector<8x128xf32>
    %c0_12 = arith.constant 0 : index
    %c0_13 = arith.constant 0 : index
    %15 = vector.load %arg6[%c0_12, %c0_13] : memref<8x128xf32, #tpu.memory_space<vmem>>, vector<8x128xf32>
    tpu.vector_store %arg6[%c0_12, %c0_13], %14 {strides = array<i32>} : memref<8x128xf32, #tpu.memory_space<vmem>>, vector<8x128xf32>,
    return
  }
  func.func @transform_0(%arg0: i32) -> (i32, i32) {
    %c0_i32 = arith.constant 0 : i32
    %c0_i32_0 = arith.constant 0 : i32
    return %arg0, %c0_i32 : i32, i32
  }
  func.func @transform_1(%arg0: i32) -> (i32, i32) {
    %c0_i32 = arith.constant 0 : i32
    %c0_i32_0 = arith.constant 0 : i32
    %c0_i32_1 = arith.constant 0 : i32
    return %c0_i32, %c0_i32_0 : i32, i32
  }
  func.func @transform_2(%arg0: i32) -> (i32, i32) {
    %c0_i32 = arith.constant 0 : i32
    %c0_i32_0 = arith.constant 0 : i32
    %c0_i32_1 = arith.constant 0 : i32
    return %c0_i32, %c0_i32_0 : i32, i32
  }
  func.func @transform_3(%arg0: i32) -> (i32, i32) {
    %c0_i32 = arith.constant 0 : i32
    %c0_i32_0 = arith.constant 0 : i32
    %c0_i32_1 = arith.constant 0 : i32
    return %c0_i32, %c0_i32_0 : i32, i32
  }
  func.func @transform_4(%arg0: i32) -> (i32, i32) {
    %c0_i32 = arith.constant 0 : i32
    %c0_i32_0 = arith.constant 0 : i32
    %c0_i32_1 = arith.constant 0 : i32
    return %c0_i32, %c0_i32_0 : i32, i32
  }
  func.func @transform_5(%arg0: i32) -> (i32, i32) {
    %c0_i32 = arith.constant 0 : i32
    %c0_i32_0 = arith.constant 0 : i32
    return %arg0, %c0_i32 : i32, i32
  }
}

</mosaic_0001>

<llo_original>
// kernel: tpu_custom_call.1
$region0: #{tpu_custom_call.1}
  #allocation0 [shape = 'u32[]', space=smem, size = 0x4, offset = 0x4, fixed_abs, tag = 'smem constant byte address 0x4 - core index']
  #allocation1 [shape = 'u32[144,128]{1,0:T(1,128)}', space=vmem, size = 0x12000, scoped, tag = 'internal scratch']
  %s0 = inlined_call_operand.hbm [shape: f32[32,128], index: 0, kind: input, shape index: {}]
  %s1 = inlined_call_operand.hbm [shape: f32[128,4096], index: 1, kind: input, shape index: {}]
  %s2 = inlined_call_operand.hbm [shape: f32[1,4096], index: 2, kind: input, shape index: {}]
  %s3 = inlined_call_operand.hbm [shape: f32[4096,128], index: 3, kind: input, shape index: {}]
  %s4 = inlined_call_operand.hbm [shape: f32[1,128], index: 4, kind: input, shape index: {}]
  %s5 = inlined_call_operand.hbm [shape: f32[32,128], index: 5, kind: output, shape index: {}]
  %s6 = sld [smem:[#allocation0]]
  $region73: #{tpu_custom_call.1} parent=0
    _
  %s8 = ssub.s32 1, %s6
  %s9 = scalar_select 0, %s8, %s6
  $region1: #{tpu_custom_call.1} parent=0
    #allocation2 [shape = 'u8[8192]{0}', space=vmem, size = 0x2000, scoped, tag = 'input window, operand 0']
    #allocation3 [shape = 's32[2]{0}', space=sflag, size = 0x8, scoped, tag = 'scoped memory for tpu_custom_call.1']
    #allocation4 [shape = 's32[2]{0}', space=sflag, size = 0x8, scoped, tag = 'scoped memory for tpu_custom_call.1']
    #allocation5 [shape = 'u8[2097152]{0}', space=vmem, size = 0x200000, scoped, tag = 'input window, operand 1, single buffered']
    #allocation6 [shape = 's32[1]{0}', space=sflag, size = 0x4, scoped, tag = 'scoped memory for tpu_custom_call.1']
    #allocation7 [shape = 'u8[16384]{0}', space=vmem, size = 0x4000, scoped, tag = 'input window, operand 2, single buffered']
    #allocation8 [shape = 'u8[2097152]{0}', space=vmem, size = 0x200000, scoped, tag = 'input window, operand 3, single buffered']
    #allocation9 [shape = 's32[1]{0}', space=sflag, size = 0x4, scoped, tag = 'scoped memory for tpu_custom_call.1']
    #allocation10 [shape = 'u8[512]{0}', space=vmem, size = 0x400, scoped, tag = 'input window, operand 4, single buffered']
    #allocation11 [shape = 'u8[8192]{0}', space=vmem, size = 0x2000, scoped, tag = 'output window, operand 0']
    %10 = vsyncpa [#allocation3], 0
    %s11 = scalar_lea.sflag [#allocation3], 1
    %12 = vsyncpa %s11, 0
    %13 = vsyncpa [#allocation6], 0
    %14 = vsyncpa [#allocation9], 0
    %15 = vsyncpa [#allocation4], 0
    %s16 = scalar_lea.sflag [#allocation4], 1
    %17 = vsyncpa %s16, 0
    loop: start=0, step=1, limit=6
    $region2: #{tpu_custom_call.1} parent=1 // loop_pre_header
      _
    $region3: #{tpu_custom_call.1} parent=1 // loop_header
      %s19 = sphi 0, %s23
      %p20 = scmp.ge.s32.totalorder %s19, 6
      %s29 = sphi 0, %s31
      %s32 = sphi 0, %s29
      %s33 = sphi 0, %s32
      %s49 = sphi 0, %s33
      %s53 = sphi 0, %s53
      %s55 = sphi 0, %s53
      %s56 = sphi 0, %s55
      %s70 = sphi 0, %s56
      %s74 = sphi 0, %s74
      %s76 = sphi 0, %s74
      %s77 = sphi 0, %s76
      %s91 = sphi 0, %s77
      %s95 = sphi 0, %s95
      %s97 = sphi 0, %s95
      %s98 = sphi 0, %s97
      %s112 = sphi 0, %s98
      %s116 = sphi 0, %s116
      %s118 = sphi 0, %s116
      %s119 = sphi 0, %s118
      %s133 = sphi 0, %s119
      %s139 = sphi 0, %s141
      %s142 = sphi 0, %s139
      %s143 = sphi 0, %s142
      %s159 = sphi 0, %s143
    $region4: #{tpu_custom_call.1} parent=1 // loop_header_branch
      %22 = sbr.rel (%p20) target = $region8
    $region5: #{tpu_custom_call.1} parent=1 // loop_body
      %s24 = ssub.s32 %s19, 1
      %s25 = ssub.s32 %s19, 2
      %s26 = sadd.s32 %s19, 1
      %s27 = ssub.s32 %s19, %s26
      %p28 = scmp.eq.s32.totalorder %s27, 0
      %s30 = sadd.s32 %s29, 1
      %s31 = scalar_select %p28, %s29, %s30
      %p34 = pneg %p28
      %p35 = scmp.eq.s32.totalorder %s19, 3
      %p36 = por %p34, %p35
      %p37 = scmp.ne.s32.totalorder %s29, %s32
      %p38 = scmp.eq.s32.totalorder %s19, 0
      %p39 = por %p37, %p38
      %p40 = scmp.ne.s32.totalorder %s29, %s32
      %p41 = scmp.eq.s32.totalorder %s24, 3
      %p42 = por %p40, %p41
      %p43 = scmp.ne.s32.totalorder %s32, %s33
      %p44 = scmp.eq.s32.totalorder %s24, 0
      %p45 = por %p43, %p44
      %p46 = scmp.ne.s32.totalorder %s32, %s33
      %p47 = scmp.eq.s32.totalorder %s25, 3
      %p48 = por %p46, %p47
      %p50 = scmp.ne.s32.totalorder %s33, %s49
      %p51 = scmp.eq.s32.totalorder %s25, 0
      %p52 = por %p50, %p51
      %s54 = sadd.s32 %s53, 1
      %p57 = scmp.eq.s32.totalorder %s19, 3
      %p58 = scmp.ne.s32.totalorder %s53, %s55
      %p59 = scmp.eq.s32.totalorder %s19, 0
      %p60 = por %p58, %p59
      %p61 = scmp.ne.s32.totalorder %s53, %s55
      %p62 = scmp.eq.s32.totalorder %s24, 3
      %p63 = por %p61, %p62
      %p64 = scmp.ne.s32.totalorder %s55, %s56
      %p65 = scmp.eq.s32.totalorder %s24, 0
      %p66 = por %p64, %p65
      %p67 = scmp.ne.s32.totalorder %s55, %s56
      %p68 = scmp.eq.s32.totalorder %s25, 3
      %p69 = por %p67, %p68
      %p71 = scmp.ne.s32.totalorder %s56, %s70
      %p72 = scmp.eq.s32.totalorder %s25, 0
      %p73 = por %p71, %p72
      %s75 = sadd.s32 %s74, 1
      %p78 = scmp.eq.s32.totalorder %s19, 3
      %p79 = scmp.ne.s32.totalorder %s74, %s76
      %p80 = scmp.eq.s32.totalorder %s19, 0
      %p81 = por %p79, %p80
      %p82 = scmp.ne.s32.totalorder %s74, %s76
      %p83 = scmp.eq.s32.totalorder %s24, 3
      %p84 = por %p82, %p83
      %p85 = scmp.ne.s32.totalorder %s76, %s77
      %p86 = scmp.eq.s32.totalorder %s24, 0
      %p87 = por %p85, %p86
      %p88 = scmp.ne.s32.totalorder %s76, %s77
      %p89 = scmp.eq.s32.totalorder %s25, 3
      %p90 = por %p88, %p89
      %p92 = scmp.ne.s32.totalorder %s77, %s91
      %p93 = scmp.eq.s32.totalorder %s25, 0
      %p94 = por %p92, %p93
      %s96 = sadd.s32 %s95, 1
      %p99 = scmp.eq.s32.totalorder %s19, 3
      %p100 = scmp.ne.s32.totalorder %s95, %s97
      %p101 = scmp.eq.s32.totalorder %s19, 0
      %p102 = por %p100, %p101
      %p103 = scmp.ne.s32.totalorder %s95, %s97
      %p104 = scmp.eq.s32.totalorder %s24, 3
      %p105 = por %p103, %p104
      %p106 = scmp.ne.s32.totalorder %s97, %s98
      %p107 = scmp.eq.s32.totalorder %s24, 0
      %p108 = por %p106, %p107
      %p109 = scmp.ne.s32.totalorder %s97, %s98
      %p110 = scmp.eq.s32.totalorder %s25, 3
      %p111 = por %p109, %p110
      %p113 = scmp.ne.s32.totalorder %s98, %s112
      %p114 = scmp.eq.s32.totalorder %s25, 0
      %p115 = por %p113, %p114
      %s117 = sadd.s32 %s116, 1
      %p120 = scmp.eq.s32.totalorder %s19, 3
      %p121 = scmp.ne.s32.totalorder %s116, %s118
      %p122 = scmp.eq.s32.totalorder %s19, 0
      %p123 = por %p121, %p122
      %p124 = scmp.ne.s32.totalorder %s116, %s118
      %p125 = scmp.eq.s32.totalorder %s24, 3
      %p126 = por %p124, %p125
      %p127 = scmp.ne.s32.totalorder %s118, %s119
      %p128 = scmp.eq.s32.totalorder %s24, 0
      %p129 = por %p127, %p128
      %p130 = scmp.ne.s32.totalorder %s118, %s119
      %p131 = scmp.eq.s32.totalorder %s25, 3
      %p132 = por %p130, %p131
      %p134 = scmp.ne.s32.totalorder %s119, %s133
      %p135 = scmp.eq.s32.totalorder %s25, 0
      %p136 = por %p134, %p135
      %s137 = ssub.s32 %s19, %s26
      %p138 = scmp.eq.s32.totalorder %s137, 0
      %s140 = sadd.s32 %s139, 1
      %s141 = scalar_select %p138, %s139, %s140
      %p144 = pneg %p138
      %p145 = scmp.eq.s32.totalorder %s19, 3
      %p146 = por %p144, %p145
      %p147 = scmp.ne.s32.totalorder %s139, %s142
      %p148 = scmp.eq.s32.totalorder %s19, 0
      %p149 = por %p147, %p148
      %p150 = scmp.ne.s32.totalorder %s139, %s142
      %p151 = scmp.eq.s32.totalorder %s24, 3
      %p152 = por %p150, %p151
      %p153 = scmp.ne.s32.totalorder %s142, %s143
      %p154 = scmp.eq.s32.totalorder %s24, 0
      %p155 = por %p153, %p154
      %p156 = scmp.ne.s32.totalorder %s142, %s143
      %p157 = scmp.eq.s32.totalorder %s25, 3
      %p158 = por %p156, %p157
      %p160 = scmp.ne.s32.totalorder %s143, %s159
      %p161 = scmp.eq.s32.totalorder %s25, 0
      %p162 = por %p160, %p161
      %p163 = scmp.le.s32.totalorder 1, %s19
      %p164 = scmp.lt.s32.totalorder %s19, 5
      %p165 = pnand %p163, %p164
      %p166 = pneg %p165
      // Predicated region
      $region9: #{tpu_custom_call.1} parent=5 // pred_check
        _
      $region10: #{tpu_custom_call.1} parent=5 // pred_check_branch
        %168 = sbr.rel (%p165) target = $region12
      $region11: #{tpu_custom_call.1} parent=5 // pred_region
        %s169 = ssub.s32 %s19, 1
        // Predicated region
        $region13: #{tpu_custom_call.1} parent=11 // pred_check
          %p170 = pneg %p66
        $region14: #{tpu_custom_call.1} parent=11 // pred_check_branch
          %172 = sbr.rel (%p170) target = $region16
        $region15: #{tpu_custom_call.1} parent=11 // pred_region
          %s174 = ssub.s32 65536, 65536
          %175 = vsyncadd [#allocation6], %s174
          %s176 = sshll.u32 [#allocation5], 4
          %s177 = int_to_ptr.vmem [resolvable:$true] %s176
          %182 = dma.hbm_to_vmem [thread:$0]  %s1, 65536, %s177, [#allocation6], 4096, 4096, 256
        $region16: #{tpu_custom_call.1} parent=11 // pred_fallthru
          _
        // Predicated region
        $region17: #{tpu_custom_call.1} parent=11 // pred_check
          %p183 = pneg %p87
        $region18: #{tpu_custom_call.1} parent=11 // pred_check_branch
          %185 = sbr.rel (%p183) target = $region20
        $region19: #{tpu_custom_call.1} parent=11 // pred_region
          %s187 = ssub.s32 512, 512
          %188 = vsyncadd [#allocation6], %s187
          %s190 = sshll.u32 [#allocation7], 4
          %s191 = int_to_ptr.vmem [resolvable:$true] %s190
          %193 = dma.hbm_to_vmem [thread:$0]  %s2, 512, %s191, [#allocation6]
        $region20: #{tpu_custom_call.1} parent=11 // pred_fallthru
          _
        // Predicated region
        $region21: #{tpu_custom_call.1} parent=11 // pred_check
          %p194 = pneg %p108
        $region22: #{tpu_custom_call.1} parent=11 // pred_check_branch
          %196 = sbr.rel (%p194) target = $region24
        $region23: #{tpu_custom_call.1} parent=11 // pred_region
          %s198 = ssub.s32 65536, 65536
          %199 = vsyncadd [#allocation9], %s198
          %s200 = sshll.u32 [#allocation8], 4
          %s201 = int_to_ptr.vmem [resolvable:$true] %s200
          %206 = dma.hbm_to_vmem [thread:$0]  %s3, 65536, %s201, [#allocation9], 128, 128, 8
        $region24: #{tpu_custom_call.1} parent=11 // pred_fallthru
          _
        // Predicated region
        $region25: #{tpu_custom_call.1} parent=11 // pred_check
          %p207 = pneg %p129
        $region26: #{tpu_custom_call.1} parent=11 // pred_check_branch
          %209 = sbr.rel (%p207) target = $region28
        $region27: #{tpu_custom_call.1} parent=11 // pred_region
          %s211 = ssub.s32 16, 16
          %212 = vsyncadd [#allocation9], %s211
          %s214 = sshll.u32 [#allocation10], 4
          %s215 = int_to_ptr.vmem [resolvable:$true] %s214
          %217 = dma.hbm_to_vmem [thread:$0]  %s4, 16, %s215, [#allocation9]
        $region28: #{tpu_custom_call.1} parent=11 // pred_fallthru
          _
      $region12: #{tpu_custom_call.1} parent=5 // pred_fallthru
        _
      %p218 = scmp.lt.s32.totalorder %s19, 4
      // Predicated region
      $region29: #{tpu_custom_call.1} parent=5 // pred_check
        %p219 = pneg %p218
      $region30: #{tpu_custom_call.1} parent=5 // pred_check_branch
        %221 = sbr.rel (%p219) target = $region32
      $region31: #{tpu_custom_call.1} parent=5 // pred_region
        // Predicated region
        $region33: #{tpu_custom_call.1} parent=31 // pred_check
          %p222 = pneg %p39
        $region34: #{tpu_custom_call.1} parent=31 // pred_check_branch
          %224 = sbr.rel (%p222) target = $region36
        $region35: #{tpu_custom_call.1} parent=31 // pred_region
          %s225 = sand.u32 %s29, 1
          %s226 = scalar_lea.sflag [#allocation3], %s225
          %s227 = sand.u32 %s29, 1
          %s228 = smul.addr %s227, 8
          %s229 = scalar_lea.vmem [#allocation2], %s228
          %s231 = ssub.s32 128, 128
          %232 = vsyncadd %s226, %s231
          %s233 = smul.addr %s19, 128
          %s234 = scalar_lea.hbm %s0, %s233
          %s236 = sshll.u32 %s229, 4
          %s237 = int_to_ptr.vmem [resolvable:$true] %s236
          %239 = dma.hbm_to_vmem [thread:$0]  %s234, 128, %s237, %s226
        $region36: #{tpu_custom_call.1} parent=31 // pred_fallthru
          _
      $region32: #{tpu_custom_call.1} parent=5 // pred_fallthru
        _
      %p240 = scmp.le.s32.totalorder 1, %s19
      %p241 = scmp.lt.s32.totalorder %s19, 5
      %p242 = pnand %p240, %p241
      %p243 = pneg %p242
      // Predicated region
      $region37: #{tpu_custom_call.1} parent=5 // pred_check
        _
      $region38: #{tpu_custom_call.1} parent=5 // pred_check_branch
        %245 = sbr.rel (%p242) target = $region40
      $region39: #{tpu_custom_call.1} parent=5 // pred_region
        %s246 = ssub.s32 %s19, 1
        %s247 = sand.u32 %s32, 1
        %s248 = scalar_lea.sflag [#allocation3], %s247
        %s249 = sand.u32 %s32, 1
        %s250 = smul.addr %s249, 8
        %s251 = scalar_lea.vmem [#allocation2], %s250
        // Predicated region
        $region41: #{tpu_custom_call.1} parent=39 // pred_check
          %p252 = pneg %p45
        $region42: #{tpu_custom_call.1} parent=39 // pred_check_branch
          %254 = sbr.rel (%p252) target = $region44
        $region43: #{tpu_custom_call.1} parent=39 // pred_region
          %255 = dma.done %s248, 128
        $region44: #{tpu_custom_call.1} parent=39 // pred_fallthru
          _
        // Predicated region
        $region45: #{tpu_custom_call.1} parent=39 // pred_check
          %p256 = pneg %p66
        $region46: #{tpu_custom_call.1} parent=39 // pred_check_branch
          %258 = sbr.rel (%p256) target = $region48
        $region47: #{tpu_custom_call.1} parent=39 // pred_region
          %259 = dma.done [#allocation6], 65536
        $region48: #{tpu_custom_call.1} parent=39 // pred_fallthru
          _
        // Predicated region
        $region49: #{tpu_custom_call.1} parent=39 // pred_check
          %p260 = pneg %p87
        $region50: #{tpu_custom_call.1} parent=39 // pred_check_branch
          %262 = sbr.rel (%p260) target = $region52
        $region51: #{tpu_custom_call.1} parent=39 // pred_region
          %263 = dma.done [#allocation6], 512
        $region52: #{tpu_custom_call.1} parent=39 // pred_fallthru
          _
        // Predicated region
        $region53: #{tpu_custom_call.1} parent=39 // pred_check
          %p264 = pneg %p108
        $region54: #{tpu_custom_call.1} parent=39 // pred_check_branch
          %266 = sbr.rel (%p264) target = $region56
        $region55: #{tpu_custom_call.1} parent=39 // pred_region
          %267 = dma.done [#allocation9], 65536
        $region56: #{tpu_custom_call.1} parent=39 // pred_fallthru
          _
        // Predicated region
        $region57: #{tpu_custom_call.1} parent=39 // pred_check
          %p268 = pneg %p129
        $region58: #{tpu_custom_call.1} parent=39 // pred_check_branch
          %270 = sbr.rel (%p268) target = $region60
        $region59: #{tpu_custom_call.1} parent=39 // pred_region
          %271 = dma.done [#allocation9], 16
        $region60: #{tpu_custom_call.1} parent=39 // pred_fallthru
          _
        %s272 = sand.u32 %s32, 1
        %s273 = scalar_lea.sflag [#allocation3], %s272
        %s274 = sand.u32 %s32, 1
        %s275 = smul.addr %s274, 8
        %s276 = scalar_lea.vmem [#allocation2], %s275
        %p277 = pneg %p45
        %p278 = pneg %p42
        %p279 = pneg %p66
        %p280 = pneg %p63
        %p281 = pneg %p87
        %p282 = pneg %p84
        %p283 = pneg %p108
        %p284 = pneg %p105
        %p285 = pneg %p129
        %p286 = pneg %p126
        %p287 = pneg %p155
        %p288 = pneg %p152
        %s289 = sand.u32 %s142, 1
        %s290 = scalar_lea.sflag [#allocation4], %s289
        %s291 = sand.u32 %s142, 1
        %s292 = smul.addr %s291, 8
        %s293 = scalar_lea.vmem [#allocation11], %s292
        %v294 = vld [vmem:[%s251] sm:$0xff]
        %v295 = vld [vmem:[#allocation5] sm:$0xff]
        %v296 = vld [vmem:[#allocation5 + $0x8] sm:$0xff]
        %v297 = vld [vmem:[#allocation5 + $0x10] sm:$0xff]
        %v298 = vld [vmem:[#allocation5 + $0x18] sm:$0xff]
        %v299 = vld [vmem:[#allocation5 + $0x20] sm:$0xff]
        %v300 = vld [vmem:[#allocation5 + $0x28] sm:$0xff]
        %v301 = vld [vmem:[#allocation5 + $0x30] sm:$0xff]
        %v302 = vld [vmem:[#allocation5 + $0x38] sm:$0xff]
        %v303 = vld [vmem:[#allocation5 + $0x40] sm:$0xff]
        %v304 = vld [vmem:[#allocation5 + $0x48] sm:$0xff]
        %v305 = vld [vmem:[#allocation5 + $0x50] sm:$0xff]
        %v306 = vld [vmem:[#allocation5 + $0x58] sm:$0xff]
        %v307 = vld [vmem:[#allocation5 + $0x60] sm:$0xff]
        %v308 = vld [vmem:[#allocation5 + $0x68] sm:$0xff]
        %v309 = vld [vmem:[#allocation5 + $0x70] sm:$0xff]
        %v310 = vld [vmem:[#allocation5 + $0x78] sm:$0xff]
        %v311 = vld [vmem:[#allocation5 + $0x80] sm:$0xff]
        %v312 = vld [vmem:[#allocation5 + $0x88] sm:$0xff]
        %v313 = vld [vmem:[#allocation5 + $0x90] sm:$0xff]
        %v314 = vld [vmem:[#allocation5 + $0x98] sm:$0xff]
        %v315 = vld [vmem:[#allocation5 + $0xa0] sm:$0xff]
        %v316 = vld [vmem:[#allocation5 + $0xa8] sm:$0xff]
        %v317 = vld [vmem:[#allocation5 + $0xb0] sm:$0xff]
        %v318 = vld [vmem:[#allocation5 + $0xb8] sm:$0xff]
        %v319 = vld [vmem:[#allocation5 + $0xc0] sm:$0xff]
        %v320 = vld [vmem:[#allocation5 + $0xc8] sm:$0xff]
        %v321 = vld [vmem:[#allocation5 + $0xd0] sm:$0xff]
        %v322 = vld [vmem:[#allocation5 + $0xd8] sm:$0xff]
        %v323 = vld [vmem:[#allocation5 + $0xe0] sm:$0xff]
        %v324 = vld [vmem:[#allocation5 + $0xe8] sm:$0xff]
        %v325 = vld [vmem:[#allocation5 + $0xf0] sm:$0xff]
        %v326 = vld [vmem:[#allocation5 + $0xf8] sm:$0xff]
        %v327 = vld [vmem:[#allocation5 + $0x100] sm:$0xff]
        %v328 = vld [vmem:[#allocation5 + $0x108] sm:$0xff]
        %v329 = vld [vmem:[#allocation5 + $0x110] sm:$0xff]
        %v330 = vld [vmem:[#allocation5 + $0x118] sm:$0xff]
        %v331 = vld [vmem:[#allocation5 + $0x120] sm:$0xff]
        %v332 = vld [vmem:[#allocation5 + $0x128] sm:$0xff]
        %v333 = vld [vmem:[#allocation5 + $0x130] sm:$0xff]
        %v334 = vld [vmem:[#allocation5 + $0x138] sm:$0xff]
        %v335 = vld [vmem:[#allocation5 + $0x140] sm:$0xff]
        %v336 = vld [vmem:[#allocation5 + $0x148] sm:$0xff]
        %v337 = vld [vmem:[#allocation5 + $0x150] sm:$0xff]
        %v338 = vld [vmem:[#allocation5 + $0x158] sm:$0xff]
        %v339 = vld [vmem:[#allocation5 + $0x160] sm:$0xff]
        %v340 = vld [vmem:[#allocation5 + $0x168] sm:$0xff]
        %v341 = vld [vmem:[#allocation5 + $0x170] sm:$0xff]
        %v342 = vld [vmem:[#allocation5 + $0x178] sm:$0xff]
        %v343 = vld [vmem:[#allocation5 + $0x180] sm:$0xff]
        %v344 = vld [vmem:[#allocation5 + $0x188] sm:$0xff]
        %v345 = vld [vmem:[#allocation5 + $0x190] sm:$0xff]
        %v346 = vld [vmem:[#allocation5 + $0x198] sm:$0xff]
        %v347 = vld [vmem:[#allocation5 + $0x1a0] sm:$0xff]
        %v348 = vld [vmem:[#allocation5 + $0x1a8] sm:$0xff]
        %v349 = vld [vmem:[#allocation5 + $0x1b0] sm:$0xff]
        %v350 = vld [vmem:[#allocation5 + $0x1b8] sm:$0xff]
        %v351 = vld [vmem:[#allocation5 + $0x1c0] sm:$0xff]
        %v352 = vld [vmem:[#allocation5 + $0x1c8] sm:$0xff]
        %v353 = vld [vmem:[#allocation5 + $0x1d0] sm:$0xff]
        %v354 = vld [vmem:[#allocation5 + $0x1d8] sm:$0xff]
        %v355 = vld [vmem:[#allocation5 + $0x1e0] sm:$0xff]
        %v356 = vld [vmem:[#allocation5 + $0x1e8] sm:$0xff]
        %v357 = vld [vmem:[#allocation5 + $0x1f0] sm:$0xff]
        %v358 = vld [vmem:[#allocation5 + $0x1f8] sm:$0xff]
        %v359 = vld [vmem:[#allocation5 + $0x200] sm:$0xff]
        %v360 = vld [vmem:[#allocation5 + $0x208] sm:$0xff]
        %v361 = vld [vmem:[#allocation5 + $0x210] sm:$0xff]
        %v362 = vld [vmem:[#allocation5 + $0x218] sm:$0xff]
        %v363 = vld [vmem:[#allocation5 + $0x220] sm:$0xff]
        %v364 = vld [vmem:[#allocation5 + $0x228] sm:$0xff]
        %v365 = vld [vmem:[#allocation5 + $0x230] sm:$0xff]
        %v366 = vld [vmem:[#allocation5 + $0x238] sm:$0xff]
        %v367 = vld [vmem:[#allocation5 + $0x240] sm:$0xff]
        %v368 = vld [vmem:[#allocation5 + $0x248] sm:$0xff]
        %v369 = vld [vmem:[#allocation5 + $0x250] sm:$0xff]
        %v370 = vld [vmem:[#allocation5 + $0x258] sm:$0xff]
        %v371 = vld [vmem:[#allocation5 + $0x260] sm:$0xff]
        %v372 = vld [vmem:[#allocation5 + $0x268] sm:$0xff]
        %v373 = vld [vmem:[#allocation5 + $0x270] sm:$0xff]
        %v374 = vld [vmem:[#allocation5 + $0x278] sm:$0xff]
        %v375 = vld [vmem:[#allocation5 + $0x280] sm:$0xff]
        %v376 = vld [vmem:[#allocation5 + $0x288] sm:$0xff]
        %v377 = vld [vmem:[#allocation5 + $0x290] sm:$0xff]
        %v378 = vld [vmem:[#allocation5 + $0x298] sm:$0xff]
        %v379 = vld [vmem:[#allocation5 + $0x2a0] sm:$0xff]
        %v380 = vld [vmem:[#allocation5 + $0x2a8] sm:$0xff]
        %v381 = vld [vmem:[#allocation5 + $0x2b0] sm:$0xff]
        %v382 = vld [vmem:[#allocation5 + $0x2b8] sm:$0xff]
        %v383 = vld [vmem:[#allocation5 + $0x2c0] sm:$0xff]
        %v384 = vld [vmem:[#allocation5 + $0x2c8] sm:$0xff]
        %v385 = vld [vmem:[#allocation5 + $0x2d0] sm:$0xff]
        %v386 = vld [vmem:[#allocation5 + $0x2d8] sm:$0xff]
        %v387 = vld [vmem:[#allocation5 + $0x2e0] sm:$0xff]
        %v388 = vld [vmem:[#allocation5 + $0x2e8] sm:$0xff]
        %v389 = vld [vmem:[#allocation5 + $0x2f0] sm:$0xff]
        %v390 = vld [vmem:[#allocation5 + $0x2f8] sm:$0xff]
        %v391 = vld [vmem:[#allocation5 + $0x300] sm:$0xff]
        %v392 = vld [vmem:[#allocation5 + $0x308] sm:$0xff]
        %v393 = vld [vmem:[#allocation5 + $0x310] sm:$0xff]
        %v394 = vld [vmem:[#allocation5 + $0x318] sm:$0xff]
        %v395 = vld [vmem:[#allocation5 + $0x320] sm:$0xff]
        %v396 = vld [vmem:[#allocation5 + $0x328] sm:$0xff]
        %v397 = vld [vmem:[#allocation5 + $0x330] sm:$0xff]
        %v398 = vld [vmem:[#allocation5 + $0x338] sm:$0xff]
        %v399 = vld [vmem:[#allocation5 + $0x340] sm:$0xff]
        %v400 = vld [vmem:[#allocation5 + $0x348] sm:$0xff]
        %v401 = vld [vmem:[#allocation5 + $0x350] sm:$0xff]
        %v402 = vld [vmem:[#allocation5 + $0x358] sm:$0xff]
        %v403 = vld [vmem:[#allocation5 + $0x360] sm:$0xff]
        %v404 = vld [vmem:[#allocation5 + $0x368] sm:$0xff]
        %v405 = vld [vmem:[#allocation5 + $0x370] sm:$0xff]
        %v406 = vld [vmem:[#allocation5 + $0x378] sm:$0xff]
        %v407 = vld [vmem:[#allocation5 + $0x380] sm:$0xff]
        %v408 = vld [vmem:[#allocation5 + $0x388] sm:$0xff]
        %v409 = vld [vmem:[#allocation5 + $0x390] sm:$0xff]
        %v410 = vld [vmem:[#allocation5 + $0x398] sm:$0xff]
        %v411 = vld [vmem:[#allocation5 + $0x3a0] sm:$0xff]
        %v412 = vld [vmem:[#allocation5 + $0x3a8] sm:$0xff]
        %v413 = vld [vmem:[#allocation5 + $0x3b0] sm:$0xff]
        %v414 = vld [vmem:[#allocation5 + $0x3b8] sm:$0xff]
        %v415 = vld [vmem:[#allocation5 + $0x3c0] sm:$0xff]
        %v416 = vld [vmem:[#allocation5 + $0x3c8] sm:$0xff]
        %v417 = vld [vmem:[#allocation5 + $0x3d0] sm:$0xff]
        %v418 = vld [vmem:[#allocation5 + $0x3d8] sm:$0xff]
        %v419 = vld [vmem:[#allocation5 + $0x3e0] sm:$0xff]
        %v420 = vld [vmem:[#allocation5 + $0x3e8] sm:$0xff]
        %v421 = vld [vmem:[#allocation5 + $0x3f0] sm:$0xff]
        %v422 = vld [vmem:[#allocation5 + $0x3f8] sm:$0xff]
        %v423 = vld [vmem:[#allocation5 + $0x400] sm:$0xff]
        %v424 = vld [vmem:[#allocation5 + $0x408] sm:$0xff]
        %v425 = vld [vmem:[#allocation5 + $0x410] sm:$0xff]
        %v426 = vld [vmem:[#allocation5 + $0x418] sm:$0xff]
        %v427 = vld [vmem:[#allocation5 + $0x420] sm:$0xff]
        %v428 = vld [vmem:[#allocation5 + $0x428] sm:$0xff]
        %v429 = vld [vmem:[#allocation5 + $0x430] sm:$0xff]
        %v430 = vld [vmem:[#allocation5 + $0x438] sm:$0xff]
        %v431 = vld [vmem:[#allocation5 + $0x440] sm:$0xff]
        %v432 = vld [vmem:[#allocation5 + $0x448] sm:$0xff]
        %v433 = vld [vmem:[#allocation5 + $0x450] sm:$0xff]
        %v434 = vld [vmem:[#allocation5 + $0x458] sm:$0xff]
        %v435 = vld [vmem:[#allocation5 + $0x460] sm:$0xff]
        %v436 = vld [vmem:[#allocation5 + $0x468] sm:$0xff]
        %v437 = vld [vmem:[#allocation5 + $0x470] sm:$0xff]
        %v438 = vld [vmem:[#allocation5 + $0x478] sm:$0xff]
        %v439 = vld [vmem:[#allocation5 + $0x480] sm:$0xff]
        %v440 = vld [vmem:[#allocation5 + $0x488] sm:$0xff]
        %v441 = vld [vmem:[#allocation5 + $0x490] sm:$0xff]
        %v442 = vld [vmem:[#allocation5 + $0x498] sm:$0xff]
        %v443 = vld [vmem:[#allocation5 + $0x4a0] sm:$0xff]
        %v444 = vld [vmem:[#allocation5 + $0x4a8] sm:$0xff]
        %v445 = vld [vmem:[#allocation5 + $0x4b0] sm:$0xff]
        %v446 = vld [vmem:[#allocation5 + $0x4b8] sm:$0xff]
        %v447 = vld [vmem:[#allocation5 + $0x4c0] sm:$0xff]
        %v448 = vld [vmem:[#allocation5 + $0x4c8] sm:$0xff]
        %v449 = vld [vmem:[#allocation5 + $0x4d0] sm:$0xff]
        %v450 = vld [vmem:[#allocation5 + $0x4d8] sm:$0xff]
        %v451 = vld [vmem:[#allocation5 + $0x4e0] sm:$0xff]
        %v452 = vld [vmem:[#allocation5 + $0x4e8] sm:$0xff]
        %v453 = vld [vmem:[#allocation5 + $0x4f0] sm:$0xff]
        %v454 = vld [vmem:[#allocation5 + $0x4f8] sm:$0xff]
        %v455 = vld [vmem:[#allocation5 + $0x500] sm:$0xff]
        %v456 = vld [vmem:[#allocation5 + $0x508] sm:$0xff]
        %v457 = vld [vmem:[#allocation5 + $0x510] sm:$0xff]
        %v458 = vld [vmem:[#allocation5 + $0x518] sm:$0xff]
        %v459 = vld [vmem:[#allocation5 + $0x520] sm:$0xff]
        %v460 = vld [vmem:[#allocation5 + $0x528] sm:$0xff]
        %v461 = vld [vmem:[#allocation5 + $0x530] sm:$0xff]
        %v462 = vld [vmem:[#allocation5 + $0x538] sm:$0xff]
        %v463 = vld [vmem:[#allocation5 + $0x540] sm:$0xff]
        %v464 = vld [vmem:[#allocation5 + $0x548] sm:$0xff]
        %v465 = vld [vmem:[#allocation5 + $0x550] sm:$0xff]
        %v466 = vld [vmem:[#allocation5 + $0x558] sm:$0xff]
        %v467 = vld [vmem:[#allocation5 + $0x560] sm:$0xff]
        %v468 = vld [vmem:[#allocation5 + $0x568] sm:$0xff]
        %v469 = vld [vmem:[#allocation5 + $0x570] sm:$0xff]
        %v470 = vld [vmem:[#allocation5 + $0x578] sm:$0xff]
        %v471 = vld [vmem:[#allocation5 + $0x580] sm:$0xff]
        %v472 = vld [vmem:[#allocation5 + $0x588] sm:$0xff]
        %v473 = vld [vmem:[#allocation5 + $0x590] sm:$0xff]
        %v474 = vld [vmem:[#allocation5 + $0x598] sm:$0xff]
        %v475 = vld [vmem:[#allocation5 + $0x5a0] sm:$0xff]
        %v476 = vld [vmem:[#allocation5 + $0x5a8] sm:$0xff]
        %v477 = vld [vmem:[#allocation5 + $0x5b0] sm:$0xff]
        %v478 = vld [vmem:[#allocation5 + $0x5b8] sm:$0xff]
        %v479 = vld [vmem:[#allocation5 + $0x5c0] sm:$0xff]
        %v480 = vld [vmem:[#allocation5 + $0x5c8] sm:$0xff]
        %v481 = vld [vmem:[#allocation5 + $0x5d0] sm:$0xff]
        %v482 = vld [vmem:[#allocation5 + $0x5d8] sm:$0xff]
        %v483 = vld [vmem:[#allocation5 + $0x5e0] sm:$0xff]
        %v484 = vld [vmem:[#allocation5 + $0x5e8] sm:$0xff]
        %v485 = vld [vmem:[#allocation5 + $0x5f0] sm:$0xff]
        %v486 = vld [vmem:[#allocation5 + $0x5f8] sm:$0xff]
        %v487 = vld [vmem:[#allocation5 + $0x600] sm:$0xff]
        %v488 = vld [vmem:[#allocation5 + $0x608] sm:$0xff]
        %v489 = vld [vmem:[#allocation5 + $0x610] sm:$0xff]
        %v490 = vld [vmem:[#allocation5 + $0x618] sm:$0xff]
        %v491 = vld [vmem:[#allocation5 + $0x620] sm:$0xff]
        %v492 = vld [vmem:[#allocation5 + $0x628] sm:$0xff]
        %v493 = vld [vmem:[#allocation5 + $0x630] sm:$0xff]
        %v494 = vld [vmem:[#allocation5 + $0x638] sm:$0xff]
        %v495 = vld [vmem:[#allocation5 + $0x640] sm:$0xff]
        %v496 = vld [vmem:[#allocation5 + $0x648] sm:$0xff]
        %v497 = vld [vmem:[#allocation5 + $0x650] sm:$0xff]
        %v498 = vld [vmem:[#allocation5 + $0x658] sm:$0xff]
        %v499 = vld [vmem:[#allocation5 + $0x660] sm:$0xff]
        %v500 = vld [vmem:[#allocation5 + $0x668] sm:$0xff]
        %v501 = vld [vmem:[#allocation5 + $0x670] sm:$0xff]
        %v502 = vld [vmem:[#allocation5 + $0x678] sm:$0xff]
        %v503 = vld [vmem:[#allocation5 + $0x680] sm:$0xff]
        %v504 = vld [vmem:[#allocation5 + $0x688] sm:$0xff]
        %v505 = vld [vmem:[#allocation5 + $0x690] sm:$0xff]
        %v506 = vld [vmem:[#allocation5 + $0x698] sm:$0xff]
        %v507 = vld [vmem:[#allocation5 + $0x6a0] sm:$0xff]
        %v508 = vld [vmem:[#allocation5 + $0x6a8] sm:$0xff]
        %v509 = vld [vmem:[#allocation5 + $0x6b0] sm:$0xff]
        %v510 = vld [vmem:[#allocation5 + $0x6b8] sm:$0xff]
        %v511 = vld [vmem:[#allocation5 + $0x6c0] sm:$0xff]
        %v512 = vld [vmem:[#allocation5 + $0x6c8] sm:$0xff]
        %v513 = vld [vmem:[#allocation5 + $0x6d0] sm:$0xff]
        %v514 = vld [vmem:[#allocation5 + $0x6d8] sm:$0xff]
        %v515 = vld [vmem:[#allocation5 + $0x6e0] sm:$0xff]
        %v516 = vld [vmem:[#allocation5 + $0x6e8] sm:$0xff]
        %v517 = vld [vmem:[#allocation5 + $0x6f0] sm:$0xff]
        %v518 = vld [vmem:[#allocation5 + $0x6f8] sm:$0xff]
        %v519 = vld [vmem:[#allocation5 + $0x700] sm:$0xff]
        %v520 = vld [vmem:[#allocation5 + $0x708] sm:$0xff]
        %v521 = vld [vmem:[#allocation5 + $0x710] sm:$0xff]
        %v522 = vld [vmem:[#allocation5 + $0x718] sm:$0xff]
        %v523 = vld [vmem:[#allocation5 + $0x720] sm:$0xff]
        %v524 = vld [vmem:[#allocation5 + $0x728] sm:$0xff]
        %v525 = vld [vmem:[#allocation5 + $0x730] sm:$0xff]
        %v526 = vld [vmem:[#allocation5 + $0x738] sm:$0xff]
        %v527 = vld [vmem:[#allocation5 + $0x740] sm:$0xff]
        %v528 = vld [vmem:[#allocation5 + $0x748] sm:$0xff]
        %v529 = vld [vmem:[#allocation5 + $0x750] sm:$0xff]
        %v530 = vld [vmem:[#allocation5 + $0x758] sm:$0xff]
        %v531 = vld [vmem:[#allocation5 + $0x760] sm:$0xff]
        %v532 = vld [vmem:[#allocation5 + $0x768] sm:$0xff]
        %v533 = vld [vmem:[#allocation5 + $0x770] sm:$0xff]
        %v534 = vld [vmem:[#allocation5 + $0x778] sm:$0xff]
        %v535 = vld [vmem:[#allocation5 + $0x780] sm:$0xff]
        %v536 = vld [vmem:[#allocation5 + $0x788] sm:$0xff]
        %v537 = vld [vmem:[#allocation5 + $0x790] sm:$0xff]
        %v538 = vld [vmem:[#allocation5 + $0x798] sm:$0xff]
        %v539 = vld [vmem:[#allocation5 + $0x7a0] sm:$0xff]
        %v540 = vld [vmem:[#allocation5 + $0x7a8] sm:$0xff]
        %v541 = vld [vmem:[#allocation5 + $0x7b0] sm:$0xff]
        %v542 = vld [vmem:[#allocation5 + $0x7b8] sm:$0xff]
        %v543 = vld [vmem:[#allocation5 + $0x7c0] sm:$0xff]
        %v544 = vld [vmem:[#allocation5 + $0x7c8] sm:$0xff]
        %v545 = vld [vmem:[#allocation5 + $0x7d0] sm:$0xff]
        %v546 = vld [vmem:[#allocation5 + $0x7d8] sm:$0xff]
        %v547 = vld [vmem:[#allocation5 + $0x7e0] sm:$0xff]
        %v548 = vld [vmem:[#allocation5 + $0x7e8] sm:$0xff]
        %v549 = vld [vmem:[#allocation5 + $0x7f0] sm:$0xff]
        %v550 = vld [vmem:[#allocation5 + $0x7f8] sm:$0xff]
        %v551 = vld [vmem:[#allocation5 + $0x800] sm:$0xff]
        %v552 = vld [vmem:[#allocation5 + $0x808] sm:$0xff]
        %v553 = vld [vmem:[#allocation5 + $0x810] sm:$0xff]
        %v554 = vld [vmem:[#allocation5 + $0x818] sm:$0xff]
        %v555 = vld [vmem:[#allocation5 + $0x820] sm:$0xff]
        %v556 = vld [vmem:[#allocation5 + $0x828] sm:$0xff]
        %v557 = vld [vmem:[#allocation5 + $0x830] sm:$0xff]
        %v558 = vld [vmem:[#allocation5 + $0x838] sm:$0xff]
        %v559 = vld [vmem:[#allocation5 + $0x840] sm:$0xff]
        %v560 = vld [vmem:[#allocation5 + $0x848] sm:$0xff]
        %v561 = vld [vmem:[#allocation5 + $0x850] sm:$0xff]
        %v562 = vld [vmem:[#allocation5 + $0x858] sm:$0xff]
        %v563 = vld [vmem:[#allocation5 + $0x860] sm:$0xff]
        %v564 = vld [vmem:[#allocation5 + $0x868] sm:$0xff]
        %v565 = vld [vmem:[#allocation5 + $0x870] sm:$0xff]
        %v566 = vld [vmem:[#allocation5 + $0x878] sm:$0xff]
        %v567 = vld [vmem:[#allocation5 + $0x880] sm:$0xff]
        %v568 = vld [vmem:[#allocation5 + $0x888] sm:$0xff]
        %v569 = vld [vmem:[#allocation5 + $0x890] sm:$0xff]
        %v570 = vld [vmem:[#allocation5 + $0x898] sm:$0xff]
        %v571 = vld [vmem:[#allocation5 + $0x8a0] sm:$0xff]
        %v572 = vld [vmem:[#allocation5 + $0x8a8] sm:$0xff]
        %v573 = vld [vmem:[#allocation5 + $0x8b0] sm:$0xff]
        %v574 = vld [vmem:[#allocation5 + $0x8b8] sm:$0xff]
        %v575 = vld [vmem:[#allocation5 + $0x8c0] sm:$0xff]
        %v576 = vld [vmem:[#allocation5 + $0x8c8] sm:$0xff]
        %v577 = vld [vmem:[#allocation5 + $0x8d0] sm:$0xff]
        %v578 = vld [vmem:[#allocation5 + $0x8d8] sm:$0xff]
        %v579 = vld [vmem:[#allocation5 + $0x8e0] sm:$0xff]
        %v580 = vld [vmem:[#allocation5 + $0x8e8] sm:$0xff]
        %v581 = vld [vmem:[#allocation5 + $0x8f0] sm:$0xff]
        %v582 = vld [vmem:[#allocation5 + $0x8f8] sm:$0xff]
        %v583 = vld [vmem:[#allocation5 + $0x900] sm:$0xff]
        %v584 = vld [vmem:[#allocation5 + $0x908] sm:$0xff]
        %v585 = vld [vmem:[#allocation5 + $0x910] sm:$0xff]
        %v586 = vld [vmem:[#allocation5 + $0x918] sm:$0xff]
        %v587 = vld [vmem:[#allocation5 + $0x920] sm:$0xff]
        %v588 = vld [vmem:[#allocation5 + $0x928] sm:$0xff]
        %v589 = vld [vmem:[#allocation5 + $0x930] sm:$0xff]
        %v590 = vld [vmem:[#allocation5 + $0x938] sm:$0xff]
        %v591 = vld [vmem:[#allocation5 + $0x940] sm:$0xff]
        %v592 = vld [vmem:[#allocation5 + $0x948] sm:$0xff]
        %v593 = vld [vmem:[#allocation5 + $0x950] sm:$0xff]
        %v594 = vld [vmem:[#allocation5 + $0x958] sm:$0xff]
        %v595 = vld [vmem:[#allocation5 + $0x960] sm:$0xff]
        %v596 = vld [vmem:[#allocation5 + $0x968] sm:$0xff]
        %v597 = vld [vmem:[#allocation5 + $0x970] sm:$0xff]
        %v598 = vld [vmem:[#allocation5 + $0x978] sm:$0xff]
        %v599 = vld [vmem:[#allocation5 + $0x980] sm:$0xff]
        %v600 = vld [vmem:[#allocation5 + $0x988] sm:$0xff]
        %v601 = vld [vmem:[#allocation5 + $0x990] sm:$0xff]
        %v602 = vld [vmem:[#allocation5 + $0x998] sm:$0xff]
        %v603 = vld [vmem:[#allocation5 + $0x9a0] sm:$0xff]
        %v604 = vld [vmem:[#allocation5 + $0x9a8] sm:$0xff]
        %v605 = vld [vmem:[#allocation5 + $0x9b0] sm:$0xff]
        %v606 = vld [vmem:[#allocation5 + $0x9b8] sm:$0xff]
        %v607 = vld [vmem:[#allocation5 + $0x9c0] sm:$0xff]
        %v608 = vld [vmem:[#allocation5 + $0x9c8] sm:$0xff]
        %v609 = vld [vmem:[#allocation5 + $0x9d0] sm:$0xff]
        %v610 = vld [vmem:[#allocation5 + $0x9d8] sm:$0xff]
        %v611 = vld [vmem:[#allocation5 + $0x9e0] sm:$0xff]
        %v612 = vld [vmem:[#allocation5 + $0x9e8] sm:$0xff]
        %v613 = vld [vmem:[#allocation5 + $0x9f0] sm:$0xff]
        %v614 = vld [vmem:[#allocation5 + $0x9f8] sm:$0xff]
        %v615 = vld [vmem:[#allocation5 + $0xa00] sm:$0xff]
        %v616 = vld [vmem:[#allocation5 + $0xa08] sm:$0xff]
        %v617 = vld [vmem:[#allocation5 + $0xa10] sm:$0xff]
        %v618 = vld [vmem:[#allocation5 + $0xa18] sm:$0xff]
        %v619 = vld [vmem:[#allocation5 + $0xa20] sm:$0xff]
        %v620 = vld [vmem:[#allocation5 + $0xa28] sm:$0xff]
        %v621 = vld [vmem:[#allocation5 + $0xa30] sm:$0xff]
        %v622 = vld [vmem:[#allocation5 + $0xa38] sm:$0xff]
        %v623 = vld [vmem:[#allocation5 + $0xa40] sm:$0xff]
        %v624 = vld [vmem:[#allocation5 + $0xa48] sm:$0xff]
        %v625 = vld [vmem:[#allocation5 + $0xa50] sm:$0xff]
        %v626 = vld [vmem:[#allocation5 + $0xa58] sm:$0xff]
        %v627 = vld [vmem:[#allocation5 + $0xa60] sm:$0xff]
        %v628 = vld [vmem:[#allocation5 + $0xa68] sm:$0xff]
        %v629 = vld [vmem:[#allocation5 + $0xa70] sm:$0xff]
        %v630 = vld [vmem:[#allocation5 + $0xa78] sm:$0xff]
        %v631 = vld [vmem:[#allocation5 + $0xa80] sm:$0xff]
        %v632 = vld [vmem:[#allocation5 + $0xa88] sm:$0xff]
        %v633 = vld [vmem:[#allocation5 + $0xa90] sm:$0xff]
        %v634 = vld [vmem:[#allocation5 + $0xa98] sm:$0xff]
        %v635 = vld [vmem:[#allocation5 + $0xaa0] sm:$0xff]
        %v636 = vld [vmem:[#allocation5 + $0xaa8] sm:$0xff]
        %v637 = vld [vmem:[#allocation5 + $0xab0] sm:$0xff]
        %v638 = vld [vmem:[#allocation5 + $0xab8] sm:$0xff]
        %v639 = vld [vmem:[#allocation5 + $0xac0] sm:$0xff]
        %v640 = vld [vmem:[#allocation5 + $0xac8] sm:$0xff]
        %v641 = vld [vmem:[#allocation5 + $0xad0] sm:$0xff]
        %v642 = vld [vmem:[#allocation5 + $0xad8] sm:$0xff]
        %v643 = vld [vmem:[#allocation5 + $0xae0] sm:$0xff]
        %v644 = vld [vmem:[#allocation5 + $0xae8] sm:$0xff]
        %v645 = vld [vmem:[#allocation5 + $0xaf0] sm:$0xff]
        %v646 = vld [vmem:[#allocation5 + $0xaf8] sm:$0xff]
        %v647 = vld [vmem:[#allocation5 + $0xb00] sm:$0xff]
        %v648 = vld [vmem:[#allocation5 + $0xb08] sm:$0xff]
        %v649 = vld [vmem:[#allocation5 + $0xb10] sm:$0xff]
        %v650 = vld [vmem:[#allocation5 + $0xb18] sm:$0xff]
        %v651 = vld [vmem:[#allocation5 + $0xb20] sm:$0xff]
        %v652 = vld [vmem:[#allocation5 + $0xb28] sm:$0xff]
        %v653 = vld [vmem:[#allocation5 + $0xb30] sm:$0xff]
        %v654 = vld [vmem:[#allocation5 + $0xb38] sm:$0xff]
        %v655 = vld [vmem:[#allocation5 + $0xb40] sm:$0xff]
        %v656 = vld [vmem:[#allocation5 + $0xb48] sm:$0xff]
        %v657 = vld [vmem:[#allocation5 + $0xb50] sm:$0xff]
        %v658 = vld [vmem:[#allocation5 + $0xb58] sm:$0xff]
        %v659 = vld [vmem:[#allocation5 + $0xb60] sm:$0xff]
        %v660 = vld [vmem:[#allocation5 + $0xb68] sm:$0xff]
        %v661 = vld [vmem:[#allocation5 + $0xb70] sm:$0xff]
        %v662 = vld [vmem:[#allocation5 + $0xb78] sm:$0xff]
        %v663 = vld [vmem:[#allocation5 + $0xb80] sm:$0xff]
        %v664 = vld [vmem:[#allocation5 + $0xb88] sm:$0xff]
        %v665 = vld [vmem:[#allocation5 + $0xb90] sm:$0xff]
        %v666 = vld [vmem:[#allocation5 + $0xb98] sm:$0xff]
        %v667 = vld [vmem:[#allocation5 + $0xba0] sm:$0xff]
        %v668 = vld [vmem:[#allocation5 + $0xba8] sm:$0xff]
        %v669 = vld [vmem:[#allocation5 + $0xbb0] sm:$0xff]
        %v670 = vld [vmem:[#allocation5 + $0xbb8] sm:$0xff]
        %v671 = vld [vmem:[#allocation5 + $0xbc0] sm:$0xff]
        %v672 = vld [vmem:[#allocation5 + $0xbc8] sm:$0xff]
        %v673 = vld [vmem:[#allocation5 + $0xbd0] sm:$0xff]
        %v674 = vld [vmem:[#allocation5 + $0xbd8] sm:$0xff]
        %v675 = vld [vmem:[#allocation5 + $0xbe0] sm:$0xff]
        %v676 = vld [vmem:[#allocation5 + $0xbe8] sm:$0xff]
        %v677 = vld [vmem:[#allocation5 + $0xbf0] sm:$0xff]
        %v678 = vld [vmem:[#allocation5 + $0xbf8] sm:$0xff]
        %v679 = vld [vmem:[#allocation5 + $0xc00] sm:$0xff]
        %v680 = vld [vmem:[#allocation5 + $0xc08] sm:$0xff]
        %v681 = vld [vmem:[#allocation5 + $0xc10] sm:$0xff]
        %v682 = vld [vmem:[#allocation5 + $0xc18] sm:$0xff]
        %v683 = vld [vmem:[#allocation5 + $0xc20] sm:$0xff]
        %v684 = vld [vmem:[#allocation5 + $0xc28] sm:$0xff]
        %v685 = vld [vmem:[#allocation5 + $0xc30] sm:$0xff]
        %v686 = vld [vmem:[#allocation5 + $0xc38] sm:$0xff]
        %v687 = vld [vmem:[#allocation5 + $0xc40] sm:$0xff]
        %v688 = vld [vmem:[#allocation5 + $0xc48] sm:$0xff]
        %v689 = vld [vmem:[#allocation5 + $0xc50] sm:$0xff]
        %v690 = vld [vmem:[#allocation5 + $0xc58] sm:$0xff]
        %v691 = vld [vmem:[#allocation5 + $0xc60] sm:$0xff]
        %v692 = vld [vmem:[#allocation5 + $0xc68] sm:$0xff]
        %v693 = vld [vmem:[#allocation5 + $0xc70] sm:$0xff]
        %v694 = vld [vmem:[#allocation5 + $0xc78] sm:$0xff]
        %v695 = vld [vmem:[#allocation5 + $0xc80] sm:$0xff]
        %v696 = vld [vmem:[#allocation5 + $0xc88] sm:$0xff]
        %v697 = vld [vmem:[#allocation5 + $0xc90] sm:$0xff]
        %v698 = vld [vmem:[#allocation5 + $0xc98] sm:$0xff]
        %v699 = vld [vmem:[#allocation5 + $0xca0] sm:$0xff]
        %v700 = vld [vmem:[#allocation5 + $0xca8] sm:$0xff]
        %v701 = vld [vmem:[#allocation5 + $0xcb0] sm:$0xff]
        %v702 = vld [vmem:[#allocation5 + $0xcb8] sm:$0xff]
        %v703 = vld [vmem:[#allocation5 + $0xcc0] sm:$0xff]
        %v704 = vld [vmem:[#allocation5 + $0xcc8] sm:$0xff]
        %v705 = vld [vmem:[#allocation5 + $0xcd0] sm:$0xff]
        %v706 = vld [vmem:[#allocation5 + $0xcd8] sm:$0xff]
        %v707 = vld [vmem:[#allocation5 + $0xce0] sm:$0xff]
        %v708 = vld [vmem:[#allocation5 + $0xce8] sm:$0xff]
        %v709 = vld [vmem:[#allocation5 + $0xcf0] sm:$0xff]
        %v710 = vld [vmem:[#allocation5 + $0xcf8] sm:$0xff]
        %v711 = vld [vmem:[#allocation5 + $0xd00] sm:$0xff]
        %v712 = vld [vmem:[#allocation5 + $0xd08] sm:$0xff]
        %v713 = vld [vmem:[#allocation5 + $0xd10] sm:$0xff]
        %v714 = vld [vmem:[#allocation5 + $0xd18] sm:$0xff]
        %v715 = vld [vmem:[#allocation5 + $0xd20] sm:$0xff]
        %v716 = vld [vmem:[#allocation5 + $0xd28] sm:$0xff]
        %v717 = vld [vmem:[#allocation5 + $0xd30] sm:$0xff]
        %v718 = vld [vmem:[#allocation5 + $0xd38] sm:$0xff]
        %v719 = vld [vmem:[#allocation5 + $0xd40] sm:$0xff]
        %v720 = vld [vmem:[#allocation5 + $0xd48] sm:$0xff]
        %v721 = vld [vmem:[#allocation5 + $0xd50] sm:$0xff]
        %v722 = vld [vmem:[#allocation5 + $0xd58] sm:$0xff]
        %v723 = vld [vmem:[#allocation5 + $0xd60] sm:$0xff]
        %v724 = vld [vmem:[#allocation5 + $0xd68] sm:$0xff]
        %v725 = vld [vmem:[#allocation5 + $0xd70] sm:$0xff]
        %v726 = vld [vmem:[#allocation5 + $0xd78] sm:$0xff]
        %v727 = vld [vmem:[#allocation5 + $0xd80] sm:$0xff]
        %v728 = vld [vmem:[#allocation5 + $0xd88] sm:$0xff]
        %v729 = vld [vmem:[#allocation5 + $0xd90] sm:$0xff]
        %v730 = vld [vmem:[#allocation5 + $0xd98] sm:$0xff]
        %v731 = vld [vmem:[#allocation5 + $0xda0] sm:$0xff]
        %v732 = vld [vmem:[#allocation5 + $0xda8] sm:$0xff]
        %v733 = vld [vmem:[#allocation5 + $0xdb0] sm:$0xff]
        %v734 = vld [vmem:[#allocation5 + $0xdb8] sm:$0xff]
        %v735 = vld [vmem:[#allocation5 + $0xdc0] sm:$0xff]
        %v736 = vld [vmem:[#allocation5 + $0xdc8] sm:$0xff]
        %v737 = vld [vmem:[#allocation5 + $0xdd0] sm:$0xff]
        %v738 = vld [vmem:[#allocation5 + $0xdd8] sm:$0xff]
        %v739 = vld [vmem:[#allocation5 + $0xde0] sm:$0xff]
        %v740 = vld [vmem:[#allocation5 + $0xde8] sm:$0xff]
        %v741 = vld [vmem:[#allocation5 + $0xdf0] sm:$0xff]
        %v742 = vld [vmem:[#allocation5 + $0xdf8] sm:$0xff]
        %v743 = vld [vmem:[#allocation5 + $0xe00] sm:$0xff]
        %v744 = vld [vmem:[#allocation5 + $0xe08] sm:$0xff]
        %v745 = vld [vmem:[#allocation5 + $0xe10] sm:$0xff]
        %v746 = vld [vmem:[#allocation5 + $0xe18] sm:$0xff]
        %v747 = vld [vmem:[#allocation5 + $0xe20] sm:$0xff]
        %v748 = vld [vmem:[#allocation5 + $0xe28] sm:$0xff]
        %v749 = vld [vmem:[#allocation5 + $0xe30] sm:$0xff]
        %v750 = vld [vmem:[#allocation5 + $0xe38] sm:$0xff]
        %v751 = vld [vmem:[#allocation5 + $0xe40] sm:$0xff]
        %v752 = vld [vmem:[#allocation5 + $0xe48] sm:$0xff]
        %v753 = vld [vmem:[#allocation5 + $0xe50] sm:$0xff]
        %v754 = vld [vmem:[#allocation5 + $0xe58] sm:$0xff]
        %v755 = vld [vmem:[#allocation5 + $0xe60] sm:$0xff]
        %v756 = vld [vmem:[#allocation5 + $0xe68] sm:$0xff]
        %v757 = vld [vmem:[#allocation5 + $0xe70] sm:$0xff]
        %v758 = vld [vmem:[#allocation5 + $0xe78] sm:$0xff]
        %v759 = vld [vmem:[#allocation5 + $0xe80] sm:$0xff]
        %v760 = vld [vmem:[#allocation5 + $0xe88] sm:$0xff]
        %v761 = vld [vmem:[#allocation5 + $0xe90] sm:$0xff]
        %v762 = vld [vmem:[#allocation5 + $0xe98] sm:$0xff]
        %v763 = vld [vmem:[#allocation5 + $0xea0] sm:$0xff]
        %v764 = vld [vmem:[#allocation5 + $0xea8] sm:$0xff]
        %v765 = vld [vmem:[#allocation5 + $0xeb0] sm:$0xff]
        %v766 = vld [vmem:[#allocation5 + $0xeb8] sm:$0xff]
        %v767 = vld [vmem:[#allocation5 + $0xec0] sm:$0xff]
        %v768 = vld [vmem:[#allocation5 + $0xec8] sm:$0xff]
        %v769 = vld [vmem:[#allocation5 + $0xed0] sm:$0xff]
        %v770 = vld [vmem:[#allocation5 + $0xed8] sm:$0xff]
        %v771 = vld [vmem:[#allocation5 + $0xee0] sm:$0xff]
        %v772 = vld [vmem:[#allocation5 + $0xee8] sm:$0xff]
        %v773 = vld [vmem:[#allocation5 + $0xef0] sm:$0xff]
        %v774 = vld [vmem:[#allocation5 + $0xef8] sm:$0xff]
        %v775 = vld [vmem:[#allocation5 + $0xf00] sm:$0xff]
        %v776 = vld [vmem:[#allocation5 + $0xf08] sm:$0xff]
        %v777 = vld [vmem:[#allocation5 + $0xf10] sm:$0xff]
        %v778 = vld [vmem:[#allocation5 + $0xf18] sm:$0xff]
        %v779 = vld [vmem:[#allocation5 + $0xf20] sm:$0xff]
        %v780 = vld [vmem:[#allocation5 + $0xf28] sm:$0xff]
        %v781 = vld [vmem:[#allocation5 + $0xf30] sm:$0xff]
        %v782 = vld [vmem:[#allocation5 + $0xf38] sm:$0xff]
        %v783 = vld [vmem:[#allocation5 + $0xf40] sm:$0xff]
        %v784 = vld [vmem:[#allocation5 + $0xf48] sm:$0xff]
        %v785 = vld [vmem:[#allocation5 + $0xf50] sm:$0xff]
        %v786 = vld [vmem:[#allocation5 + $0xf58] sm:$0xff]
        %v787 = vld [vmem:[#allocation5 + $0xf60] sm:$0xff]
        %v788 = vld [vmem:[#allocation5 + $0xf68] sm:$0xff]
        %v789 = vld [vmem:[#allocation5 + $0xf70] sm:$0xff]
        %v790 = vld [vmem:[#allocation5 + $0xf78] sm:$0xff]
        %v791 = vld [vmem:[#allocation5 + $0xf80] sm:$0xff]
        %v792 = vld [vmem:[#allocation5 + $0xf88] sm:$0xff]
        %v793 = vld [vmem:[#allocation5 + $0xf90] sm:$0xff]
        %v794 = vld [vmem:[#allocation5 + $0xf98] sm:$0xff]
        %v795 = vld [vmem:[#allocation5 + $0xfa0] sm:$0xff]
        %v796 = vld [vmem:[#allocation5 + $0xfa8] sm:$0xff]
        %v797 = vld [vmem:[#allocation5 + $0xfb0] sm:$0xff]
        %v798 = vld [vmem:[#allocation5 + $0xfb8] sm:$0xff]
        %v799 = vld [vmem:[#allocation5 + $0xfc0] sm:$0xff]
        %v800 = vld [vmem:[#allocation5 + $0xfc8] sm:$0xff]
        %v801 = vld [vmem:[#allocation5 + $0xfd0] sm:$0xff]
        %v802 = vld [vmem:[#allocation5 + $0xfd8] sm:$0xff]
        %v803 = vld [vmem:[#allocation5 + $0xfe0] sm:$0xff]
        %v804 = vld [vmem:[#allocation5 + $0xfe8] sm:$0xff]
        %v805 = vld [vmem:[#allocation5 + $0xff0] sm:$0xff]
        %v806 = vld [vmem:[#allocation5 + $0xff8] sm:$0xff]
        %v807 = vld [vmem:[#allocation7] sm:$0xff]
        %v808 = vld [vmem:[#allocation7 + $0x8] sm:$0xff]
        %v809 = vld [vmem:[#allocation7 + $0x10] sm:$0xff]
        %v810 = vld [vmem:[#allocation7 + $0x18] sm:$0xff]
        %v815 = vlaneseq
        %v816 = vshrl.u32 %v815, 7
        %v817 = vsub.s32 0, %v816
        %v818 = vrot.slane %v807, %v817
        %v819 = vlaneseq
        %v820 = vshrl.u32 %v819, 7
        %v821 = vsub.s32 1, %v820
        %v822 = vrot.slane %v807, %v821
        %v823 = vlaneseq
        %v824 = vshrl.u32 %v823, 7
        %v825 = vsub.s32 2, %v824
        %v826 = vrot.slane %v807, %v825
        %v827 = vlaneseq
        %v828 = vshrl.u32 %v827, 7
        %v829 = vsub.s32 3, %v828
        %v830 = vrot.slane %v807, %v829
        %v831 = vlaneseq
        %v832 = vshrl.u32 %v831, 7
        %v833 = vsub.s32 4, %v832
        %v834 = vrot.slane %v807, %v833
        %v835 = vlaneseq
        %v836 = vshrl.u32 %v835, 7
        %v837 = vsub.s32 5, %v836
        %v838 = vrot.slane %v807, %v837
        %v839 = vlaneseq
        %v840 = vshrl.u32 %v839, 7
        %v841 = vsub.s32 6, %v840
        %v842 = vrot.slane %v807, %v841
        %v843 = vlaneseq
        %v844 = vshrl.u32 %v843, 7
        %v845 = vsub.s32 7, %v844
        %v846 = vrot.slane %v807, %v845
        %v847 = vlaneseq
        %v848 = vshrl.u32 %v847, 7
        %v849 = vsub.s32 0, %v848
        %v850 = vrot.slane %v808, %v849
        %v851 = vlaneseq
        %v852 = vshrl.u32 %v851, 7
        %v853 = vsub.s32 1, %v852
        %v854 = vrot.slane %v808, %v853
        %v855 = vlaneseq
        %v856 = vshrl.u32 %v855, 7
        %v857 = vsub.s32 2, %v856
        %v858 = vrot.slane %v808, %v857
        %v859 = vlaneseq
        %v860 = vshrl.u32 %v859, 7
        %v861 = vsub.s32 3, %v860
        %v862 = vrot.slane %v808, %v861
        %v863 = vlaneseq
        %v864 = vshrl.u32 %v863, 7
        %v865 = vsub.s32 4, %v864
        %v866 = vrot.slane %v808, %v865
        %v867 = vlaneseq
        %v868 = vshrl.u32 %v867, 7
        %v869 = vsub.s32 5, %v868
        %v870 = vrot.slane %v808, %v869
        %v871 = vlaneseq
        %v872 = vshrl.u32 %v871, 7
        %v873 = vsub.s32 6, %v872
        %v874 = vrot.slane %v808, %v873
        %v875 = vlaneseq
        %v876 = vshrl.u32 %v875, 7
        %v877 = vsub.s32 7, %v876
        %v878 = vrot.slane %v808, %v877
        %v879 = vlaneseq
        %v880 = vshrl.u32 %v879, 7
        %v881 = vsub.s32 0, %v880
        %v882 = vrot.slane %v809, %v881
        %v883 = vlaneseq
        %v884 = vshrl.u32 %v883, 7
        %v885 = vsub.s32 1, %v884
        %v886 = vrot.slane %v809, %v885
        %v887 = vlaneseq
        %v888 = vshrl.u32 %v887, 7
        %v889 = vsub.s32 2, %v888
        %v890 = vrot.slane %v809, %v889
        %v891 = vlaneseq
        %v892 = vshrl.u32 %v891, 7
        %v893 = vsub.s32 3, %v892
        %v894 = vrot.slane %v809, %v893
        %v895 = vlaneseq
        %v896 = vshrl.u32 %v895, 7
        %v897 = vsub.s32 4, %v896
        %v898 = vrot.slane %v809, %v897
        %v899 = vlaneseq
        %v900 = vshrl.u32 %v899, 7
        %v901 = vsub.s32 5, %v900
        %v902 = vrot.slane %v809, %v901
        %v903 = vlaneseq
        %v904 = vshrl.u32 %v903, 7
        %v905 = vsub.s32 6, %v904
        %v906 = vrot.slane %v809, %v905
        %v907 = vlaneseq
        %v908 = vshrl.u32 %v907, 7
        %v909 = vsub.s32 7, %v908
        %v910 = vrot.slane %v809, %v909
        %v911 = vlaneseq
        %v912 = vshrl.u32 %v911, 7
        %v913 = vsub.s32 0, %v912
        %v914 = vrot.slane %v810, %v913
        %v915 = vlaneseq
        %v916 = vshrl.u32 %v915, 7
        %v917 = vsub.s32 1, %v916
        %v918 = vrot.slane %v810, %v917
        %v919 = vlaneseq
        %v920 = vshrl.u32 %v919, 7
        %v921 = vsub.s32 2, %v920
        %v922 = vrot.slane %v810, %v921
        %v923 = vlaneseq
        %v924 = vshrl.u32 %v923, 7
        %v925 = vsub.s32 3, %v924
        %v926 = vrot.slane %v810, %v925
        %v927 = vlaneseq
        %v928 = vshrl.u32 %v927, 7
        %v929 = vsub.s32 4, %v928
        %v930 = vrot.slane %v810, %v929
        %v931 = vlaneseq
        %v932 = vshrl.u32 %v931, 7
        %v933 = vsub.s32 5, %v932
        %v934 = vrot.slane %v810, %v933
        %v935 = vlaneseq
        %v936 = vshrl.u32 %v935, 7
        %v937 = vsub.s32 6, %v936
        %v938 = vrot.slane %v810, %v937
        %v939 = vlaneseq
        %v940 = vshrl.u32 %v939, 7
        %v941 = vsub.s32 7, %v940
        %v942 = vrot.slane %v810, %v941
        %975 = vmatprep.subr.mxu0 %v296
        %976 = vmatpush1.msra.mxu0 %v295
        %977 = vmatprep.subr.mxu0 %v328
        %978 = vmatpush1.msra.mxu0 %v327
        %979 = vmatprep.subr.mxu0 %v360
        %980 = vmatpush1.msra.mxu0 %v359
        %981 = vmatprep.subr.mxu0 %v392
        %982 = vmatpush1.msra.mxu0 %v391
        %983 = vmatprep.subr.mxu0 %v424
        %984 = vmatpush1.msra.mxu0 %v423
        %985 = vmatprep.subr.mxu0 %v456
        %986 = vmatpush1.msra.mxu0 %v455
        %987 = vmatprep.subr.mxu0 %v488
        %988 = vmatpush1.msra.mxu0 %v487
        %989 = vmatprep.subr.mxu0 %v520
        %990 = vmatpush1.msra.mxu0 %v519
        %991 = vmatprep.subr.mxu0 %v552
        %992 = vmatpush1.msra.mxu0 %v551
        %993 = vmatprep.subr.mxu0 %v584
        %994 = vmatpush1.msra.mxu0 %v583
        %995 = vmatprep.subr.mxu0 %v616
        %996 = vmatpush1.msra.mxu0 %v615
        %997 = vmatprep.subr.mxu0 %v648
        %998 = vmatpush1.msra.mxu0 %v647
        %999 = vmatprep.subr.mxu0 %v680
        %1000 = vmatpush1.msra.mxu0 %v679
        %1001 = vmatprep.subr.mxu0 %v712
        %1002 = vmatpush1.msra.mxu0 %v711
        %1003 = vmatprep.subr.mxu0 %v744
        %1004 = vmatpush1.msra.mxu0 %v743
        %1005 = vmatprep.subr.mxu0 %v776
        %1006 = vmatpush1.msra.mxu0 %v775
        %1007 = vmatprep.subr.mxu0 0.0
        %1008 = vmatpush1.msra.mxu0 0.0
        %1009 = vmatprep.subr.mxu0 0.0
        %1010 = vmatpush1.msra.mxu0 0.0
        %1011 = vmatprep.subr.mxu0 0.0
        %1012 = vmatpush1.msra.mxu0 0.0
        %1013 = vmatprep.subr.mxu0 0.0
        %1014 = vmatpush1.msra.mxu0 0.0
        %1015 = vmatprep.subr.mxu0 0.0
        %1016 = vmatpush1.msra.mxu0 0.0
        %1017 = vmatprep.subr.mxu0 0.0
        %1018 = vmatpush1.msra.mxu0 0.0
        %1019 = vmatprep.subr.mxu0 0.0
        %1020 = vmatpush1.msra.mxu0 0.0
        %1021 = vmatprep.subr.mxu0 0.0
        %1022 = vmatpush1.msra.mxu0 0.0
        %1023 = vmatprep.subr.mxu0 0.0
        %1024 = vmatpush1.msra.mxu0 0.0
        %1025 = vmatprep.subr.mxu0 0.0
        %1026 = vmatpush1.msra.mxu0 0.0
        %1027 = vmatprep.subr.mxu0 0.0
        %1028 = vmatpush1.msra.mxu0 0.0
        %1029 = vmatprep.subr.mxu0 0.0
        %1030 = vmatpush1.msra.mxu0 0.0
        %1031 = vmatprep.subr.mxu0 0.0
        %1032 = vmatpush1.msra.mxu0 0.0
        %1033 = vmatprep.subr.mxu0 0.0
        %1034 = vmatpush1.msra.mxu0 0.0
        %1035 = vmatprep.subr.mxu0 0.0
        %1036 = vmatpush1.msra.mxu0 0.0
        %1037 = vmatprep.subr.mxu0 0.0
        %1038 = vmatpush1.msra.mxu0 0.0
        %1039 = vmatprep.mubr.f32.mxu0 0.0
        %1040 = vmatmul.mubr.f32.gmra.mrb[0].mxu0 %v294
        %v1041 = vpop.f32.mrb[0].mxu0
        %v1042 = vadd.f32 %v818, %v1041
        %v1043 = vpop.f32.mrb[0].mxu0
        %v1044 = vadd.f32 %v822, %v1043
        %1045 = vdwg.mxu0
        %1046 = vmatprep.subr.mxu0 %v298
        %1047 = vmatpush1.msra.mxu0 %v297
        %1048 = vmatprep.subr.mxu0 %v330
        %1049 = vmatpush1.msra.mxu0 %v329
        %1050 = vmatprep.subr.mxu0 %v362
        %1051 = vmatpush1.msra.mxu0 %v361
        %1052 = vmatprep.subr.mxu0 %v394
        %1053 = vmatpush1.msra.mxu0 %v393
        %1054 = vmatprep.subr.mxu0 %v426
        %1055 = vmatpush1.msra.mxu0 %v425
        %1056 = vmatprep.subr.mxu0 %v458
        %1057 = vmatpush1.msra.mxu0 %v457
        %1058 = vmatprep.subr.mxu0 %v490
        %1059 = vmatpush1.msra.mxu0 %v489
        %1060 = vmatprep.subr.mxu0 %v522
        %1061 = vmatpush1.msra.mxu0 %v521
        %1062 = vmatprep.subr.mxu0 %v554
        %1063 = vmatpush1.msra.mxu0 %v553
        %1064 = vmatprep.subr.mxu0 %v586
        %1065 = vmatpush1.msra.mxu0 %v585
        %1066 = vmatprep.subr.mxu0 %v618
        %1067 = vmatpush1.msra.mxu0 %v617
        %1068 = vmatprep.subr.mxu0 %v650
        %1069 = vmatpush1.msra.mxu0 %v649
        %1070 = vmatprep.subr.mxu0 %v682
        %1071 = vmatpush1.msra.mxu0 %v681
        %1072 = vmatprep.subr.mxu0 %v714
        %1073 = vmatpush1.msra.mxu0 %v713
        %1074 = vmatprep.subr.mxu0 %v746
        %1075 = vmatpush1.msra.mxu0 %v745
        %1076 = vmatprep.subr.mxu0 %v778
        %1077 = vmatpush1.msra.mxu0 %v777
        %1078 = vmatprep.subr.mxu0 0.0
        %1079 = vmatpush1.msra.mxu0 0.0
        %1080 = vmatprep.subr.mxu0 0.0
        %1081 = vmatpush1.msra.mxu0 0.0
        %1082 = vmatprep.subr.mxu0 0.0
        %1083 = vmatpush1.msra.mxu0 0.0
        %1084 = vmatprep.subr.mxu0 0.0
        %1085 = vmatpush1.msra.mxu0 0.0
        %1086 = vmatprep.subr.mxu0 0.0
        %1087 = vmatpush1.msra.mxu0 0.0
        %1088 = vmatprep.subr.mxu0 0.0
        %1089 = vmatpush1.msra.mxu0 0.0
        %1090 = vmatprep.subr.mxu0 0.0
        %1091 = vmatpush1.msra.mxu0 0.0
        %1092 = vmatprep.subr.mxu0 0.0
        %1093 = vmatpush1.msra.mxu0 0.0
        %1094 = vmatprep.subr.mxu0 0.0
        %1095 = vmatpush1.msra.mxu0 0.0
        %1096 = vmatprep.subr.mxu0 0.0
        %1097 = vmatpush1.msra.mxu0 0.0
        %1098 = vmatprep.subr.mxu0 0.0
        %1099 = vmatpush1.msra.mxu0 0.0
        %1100 = vmatprep.subr.mxu0 0.0
        %1101 = vmatpush1.msra.mxu0 0.0
        %1102 = vmatprep.subr.mxu0 0.0
        %1103 = vmatpush1.msra.mxu0 0.0
        %1104 = vmatprep.subr.mxu0 0.0
        %1105 = vmatpush1.msra.mxu0 0.0
        %1106 = vmatprep.subr.mxu0 0.0
        %1107 = vmatpush1.msra.mxu0 0.0
        %1108 = vmatprep.subr.mxu0 0.0
        %1109 = vmatpush1.msra.mxu0 0.0
        %1110 = vmatprep.mubr.f32.mxu0 0.0
        %1111 = vmatmul.mubr.f32.gmra.mrb[0].mxu0 %v294
        %v1112 = vpop.f32.mrb[0].mxu0
        %v1113 = vadd.f32 %v826, %v1112
        %v1114 = vpop.f32.mrb[0].mxu0
        %v1115 = vadd.f32 %v830, %v1114
        %1116 = vdwg.mxu0
        %1117 = vmatprep.subr.mxu0 %v300
        %1118 = vmatpush1.msra.mxu0 %v299
        %1119 = vmatprep.subr.mxu0 %v332
        %1120 = vmatpush1.msra.mxu0 %v331
        %1121 = vmatprep.subr.mxu0 %v364
        %1122 = vmatpush1.msra.mxu0 %v363
        %1123 = vmatprep.subr.mxu0 %v396
        %1124 = vmatpush1.msra.mxu0 %v395
        %1125 = vmatprep.subr.mxu0 %v428
        %1126 = vmatpush1.msra.mxu0 %v427
        %1127 = vmatprep.subr.mxu0 %v460
        %1128 = vmatpush1.msra.mxu0 %v459
        %1129 = vmatprep.subr.mxu0 %v492
        %1130 = vmatpush1.msra.mxu0 %v491
        %1131 = vmatprep.subr.mxu0 %v524
        %1132 = vmatpush1.msra.mxu0 %v523
        %1133 = vmatprep.subr.mxu0 %v556
        %1134 = vmatpush1.msra.mxu0 %v555
        %1135 = vmatprep.subr.mxu0 %v588
        %1136 = vmatpush1.msra.mxu0 %v587
        %1137 = vmatprep.subr.mxu0 %v620
        %1138 = vmatpush1.msra.mxu0 %v619
        %1139 = vmatprep.subr.mxu0 %v652
        %1140 = vmatpush1.msra.mxu0 %v651
        %1141 = vmatprep.subr.mxu0 %v684
        %1142 = vmatpush1.msra.mxu0 %v683
        %1143 = vmatprep.subr.mxu0 %v716
        %1144 = vmatpush1.msra.mxu0 %v715
        %1145 = vmatprep.subr.mxu0 %v748
        %1146 = vmatpush1.msra.mxu0 %v747
        %1147 = vmatprep.subr.mxu0 %v780
        %1148 = vmatpush1.msra.mxu0 %v779
        %1149 = vmatprep.subr.mxu0 0.0
        %1150 = vmatpush1.msra.mxu0 0.0
        %1151 = vmatprep.subr.mxu0 0.0
        %1152 = vmatpush1.msra.mxu0 0.0
        %1153 = vmatprep.subr.mxu0 0.0
        %1154 = vmatpush1.msra.mxu0 0.0
        %1155 = vmatprep.subr.mxu0 0.0
        %1156 = vmatpush1.msra.mxu0 0.0
        %1157 = vmatprep.subr.mxu0 0.0
        %1158 = vmatpush1.msra.mxu0 0.0
        %1159 = vmatprep.subr.mxu0 0.0
        %1160 = vmatpush1.msra.mxu0 0.0
        %1161 = vmatprep.subr.mxu0 0.0
        %1162 = vmatpush1.msra.mxu0 0.0
        %1163 = vmatprep.subr.mxu0 0.0
        %1164 = vmatpush1.msra.mxu0 0.0
        %1165 = vmatprep.subr.mxu0 0.0
        %1166 = vmatpush1.msra.mxu0 0.0
        %1167 = vmatprep.subr.mxu0 0.0
        %1168 = vmatpush1.msra.mxu0 0.0
        %1169 = vmatprep.subr.mxu0 0.0
        %1170 = vmatpush1.msra.mxu0 0.0
        %1171 = vmatprep.subr.mxu0 0.0
        %1172 = vmatpush1.msra.mxu0 0.0
        %1173 = vmatprep.subr.mxu0 0.0
        %1174 = vmatpush1.msra.mxu0 0.0
        %1175 = vmatprep.subr.mxu0 0.0
        %1176 = vmatpush1.msra.mxu0 0.0
        %1177 = vmatprep.subr.mxu0 0.0
        %1178 = vmatpush1.msra.mxu0 0.0
        %1179 = vmatprep.subr.mxu0 0.0
        %1180 = vmatpush1.msra.mxu0 0.0
        %1181 = vmatprep.mubr.f32.mxu0 0.0
        %1182 = vmatmul.mubr.f32.gmra.mrb[0].mxu0 %v294
        %v1183 = vpop.f32.mrb[0].mxu0
        %v1184 = vadd.f32 %v834, %v1183
        %v1185 = vpop.f32.mrb[0].mxu0
        %v1186 = vadd.f32 %v838, %v1185
        %1187 = vdwg.mxu0
        %1188 = vmatprep.subr.mxu0 %v302
        %1189 = vmatpush1.msra.mxu0 %v301
        %1190 = vmatprep.subr.mxu0 %v334
        %1191 = vmatpush1.msra.mxu0 %v333
        %1192 = vmatprep.subr.mxu0 %v366
        %1193 = vmatpush1.msra.mxu0 %v365
        %1194 = vmatprep.subr.mxu0 %v398
        %1195 = vmatpush1.msra.mxu0 %v397
        %1196 = vmatprep.subr.mxu0 %v430
        %1197 = vmatpush1.msra.mxu0 %v429
        %1198 = vmatprep.subr.mxu0 %v462
        %1199 = vmatpush1.msra.mxu0 %v461
        %1200 = vmatprep.subr.mxu0 %v494
        %1201 = vmatpush1.msra.mxu0 %v493
        %1202 = vmatprep.subr.mxu0 %v526
        %1203 = vmatpush1.msra.mxu0 %v525
        %1204 = vmatprep.subr.mxu0 %v558
        %1205 = vmatpush1.msra.mxu0 %v557
        %1206 = vmatprep.subr.mxu0 %v590
        %1207 = vmatpush1.msra.mxu0 %v589
        %1208 = vmatprep.subr.mxu0 %v622
        %1209 = vmatpush1.msra.mxu0 %v621
        %1210 = vmatprep.subr.mxu0 %v654
        %1211 = vmatpush1.msra.mxu0 %v653
        %1212 = vmatprep.subr.mxu0 %v686
        %1213 = vmatpush1.msra.mxu0 %v685
        %1214 = vmatprep.subr.mxu0 %v718
        %1215 = vmatpush1.msra.mxu0 %v717
        %1216 = vmatprep.subr.mxu0 %v750
        %1217 = vmatpush1.msra.mxu0 %v749
        %1218 = vmatprep.subr.mxu0 %v782
        %1219 = vmatpush1.msra.mxu0 %v781
        %1220 = vmatprep.subr.mxu0 0.0
        %1221 = vmatpush1.msra.mxu0 0.0
        %1222 = vmatprep.subr.mxu0 0.0
        %1223 = vmatpush1.msra.mxu0 0.0
        %1224 = vmatprep.subr.mxu0 0.0
        %1225 = vmatpush1.msra.mxu0 0.0
        %1226 = vmatprep.subr.mxu0 0.0
        %1227 = vmatpush1.msra.mxu0 0.0
        %1228 = vmatprep.subr.mxu0 0.0
        %1229 = vmatpush1.msra.mxu0 0.0
        %1230 = vmatprep.subr.mxu0 0.0
        %1231 = vmatpush1.msra.mxu0 0.0
        %1232 = vmatprep.subr.mxu0 0.0
        %1233 = vmatpush1.msra.mxu0 0.0
        %1234 = vmatprep.subr.mxu0 0.0
        %1235 = vmatpush1.msra.mxu0 0.0
        %1236 = vmatprep.subr.mxu0 0.0
        %1237 = vmatpush1.msra.mxu0 0.0
        %1238 = vmatprep.subr.mxu0 0.0
        %1239 = vmatpush1.msra.mxu0 0.0
        %1240 = vmatprep.subr.mxu0 0.0
        %1241 = vmatpush1.msra.mxu0 0.0
        %1242 = vmatprep.subr.mxu0 0.0
        %1243 = vmatpush1.msra.mxu0 0.0
        %1244 = vmatprep.subr.mxu0 0.0
        %1245 = vmatpush1.msra.mxu0 0.0
        %1246 = vmatprep.subr.mxu0 0.0
        %1247 = vmatpush1.msra.mxu0 0.0
        %1248 = vmatprep.subr.mxu0 0.0
        %1249 = vmatpush1.msra.mxu0 0.0
        %1250 = vmatprep.subr.mxu0 0.0
        %1251 = vmatpush1.msra.mxu0 0.0
        %1252 = vmatprep.mubr.f32.mxu0 0.0
        %1253 = vmatmul.mubr.f32.gmra.mrb[0].mxu0 %v294
        %v1254 = vpop.f32.mrb[0].mxu0
        %v1255 = vadd.f32 %v842, %v1254
        %v1256 = vpop.f32.mrb[0].mxu0
        %v1257 = vadd.f32 %v846, %v1256
        %1258 = vdwg.mxu0
        %1259 = vmatprep.subr.mxu0 %v304
        %1260 = vmatpush1.msra.mxu0 %v303
        %1261 = vmatprep.subr.mxu0 %v336
        %1262 = vmatpush1.msra.mxu0 %v335
        %1263 = vmatprep.subr.mxu0 %v368
        %1264 = vmatpush1.msra.mxu0 %v367
        %1265 = vmatprep.subr.mxu0 %v400
        %1266 = vmatpush1.msra.mxu0 %v399
        %1267 = vmatprep.subr.mxu0 %v432
        %1268 = vmatpush1.msra.mxu0 %v431
        %1269 = vmatprep.subr.mxu0 %v464
        %1270 = vmatpush1.msra.mxu0 %v463
        %1271 = vmatprep.subr.mxu0 %v496
        %1272 = vmatpush1.msra.mxu0 %v495
        %1273 = vmatprep.subr.mxu0 %v528
        %1274 = vmatpush1.msra.mxu0 %v527
        %1275 = vmatprep.subr.mxu0 %v560
        %1276 = vmatpush1.msra.mxu0 %v559
        %1277 = vmatprep.subr.mxu0 %v592
        %1278 = vmatpush1.msra.mxu0 %v591
        %1279 = vmatprep.subr.mxu0 %v624
        %1280 = vmatpush1.msra.mxu0 %v623
        %1281 = vmatprep.subr.mxu0 %v656
        %1282 = vmatpush1.msra.mxu0 %v655
        %1283 = vmatprep.subr.mxu0 %v688
        %1284 = vmatpush1.msra.mxu0 %v687
        %1285 = vmatprep.subr.mxu0 %v720
        %1286 = vmatpush1.msra.mxu0 %v719
        %1287 = vmatprep.subr.mxu0 %v752
        %1288 = vmatpush1.msra.mxu0 %v751
        %1289 = vmatprep.subr.mxu0 %v784
        %1290 = vmatpush1.msra.mxu0 %v783
        %1291 = vmatprep.subr.mxu0 0.0
        %1292 = vmatpush1.msra.mxu0 0.0
        %1293 = vmatprep.subr.mxu0 0.0
        %1294 = vmatpush1.msra.mxu0 0.0
        %1295 = vmatprep.subr.mxu0 0.0
        %1296 = vmatpush1.msra.mxu0 0.0
        %1297 = vmatprep.subr.mxu0 0.0
        %1298 = vmatpush1.msra.mxu0 0.0
        %1299 = vmatprep.subr.mxu0 0.0
        %1300 = vmatpush1.msra.mxu0 0.0
        %1301 = vmatprep.subr.mxu0 0.0
        %1302 = vmatpush1.msra.mxu0 0.0
        %1303 = vmatprep.subr.mxu0 0.0
        %1304 = vmatpush1.msra.mxu0 0.0
        %1305 = vmatprep.subr.mxu0 0.0
        %1306 = vmatpush1.msra.mxu0 0.0
        %1307 = vmatprep.subr.mxu0 0.0
        %1308 = vmatpush1.msra.mxu0 0.0
        %1309 = vmatprep.subr.mxu0 0.0
        %1310 = vmatpush1.msra.mxu0 0.0
        %1311 = vmatprep.subr.mxu0 0.0
        %1312 = vmatpush1.msra.mxu0 0.0
        %1313 = vmatprep.subr.mxu0 0.0
        %1314 = vmatpush1.msra.mxu0 0.0
        %1315 = vmatprep.subr.mxu0 0.0
        %1316 = vmatpush1.msra.mxu0 0.0
        %1317 = vmatprep.subr.mxu0 0.0
        %1318 = vmatpush1.msra.mxu0 0.0
        %1319 = vmatprep.subr.mxu0 0.0
        %1320 = vmatpush1.msra.mxu0 0.0
        %1321 = vmatprep.subr.mxu0 0.0
        %1322 = vmatpush1.msra.mxu0 0.0
        %1323 = vmatprep.mubr.f32.mxu0 0.0
        %1324 = vmatmul.mubr.f32.gmra.mrb[0].mxu0 %v294
        %v1325 = vpop.f32.mrb[0].mxu0
        %v1326 = vadd.f32 %v850, %v1325
        %v1327 = vpop.f32.mrb[0].mxu0
        %v1328 = vadd.f32 %v854, %v1327
        %1329 = vdwg.mxu0
        %1330 = vmatprep.subr.mxu0 %v306
        %1331 = vmatpush1.msra.mxu0 %v305
        %1332 = vmatprep.subr.mxu0 %v338
        %1333 = vmatpush1.msra.mxu0 %v337
        %1334 = vmatprep.subr.mxu0 %v370
        %1335 = vmatpush1.msra.mxu0 %v369
        %1336 = vmatprep.subr.mxu0 %v402
        %1337 = vmatpush1.msra.mxu0 %v401
        %1338 = vmatprep.subr.mxu0 %v434
        %1339 = vmatpush1.msra.mxu0 %v433
        %1340 = vmatprep.subr.mxu0 %v466
        %1341 = vmatpush1.msra.mxu0 %v465
        %1342 = vmatprep.subr.mxu0 %v498
        %1343 = vmatpush1.msra.mxu0 %v497
        %1344 = vmatprep.subr.mxu0 %v530
        %1345 = vmatpush1.msra.mxu0 %v529
        %1346 = vmatprep.subr.mxu0 %v562
        %1347 = vmatpush1.msra.mxu0 %v561
        %1348 = vmatprep.subr.mxu0 %v594
        %1349 = vmatpush1.msra.mxu0 %v593
        %1350 = vmatprep.subr.mxu0 %v626
        %1351 = vmatpush1.msra.mxu0 %v625
        %1352 = vmatprep.subr.mxu0 %v658
        %1353 = vmatpush1.msra.mxu0 %v657
        %1354 = vmatprep.subr.mxu0 %v690
        %1355 = vmatpush1.msra.mxu0 %v689
        %1356 = vmatprep.subr.mxu0 %v722
        %1357 = vmatpush1.msra.mxu0 %v721
        %1358 = vmatprep.subr.mxu0 %v754
        %1359 = vmatpush1.msra.mxu0 %v753
        %1360 = vmatprep.subr.mxu0 %v786
        %1361 = vmatpush1.msra.mxu0 %v785
        %1362 = vmatprep.subr.mxu0 0.0
        %1363 = vmatpush1.msra.mxu0 0.0
        %1364 = vmatprep.subr.mxu0 0.0
        %1365 = vmatpush1.msra.mxu0 0.0
        %1366 = vmatprep.subr.mxu0 0.0
        %1367 = vmatpush1.msra.mxu0 0.0
        %1368 = vmatprep.subr.mxu0 0.0
        %1369 = vmatpush1.msra.mxu0 0.0
        %1370 = vmatprep.subr.mxu0 0.0
        %1371 = vmatpush1.msra.mxu0 0.0
        %1372 = vmatprep.subr.mxu0 0.0
        %1373 = vmatpush1.msra.mxu0 0.0
        %1374 = vmatprep.subr.mxu0 0.0
        %1375 = vmatpush1.msra.mxu0 0.0
        %1376 = vmatprep.subr.mxu0 0.0
        %1377 = vmatpush1.msra.mxu0 0.0
        %1378 = vmatprep.subr.mxu0 0.0
        %1379 = vmatpush1.msra.mxu0 0.0
        %1380 = vmatprep.subr.mxu0 0.0
        %1381 = vmatpush1.msra.mxu0 0.0
        %1382 = vmatprep.subr.mxu0 0.0
        %1383 = vmatpush1.msra.mxu0 0.0
        %1384 = vmatprep.subr.mxu0 0.0
        %1385 = vmatpush1.msra.mxu0 0.0
        %1386 = vmatprep.subr.mxu0 0.0
        %1387 = vmatpush1.msra.mxu0 0.0
        %1388 = vmatprep.subr.mxu0 0.0
        %1389 = vmatpush1.msra.mxu0 0.0
        %1390 = vmatprep.subr.mxu0 0.0
        %1391 = vmatpush1.msra.mxu0 0.0
        %1392 = vmatprep.subr.mxu0 0.0
        %1393 = vmatpush1.msra.mxu0 0.0
        %1394 = vmatprep.mubr.f32.mxu0 0.0
        %1395 = vmatmul.mubr.f32.gmra.mrb[0].mxu0 %v294
        %v1396 = vpop.f32.mrb[0].mxu0
        %v1397 = vadd.f32 %v858, %v1396
        %v1398 = vpop.f32.mrb[0].mxu0
        %v1399 = vadd.f32 %v862, %v1398
        %1400 = vdwg.mxu0
        %1401 = vmatprep.subr.mxu0 %v308
        %1402 = vmatpush1.msra.mxu0 %v307
        %1403 = vmatprep.subr.mxu0 %v340
        %1404 = vmatpush1.msra.mxu0 %v339
        %1405 = vmatprep.subr.mxu0 %v372
        %1406 = vmatpush1.msra.mxu0 %v371
        %1407 = vmatprep.subr.mxu0 %v404
        %1408 = vmatpush1.msra.mxu0 %v403
        %1409 = vmatprep.subr.mxu0 %v436
        %1410 = vmatpush1.msra.mxu0 %v435
        %1411 = vmatprep.subr.mxu0 %v468
        %1412 = vmatpush1.msra.mxu0 %v467
        %1413 = vmatprep.subr.mxu0 %v500
        %1414 = vmatpush1.msra.mxu0 %v499
        %1415 = vmatprep.subr.mxu0 %v532
        %1416 = vmatpush1.msra.mxu0 %v531
        %1417 = vmatprep.subr.mxu0 %v564
        %1418 = vmatpush1.msra.mxu0 %v563
        %1419 = vmatprep.subr.mxu0 %v596
        %1420 = vmatpush1.msra.mxu0 %v595
        %1421 = vmatprep.subr.mxu0 %v628
        %1422 = vmatpush1.msra.mxu0 %v627
        %1423 = vmatprep.subr.mxu0 %v660
        %1424 = vmatpush1.msra.mxu0 %v659
        %1425 = vmatprep.subr.mxu0 %v692
        %1426 = vmatpush1.msra.mxu0 %v691
        %1427 = vmatprep.subr.mxu0 %v724
        %1428 = vmatpush1.msra.mxu0 %v723
        %1429 = vmatprep.subr.mxu0 %v756
        %1430 = vmatpush1.msra.mxu0 %v755
        %1431 = vmatprep.subr.mxu0 %v788
        %1432 = vmatpush1.msra.mxu0 %v787
        %1433 = vmatprep.subr.mxu0 0.0
        %1434 = vmatpush1.msra.mxu0 0.0
        %1435 = vmatprep.subr.mxu0 0.0
        %1436 = vmatpush1.msra.mxu0 0.0
        %1437 = vmatprep.subr.mxu0 0.0
        %1438 = vmatpush1.msra.mxu0 0.0
        %1439 = vmatprep.subr.mxu0 0.0
        %1440 = vmatpush1.msra.mxu0 0.0
        %1441 = vmatprep.subr.mxu0 0.0
        %1442 = vmatpush1.msra.mxu0 0.0
        %1443 = vmatprep.subr.mxu0 0.0
        %1444 = vmatpush1.msra.mxu0 0.0
        %1445 = vmatprep.subr.mxu0 0.0
        %1446 = vmatpush1.msra.mxu0 0.0
        %1447 = vmatprep.subr.mxu0 0.0
        %1448 = vmatpush1.msra.mxu0 0.0
        %1449 = vmatprep.subr.mxu0 0.0
        %1450 = vmatpush1.msra.mxu0 0.0
        %1451 = vmatprep.subr.mxu0 0.0
        %1452 = vmatpush1.msra.mxu0 0.0
        %1453 = vmatprep.subr.mxu0 0.0
        %1454 = vmatpush1.msra.mxu0 0.0
        %1455 = vmatprep.subr.mxu0 0.0
        %1456 = vmatpush1.msra.mxu0 0.0
        %1457 = vmatprep.subr.mxu0 0.0
        %1458 = vmatpush1.msra.mxu0 0.0
        %1459 = vmatprep.subr.mxu0 0.0
        %1460 = vmatpush1.msra.mxu0 0.0
        %1461 = vmatprep.subr.mxu0 0.0
        %1462 = vmatpush1.msra.mxu0 0.0
        %1463 = vmatprep.subr.mxu0 0.0
        %1464 = vmatpush1.msra.mxu0 0.0
        %1465 = vmatprep.mubr.f32.mxu0 0.0
        %1466 = vmatmul.mubr.f32.gmra.mrb[0].mxu0 %v294
        %v1467 = vpop.f32.mrb[0].mxu0
        %v1468 = vadd.f32 %v866, %v1467
        %v1469 = vpop.f32.mrb[0].mxu0
        %v1470 = vadd.f32 %v870, %v1469
        %1471 = vdwg.mxu0
        %1472 = vmatprep.subr.mxu0 %v310
        %1473 = vmatpush1.msra.mxu0 %v309
        %1474 = vmatprep.subr.mxu0 %v342
        %1475 = vmatpush1.msra.mxu0 %v341
        %1476 = vmatprep.subr.mxu0 %v374
        %1477 = vmatpush1.msra.mxu0 %v373
        %1478 = vmatprep.subr.mxu0 %v406
        %1479 = vmatpush1.msra.mxu0 %v405
        %1480 = vmatprep.subr.mxu0 %v438
        %1481 = vmatpush1.msra.mxu0 %v437
        %1482 = vmatprep.subr.mxu0 %v470
        %1483 = vmatpush1.msra.mxu0 %v469
        %1484 = vmatprep.subr.mxu0 %v502
        %1485 = vmatpush1.msra.mxu0 %v501
        %1486 = vmatprep.subr.mxu0 %v534
        %1487 = vmatpush1.msra.mxu0 %v533
        %1488 = vmatprep.subr.mxu0 %v566
        %1489 = vmatpush1.msra.mxu0 %v565
        %1490 = vmatprep.subr.mxu0 %v598
        %1491 = vmatpush1.msra.mxu0 %v597
        %1492 = vmatprep.subr.mxu0 %v630
        %1493 = vmatpush1.msra.mxu0 %v629
        %1494 = vmatprep.subr.mxu0 %v662
        %1495 = vmatpush1.msra.mxu0 %v661
        %1496 = vmatprep.subr.mxu0 %v694
        %1497 = vmatpush1.msra.mxu0 %v693
        %1498 = vmatprep.subr.mxu0 %v726
        %1499 = vmatpush1.msra.mxu0 %v725
        %1500 = vmatprep.subr.mxu0 %v758
        %1501 = vmatpush1.msra.mxu0 %v757
        %1502 = vmatprep.subr.mxu0 %v790
        %1503 = vmatpush1.msra.mxu0 %v789
        %1504 = vmatprep.subr.mxu0 0.0
        %1505 = vmatpush1.msra.mxu0 0.0
        %1506 = vmatprep.subr.mxu0 0.0
        %1507 = vmatpush1.msra.mxu0 0.0
        %1508 = vmatprep.subr.mxu0 0.0
        %1509 = vmatpush1.msra.mxu0 0.0
        %1510 = vmatprep.subr.mxu0 0.0
        %1511 = vmatpush1.msra.mxu0 0.0
        %1512 = vmatprep.subr.mxu0 0.0
        %1513 = vmatpush1.msra.mxu0 0.0
        %1514 = vmatprep.subr.mxu0 0.0
        %1515 = vmatpush1.msra.mxu0 0.0
        %1516 = vmatprep.subr.mxu0 0.0
        %1517 = vmatpush1.msra.mxu0 0.0
        %1518 = vmatprep.subr.mxu0 0.0
        %1519 = vmatpush1.msra.mxu0 0.0
        %1520 = vmatprep.subr.mxu0 0.0
        %1521 = vmatpush1.msra.mxu0 0.0
        %1522 = vmatprep.subr.mxu0 0.0
        %1523 = vmatpush1.msra.mxu0 0.0
        %1524 = vmatprep.subr.mxu0 0.0
        %1525 = vmatpush1.msra.mxu0 0.0
        %1526 = vmatprep.subr.mxu0 0.0
        %1527 = vmatpush1.msra.mxu0 0.0
        %1528 = vmatprep.subr.mxu0 0.0
        %1529 = vmatpush1.msra.mxu0 0.0
        %1530 = vmatprep.subr.mxu0 0.0
        %1531 = vmatpush1.msra.mxu0 0.0
        %1532 = vmatprep.subr.mxu0 0.0
        %1533 = vmatpush1.msra.mxu0 0.0
        %1534 = vmatprep.subr.mxu0 0.0
        %1535 = vmatpush1.msra.mxu0 0.0
        %1536 = vmatprep.mubr.f32.mxu0 0.0
        %1537 = vmatmul.mubr.f32.gmra.mrb[0].mxu0 %v294
        %v1538 = vpop.f32.mrb[0].mxu0
        %v1539 = vadd.f32 %v874, %v1538
        %v1540 = vpop.f32.mrb[0].mxu0
        %v1541 = vadd.f32 %v878, %v1540
        %1542 = vdwg.mxu0
        %1543 = vmatprep.subr.mxu0 %v312
        %1544 = vmatpush1.msra.mxu0 %v311
        %1545 = vmatprep.subr.mxu0 %v344
        %1546 = vmatpush1.msra.mxu0 %v343
        %1547 = vmatprep.subr.mxu0 %v376
        %1548 = vmatpush1.msra.mxu0 %v375
        %1549 = vmatprep.subr.mxu0 %v408
        %1550 = vmatpush1.msra.mxu0 %v407
        %1551 = vmatprep.subr.mxu0 %v440
        %1552 = vmatpush1.msra.mxu0 %v439
        %1553 = vmatprep.subr.mxu0 %v472
        %1554 = vmatpush1.msra.mxu0 %v471
        %1555 = vmatprep.subr.mxu0 %v504
        %1556 = vmatpush1.msra.mxu0 %v503
        %1557 = vmatprep.subr.mxu0 %v536
        %1558 = vmatpush1.msra.mxu0 %v535
        %1559 = vmatprep.subr.mxu0 %v568
        %1560 = vmatpush1.msra.mxu0 %v567
        %1561 = vmatprep.subr.mxu0 %v600
        %1562 = vmatpush1.msra.mxu0 %v599
        %1563 = vmatprep.subr.mxu0 %v632
        %1564 = vmatpush1.msra.mxu0 %v631
        %1565 = vmatprep.subr.mxu0 %v664
        %1566 = vmatpush1.msra.mxu0 %v663
        %1567 = vmatprep.subr.mxu0 %v696
        %1568 = vmatpush1.msra.mxu0 %v695
        %1569 = vmatprep.subr.mxu0 %v728
        %1570 = vmatpush1.msra.mxu0 %v727
        %1571 = vmatprep.subr.mxu0 %v760
        %1572 = vmatpush1.msra.mxu0 %v759
        %1573 = vmatprep.subr.mxu0 %v792
        %1574 = vmatpush1.msra.mxu0 %v791
        %1575 = vmatprep.subr.mxu0 0.0
        %1576 = vmatpush1.msra.mxu0 0.0
        %1577 = vmatprep.subr.mxu0 0.0
        %1578 = vmatpush1.msra.mxu0 0.0
        %1579 = vmatprep.subr.mxu0 0.0
        %1580 = vmatpush1.msra.mxu0 0.0
        %1581 = vmatprep.subr.mxu0 0.0
        %1582 = vmatpush1.msra.mxu0 0.0
        %1583 = vmatprep.subr.mxu0 0.0
        %1584 = vmatpush1.msra.mxu0 0.0
        %1585 = vmatprep.subr.mxu0 0.0
        %1586 = vmatpush1.msra.mxu0 0.0
        %1587 = vmatprep.subr.mxu0 0.0
        %1588 = vmatpush1.msra.mxu0 0.0
        %1589 = vmatprep.subr.mxu0 0.0
        %1590 = vmatpush1.msra.mxu0 0.0
        %1591 = vmatprep.subr.mxu0 0.0
        %1592 = vmatpush1.msra.mxu0 0.0
        %1593 = vmatprep.subr.mxu0 0.0
        %1594 = vmatpush1.msra.mxu0 0.0
        %1595 = vmatprep.subr.mxu0 0.0
        %1596 = vmatpush1.msra.mxu0 0.0
        %1597 = vmatprep.subr.mxu0 0.0
        %1598 = vmatpush1.msra.mxu0 0.0
        %1599 = vmatprep.subr.mxu0 0.0
        %1600 = vmatpush1.msra.mxu0 0.0
        %1601 = vmatprep.subr.mxu0 0.0
        %1602 = vmatpush1.msra.mxu0 0.0
        %1603 = vmatprep.subr.mxu0 0.0
        %1604 = vmatpush1.msra.mxu0 0.0
        %1605 = vmatprep.subr.mxu0 0.0
        %1606 = vmatpush1.msra.mxu0 0.0
        %1607 = vmatprep.mubr.f32.mxu0 0.0
        %1608 = vmatmul.mubr.f32.gmra.mrb[0].mxu0 %v294
        %v1609 = vpop.f32.mrb[0].mxu0
        %v1610 = vadd.f32 %v882, %v1609
        %v1611 = vpop.f32.mrb[0].mxu0
        %v1612 = vadd.f32 %v886, %v1611
        %1613 = vdwg.mxu0
        %1614 = vmatprep.subr.mxu0 %v314
        %1615 = vmatpush1.msra.mxu0 %v313
        %1616 = vmatprep.subr.mxu0 %v346
        %1617 = vmatpush1.msra.mxu0 %v345
        %1618 = vmatprep.subr.mxu0 %v378
        %1619 = vmatpush1.msra.mxu0 %v377
        %1620 = vmatprep.subr.mxu0 %v410
        %1621 = vmatpush1.msra.mxu0 %v409
        %1622 = vmatprep.subr.mxu0 %v442
        %1623 = vmatpush1.msra.mxu0 %v441
        %1624 = vmatprep.subr.mxu0 %v474
        %1625 = vmatpush1.msra.mxu0 %v473
        %1626 = vmatprep.subr.mxu0 %v506
        %1627 = vmatpush1.msra.mxu0 %v505
        %1628 = vmatprep.subr.mxu0 %v538
        %1629 = vmatpush1.msra.mxu0 %v537
        %1630 = vmatprep.subr.mxu0 %v570
        %1631 = vmatpush1.msra.mxu0 %v569
        %1632 = vmatprep.subr.mxu0 %v602
        %1633 = vmatpush1.msra.mxu0 %v601
        %1634 = vmatprep.subr.mxu0 %v634
        %1635 = vmatpush1.msra.mxu0 %v633
        %1636 = vmatprep.subr.mxu0 %v666
        %1637 = vmatpush1.msra.mxu0 %v665
        %1638 = vmatprep.subr.mxu0 %v698
        %1639 = vmatpush1.msra.mxu0 %v697
        %1640 = vmatprep.subr.mxu0 %v730
        %1641 = vmatpush1.msra.mxu0 %v729
        %1642 = vmatprep.subr.mxu0 %v762
        %1643 = vmatpush1.msra.mxu0 %v761
        %1644 = vmatprep.subr.mxu0 %v794
        %1645 = vmatpush1.msra.mxu0 %v793
        %1646 = vmatprep.subr.mxu0 0.0
        %1647 = vmatpush1.msra.mxu0 0.0
        %1648 = vmatprep.subr.mxu0 0.0
        %1649 = vmatpush1.msra.mxu0 0.0
        %1650 = vmatprep.subr.mxu0 0.0
        %1651 = vmatpush1.msra.mxu0 0.0
        %1652 = vmatprep.subr.mxu0 0.0
        %1653 = vmatpush1.msra.mxu0 0.0
        %1654 = vmatprep.subr.mxu0 0.0
        %1655 = vmatpush1.msra.mxu0 0.0
        %1656 = vmatprep.subr.mxu0 0.0
        %1657 = vmatpush1.msra.mxu0 0.0
        %1658 = vmatprep.subr.mxu0 0.0
        %1659 = vmatpush1.msra.mxu0 0.0
        %1660 = vmatprep.subr.mxu0 0.0
        %1661 = vmatpush1.msra.mxu0 0.0
        %1662 = vmatprep.subr.mxu0 0.0
        %1663 = vmatpush1.msra.mxu0 0.0
        %1664 = vmatprep.subr.mxu0 0.0
        %1665 = vmatpush1.msra.mxu0 0.0
        %1666 = vmatprep.subr.mxu0 0.0
        %1667 = vmatpush1.msra.mxu0 0.0
        %1668 = vmatprep.subr.mxu0 0.0
        %1669 = vmatpush1.msra.mxu0 0.0
        %1670 = vmatprep.subr.mxu0 0.0
        %1671 = vmatpush1.msra.mxu0 0.0
        %1672 = vmatprep.subr.mxu0 0.0
        %1673 = vmatpush1.msra.mxu0 0.0
        %1674 = vmatprep.subr.mxu0 0.0
        %1675 = vmatpush1.msra.mxu0 0.0
        %1676 = vmatprep.subr.mxu0 0.0
        %1677 = vmatpush1.msra.mxu0 0.0
        %1678 = vmatprep.mubr.f32.mxu0 0.0
        %1679 = vmatmul.mubr.f32.gmra.mrb[0].mxu0 %v294
        %v1680 = vpop.f32.mrb[0].mxu0
        %v1681 = vadd.f32 %v890, %v1680
        %v1682 = vpop.f32.mrb[0].mxu0
        %v1683 = vadd.f32 %v894, %v1682
        %1684 = vdwg.mxu0
        %1685 = vmatprep.subr.mxu0 %v316
        %1686 = vmatpush1.msra.mxu0 %v315
        %1687 = vmatprep.subr.mxu0 %v348
        %1688 = vmatpush1.msra.mxu0 %v347
        %1689 = vmatprep.subr.mxu0 %v380
        %1690 = vmatpush1.msra.mxu0 %v379
        %1691 = vmatprep.subr.mxu0 %v412
        %1692 = vmatpush1.msra.mxu0 %v411
        %1693 = vmatprep.subr.mxu0 %v444
        %1694 = vmatpush1.msra.mxu0 %v443
        %1695 = vmatprep.subr.mxu0 %v476
        %1696 = vmatpush1.msra.mxu0 %v475
        %1697 = vmatprep.subr.mxu0 %v508
        %1698 = vmatpush1.msra.mxu0 %v507
        %1699 = vmatprep.subr.mxu0 %v540
        %1700 = vmatpush1.msra.mxu0 %v539
        %1701 = vmatprep.subr.mxu0 %v572
        %1702 = vmatpush1.msra.mxu0 %v571
        %1703 = vmatprep.subr.mxu0 %v604
        %1704 = vmatpush1.msra.mxu0 %v603
        %1705 = vmatprep.subr.mxu0 %v636
        %1706 = vmatpush1.msra.mxu0 %v635
        %1707 = vmatprep.subr.mxu0 %v668
        %1708 = vmatpush1.msra.mxu0 %v667
        %1709 = vmatprep.subr.mxu0 %v700
        %1710 = vmatpush1.msra.mxu0 %v699
        %1711 = vmatprep.subr.mxu0 %v732
        %1712 = vmatpush1.msra.mxu0 %v731
        %1713 = vmatprep.subr.mxu0 %v764
        %1714 = vmatpush1.msra.mxu0 %v763
        %1715 = vmatprep.subr.mxu0 %v796
        %1716 = vmatpush1.msra.mxu0 %v795
        %1717 = vmatprep.subr.mxu0 0.0
        %1718 = vmatpush1.msra.mxu0 0.0
        %1719 = vmatprep.subr.mxu0 0.0
        %1720 = vmatpush1.msra.mxu0 0.0
        %1721 = vmatprep.subr.mxu0 0.0
        %1722 = vmatpush1.msra.mxu0 0.0
        %1723 = vmatprep.subr.mxu0 0.0
        %1724 = vmatpush1.msra.mxu0 0.0
        %1725 = vmatprep.subr.mxu0 0.0
        %1726 = vmatpush1.msra.mxu0 0.0
        %1727 = vmatprep.subr.mxu0 0.0
        %1728 = vmatpush1.msra.mxu0 0.0
        %1729 = vmatprep.subr.mxu0 0.0
        %1730 = vmatpush1.msra.mxu0 0.0
        %1731 = vmatprep.subr.mxu0 0.0
        %1732 = vmatpush1.msra.mxu0 0.0
        %1733 = vmatprep.subr.mxu0 0.0
        %1734 = vmatpush1.msra.mxu0 0.0
        %1735 = vmatprep.subr.mxu0 0.0
        %1736 = vmatpush1.msra.mxu0 0.0
        %1737 = vmatprep.subr.mxu0 0.0
        %1738 = vmatpush1.msra.mxu0 0.0
        %1739 = vmatprep.subr.mxu0 0.0
        %1740 = vmatpush1.msra.mxu0 0.0
        %1741 = vmatprep.subr.mxu0 0.0
        %1742 = vmatpush1.msra.mxu0 0.0
        %1743 = vmatprep.subr.mxu0 0.0
        %1744 = vmatpush1.msra.mxu0 0.0
        %1745 = vmatprep.subr.mxu0 0.0
        %1746 = vmatpush1.msra.mxu0 0.0
        %1747 = vmatprep.subr.mxu0 0.0
        %1748 = vmatpush1.msra.mxu0 0.0
        %1749 = vmatprep.mubr.f32.mxu0 0.0
        %1750 = vmatmul.mubr.f32.gmra.mrb[0].mxu0 %v294
        %v1751 = vpop.f32.mrb[0].mxu0
        %v1752 = vadd.f32 %v898, %v1751
        %v1753 = vpop.f32.mrb[0].mxu0
        %v1754 = vadd.f32 %v902, %v1753
        %1755 = vdwg.mxu0
        %1756 = vmatprep.subr.mxu0 %v318
        %1757 = vmatpush1.msra.mxu0 %v317
        %1758 = vmatprep.subr.mxu0 %v350
        %1759 = vmatpush1.msra.mxu0 %v349
        %1760 = vmatprep.subr.mxu0 %v382
        %1761 = vmatpush1.msra.mxu0 %v381
        %1762 = vmatprep.subr.mxu0 %v414
        %1763 = vmatpush1.msra.mxu0 %v413
        %1764 = vmatprep.subr.mxu0 %v446
        %1765 = vmatpush1.msra.mxu0 %v445
        %1766 = vmatprep.subr.mxu0 %v478
        %1767 = vmatpush1.msra.mxu0 %v477
        %1768 = vmatprep.subr.mxu0 %v510
        %1769 = vmatpush1.msra.mxu0 %v509
        %1770 = vmatprep.subr.mxu0 %v542
        %1771 = vmatpush1.msra.mxu0 %v541
        %1772 = vmatprep.subr.mxu0 %v574
        %1773 = vmatpush1.msra.mxu0 %v573
        %1774 = vmatprep.subr.mxu0 %v606
        %1775 = vmatpush1.msra.mxu0 %v605
        %1776 = vmatprep.subr.mxu0 %v638
        %1777 = vmatpush1.msra.mxu0 %v637
        %1778 = vmatprep.subr.mxu0 %v670
        %1779 = vmatpush1.msra.mxu0 %v669
        %1780 = vmatprep.subr.mxu0 %v702
        %1781 = vmatpush1.msra.mxu0 %v701
        %1782 = vmatprep.subr.mxu0 %v734
        %1783 = vmatpush1.msra.mxu0 %v733
        %1784 = vmatprep.subr.mxu0 %v766
        %1785 = vmatpush1.msra.mxu0 %v765
        %1786 = vmatprep.subr.mxu0 %v798
        %1787 = vmatpush1.msra.mxu0 %v797
        %1788 = vmatprep.subr.mxu0 0.0
        %1789 = vmatpush1.msra.mxu0 0.0
        %1790 = vmatprep.subr.mxu0 0.0
        %1791 = vmatpush1.msra.mxu0 0.0
        %1792 = vmatprep.subr.mxu0 0.0
        %1793 = vmatpush1.msra.mxu0 0.0
        %1794 = vmatprep.subr.mxu0 0.0
        %1795 = vmatpush1.msra.mxu0 0.0
        %1796 = vmatprep.subr.mxu0 0.0
        %1797 = vmatpush1.msra.mxu0 0.0
        %1798 = vmatprep.subr.mxu0 0.0
        %1799 = vmatpush1.msra.mxu0 0.0
        %1800 = vmatprep.subr.mxu0 0.0
        %1801 = vmatpush1.msra.mxu0 0.0
        %1802 = vmatprep.subr.mxu0 0.0
        %1803 = vmatpush1.msra.mxu0 0.0
        %1804 = vmatprep.subr.mxu0 0.0
        %1805 = vmatpush1.msra.mxu0 0.0
        %1806 = vmatprep.subr.mxu0 0.0
        %1807 = vmatpush1.msra.mxu0 0.0
        %1808 = vmatprep.subr.mxu0 0.0
        %1809 = vmatpush1.msra.mxu0 0.0
        %1810 = vmatprep.subr.mxu0 0.0
        %1811 = vmatpush1.msra.mxu0 0.0
        %1812 = vmatprep.subr.mxu0 0.0
        %1813 = vmatpush1.msra.mxu0 0.0
        %1814 = vmatprep.subr.mxu0 0.0
        %1815 = vmatpush1.msra.mxu0 0.0
        %1816 = vmatprep.subr.mxu0 0.0
        %1817 = vmatpush1.msra.mxu0 0.0
        %1818 = vmatprep.subr.mxu0 0.0
        %1819 = vmatpush1.msra.mxu0 0.0
        %1820 = vmatprep.mubr.f32.mxu0 0.0
        %1821 = vmatmul.mubr.f32.gmra.mrb[0].mxu0 %v294
        %v1822 = vpop.f32.mrb[0].mxu0
        %v1823 = vadd.f32 %v906, %v1822
        %v1824 = vpop.f32.mrb[0].mxu0
        %v1825 = vadd.f32 %v910, %v1824
        %1826 = vdwg.mxu0
        %1827 = vmatprep.subr.mxu0 %v320
        %1828 = vmatpush1.msra.mxu0 %v319
        %1829 = vmatprep.subr.mxu0 %v352
        %1830 = vmatpush1.msra.mxu0 %v351
        %1831 = vmatprep.subr.mxu0 %v384
        %1832 = vmatpush1.msra.mxu0 %v383
        %1833 = vmatprep.subr.mxu0 %v416
        %1834 = vmatpush1.msra.mxu0 %v415
        %1835 = vmatprep.subr.mxu0 %v448
        %1836 = vmatpush1.msra.mxu0 %v447
        %1837 = vmatprep.subr.mxu0 %v480
        %1838 = vmatpush1.msra.mxu0 %v479
        %1839 = vmatprep.subr.mxu0 %v512
        %1840 = vmatpush1.msra.mxu0 %v511
        %1841 = vmatprep.subr.mxu0 %v544
        %1842 = vmatpush1.msra.mxu0 %v543
        %1843 = vmatprep.subr.mxu0 %v576
        %1844 = vmatpush1.msra.mxu0 %v575
        %1845 = vmatprep.subr.mxu0 %v608
        %1846 = vmatpush1.msra.mxu0 %v607
        %1847 = vmatprep.subr.mxu0 %v640
        %1848 = vmatpush1.msra.mxu0 %v639
        %1849 = vmatprep.subr.mxu0 %v672
        %1850 = vmatpush1.msra.mxu0 %v671
        %1851 = vmatprep.subr.mxu0 %v704
        %1852 = vmatpush1.msra.mxu0 %v703
        %1853 = vmatprep.subr.mxu0 %v736
        %1854 = vmatpush1.msra.mxu0 %v735
        %1855 = vmatprep.subr.mxu0 %v768
        %1856 = vmatpush1.msra.mxu0 %v767
        %1857 = vmatprep.subr.mxu0 %v800
        %1858 = vmatpush1.msra.mxu0 %v799
        %1859 = vmatprep.subr.mxu0 0.0
        %1860 = vmatpush1.msra.mxu0 0.0
        %1861 = vmatprep.subr.mxu0 0.0
        %1862 = vmatpush1.msra.mxu0 0.0
        %1863 = vmatprep.subr.mxu0 0.0
        %1864 = vmatpush1.msra.mxu0 0.0
        %1865 = vmatprep.subr.mxu0 0.0
        %1866 = vmatpush1.msra.mxu0 0.0
        %1867 = vmatprep.subr.mxu0 0.0
        %1868 = vmatpush1.msra.mxu0 0.0
        %1869 = vmatprep.subr.mxu0 0.0
        %1870 = vmatpush1.msra.mxu0 0.0
        %1871 = vmatprep.subr.mxu0 0.0
        %1872 = vmatpush1.msra.mxu0 0.0
        %1873 = vmatprep.subr.mxu0 0.0
        %1874 = vmatpush1.msra.mxu0 0.0
        %1875 = vmatprep.subr.mxu0 0.0
        %1876 = vmatpush1.msra.mxu0 0.0
        %1877 = vmatprep.subr.mxu0 0.0
        %1878 = vmatpush1.msra.mxu0 0.0
        %1879 = vmatprep.subr.mxu0 0.0
        %1880 = vmatpush1.msra.mxu0 0.0
        %1881 = vmatprep.subr.mxu0 0.0
        %1882 = vmatpush1.msra.mxu0 0.0
        %1883 = vmatprep.subr.mxu0 0.0
        %1884 = vmatpush1.msra.mxu0 0.0
        %1885 = vmatprep.subr.mxu0 0.0
        %1886 = vmatpush1.msra.mxu0 0.0
        %1887 = vmatprep.subr.mxu0 0.0
        %1888 = vmatpush1.msra.mxu0 0.0
        %1889 = vmatprep.subr.mxu0 0.0
        %1890 = vmatpush1.msra.mxu0 0.0
        %1891 = vmatprep.mubr.f32.mxu0 0.0
        %1892 = vmatmul.mubr.f32.gmra.mrb[0].mxu0 %v294
        %v1893 = vpop.f32.mrb[0].mxu0
        %v1894 = vadd.f32 %v914, %v1893
        %v1895 = vpop.f32.mrb[0].mxu0
        %v1896 = vadd.f32 %v918, %v1895
        %1897 = vdwg.mxu0
        %1898 = vmatprep.subr.mxu0 %v322
        %1899 = vmatpush1.msra.mxu0 %v321
        %1900 = vmatprep.subr.mxu0 %v354
        %1901 = vmatpush1.msra.mxu0 %v353
        %1902 = vmatprep.subr.mxu0 %v386
        %1903 = vmatpush1.msra.mxu0 %v385
        %1904 = vmatprep.subr.mxu0 %v418
        %1905 = vmatpush1.msra.mxu0 %v417
        %1906 = vmatprep.subr.mxu0 %v450
        %1907 = vmatpush1.msra.mxu0 %v449
        %1908 = vmatprep.subr.mxu0 %v482
        %1909 = vmatpush1.msra.mxu0 %v481
        %1910 = vmatprep.subr.mxu0 %v514
        %1911 = vmatpush1.msra.mxu0 %v513
        %1912 = vmatprep.subr.mxu0 %v546
        %1913 = vmatpush1.msra.mxu0 %v545
        %1914 = vmatprep.subr.mxu0 %v578
        %1915 = vmatpush1.msra.mxu0 %v577
        %1916 = vmatprep.subr.mxu0 %v610
        %1917 = vmatpush1.msra.mxu0 %v609
        %1918 = vmatprep.subr.mxu0 %v642
        %1919 = vmatpush1.msra.mxu0 %v641
        %1920 = vmatprep.subr.mxu0 %v674
        %1921 = vmatpush1.msra.mxu0 %v673
        %1922 = vmatprep.subr.mxu0 %v706
        %1923 = vmatpush1.msra.mxu0 %v705
        %1924 = vmatprep.subr.mxu0 %v738
        %1925 = vmatpush1.msra.mxu0 %v737
        %1926 = vmatprep.subr.mxu0 %v770
        %1927 = vmatpush1.msra.mxu0 %v769
        %1928 = vmatprep.subr.mxu0 %v802
        %1929 = vmatpush1.msra.mxu0 %v801
        %1930 = vmatprep.subr.mxu0 0.0
        %1931 = vmatpush1.msra.mxu0 0.0
        %1932 = vmatprep.subr.mxu0 0.0
        %1933 = vmatpush1.msra.mxu0 0.0
        %1934 = vmatprep.subr.mxu0 0.0
        %1935 = vmatpush1.msra.mxu0 0.0
        %1936 = vmatprep.subr.mxu0 0.0
        %1937 = vmatpush1.msra.mxu0 0.0
        %1938 = vmatprep.subr.mxu0 0.0
        %1939 = vmatpush1.msra.mxu0 0.0
        %1940 = vmatprep.subr.mxu0 0.0
        %1941 = vmatpush1.msra.mxu0 0.0
        %1942 = vmatprep.subr.mxu0 0.0
        %1943 = vmatpush1.msra.mxu0 0.0
        %1944 = vmatprep.subr.mxu0 0.0
        %1945 = vmatpush1.msra.mxu0 0.0
        %1946 = vmatprep.subr.mxu0 0.0
        %1947 = vmatpush1.msra.mxu0 0.0
        %1948 = vmatprep.subr.mxu0 0.0
        %1949 = vmatpush1.msra.mxu0 0.0
        %1950 = vmatprep.subr.mxu0 0.0
        %1951 = vmatpush1.msra.mxu0 0.0
        %1952 = vmatprep.subr.mxu0 0.0
        %1953 = vmatpush1.msra.mxu0 0.0
        %1954 = vmatprep.subr.mxu0 0.0
        %1955 = vmatpush1.msra.mxu0 0.0
        %1956 = vmatprep.subr.mxu0 0.0
        %1957 = vmatpush1.msra.mxu0 0.0
        %1958 = vmatprep.subr.mxu0 0.0
        %1959 = vmatpush1.msra.mxu0 0.0
        %1960 = vmatprep.subr.mxu0 0.0
        %1961 = vmatpush1.msra.mxu0 0.0
        %1962 = vmatprep.mubr.f32.mxu0 0.0
        %1963 = vmatmul.mubr.f32.gmra.mrb[0].mxu0 %v294
        %v1964 = vpop.f32.mrb[0].mxu0
        %v1965 = vadd.f32 %v922, %v1964
        %v1966 = vpop.f32.mrb[0].mxu0
        %v1967 = vadd.f32 %v926, %v1966
        %1968 = vdwg.mxu0
        %1969 = vmatprep.subr.mxu0 %v324
        %1970 = vmatpush1.msra.mxu0 %v323
        %1971 = vmatprep.subr.mxu0 %v356
        %1972 = vmatpush1.msra.mxu0 %v355
        %1973 = vmatprep.subr.mxu0 %v388
        %1974 = vmatpush1.msra.mxu0 %v387
        %1975 = vmatprep.subr.mxu0 %v420
        %1976 = vmatpush1.msra.mxu0 %v419
        %1977 = vmatprep.subr.mxu0 %v452
        %1978 = vmatpush1.msra.mxu0 %v451
        %1979 = vmatprep.subr.mxu0 %v484
        %1980 = vmatpush1.msra.mxu0 %v483
        %1981 = vmatprep.subr.mxu0 %v516
        %1982 = vmatpush1.msra.mxu0 %v515
        %1983 = vmatprep.subr.mxu0 %v548
        %1984 = vmatpush1.msra.mxu0 %v547
        %1985 = vmatprep.subr.mxu0 %v580
        %1986 = vmatpush1.msra.mxu0 %v579
        %1987 = vmatprep.subr.mxu0 %v612
        %1988 = vmatpush1.msra.mxu0 %v611
        %1989 = vmatprep.subr.mxu0 %v644
        %1990 = vmatpush1.msra.mxu0 %v643
        %1991 = vmatprep.subr.mxu0 %v676
        %1992 = vmatpush1.msra.mxu0 %v675
        %1993 = vmatprep.subr.mxu0 %v708
        %1994 = vmatpush1.msra.mxu0 %v707
        %1995 = vmatprep.subr.mxu0 %v740
        %1996 = vmatpush1.msra.mxu0 %v739
        %1997 = vmatprep.subr.mxu0 %v772
        %1998 = vmatpush1.msra.mxu0 %v771
        %1999 = vmatprep.subr.mxu0 %v804
        %2000 = vmatpush1.msra.mxu0 %v803
        %2001 = vmatprep.subr.mxu0 0.0
        %2002 = vmatpush1.msra.mxu0 0.0
        %2003 = vmatprep.subr.mxu0 0.0
        %2004 = vmatpush1.msra.mxu0 0.0
        %2005 = vmatprep.subr.mxu0 0.0
        %2006 = vmatpush1.msra.mxu0 0.0
        %2007 = vmatprep.subr.mxu0 0.0
        %2008 = vmatpush1.msra.mxu0 0.0
        %2009 = vmatprep.subr.mxu0 0.0
        %2010 = vmatpush1.msra.mxu0 0.0
        %2011 = vmatprep.subr.mxu0 0.0
        %2012 = vmatpush1.msra.mxu0 0.0
        %2013 = vmatprep.subr.mxu0 0.0
        %2014 = vmatpush1.msra.mxu0 0.0
        %2015 = vmatprep.subr.mxu0 0.0
        %2016 = vmatpush1.msra.mxu0 0.0
        %2017 = vmatprep.subr.mxu0 0.0
        %2018 = vmatpush1.msra.mxu0 0.0
        %2019 = vmatprep.subr.mxu0 0.0
        %2020 = vmatpush1.msra.mxu0 0.0
        %2021 = vmatprep.subr.mxu0 0.0
        %2022 = vmatpush1.msra.mxu0 0.0
        %2023 = vmatprep.subr.mxu0 0.0
        %2024 = vmatpush1.msra.mxu0 0.0
        %2025 = vmatprep.subr.mxu0 0.0
        %2026 = vmatpush1.msra.mxu0 0.0
        %2027 = vmatprep.subr.mxu0 0.0
        %2028 = vmatpush1.msra.mxu0 0.0
        %2029 = vmatprep.subr.mxu0 0.0
        %2030 = vmatpush1.msra.mxu0 0.0
        %2031 = vmatprep.subr.mxu0 0.0
        %2032 = vmatpush1.msra.mxu0 0.0
        %2033 = vmatprep.mubr.f32.mxu0 0.0
        %2034 = vmatmul.mubr.f32.gmra.mrb[0].mxu0 %v294
        %v2035 = vpop.f32.mrb[0].mxu0
        %v2036 = vadd.f32 %v930, %v2035
        %v2037 = vpop.f32.mrb[0].mxu0
        %v2038 = vadd.f32 %v934, %v2037
        %2039 = vdwg.mxu0
        %2040 = vmatprep.subr.mxu0 %v326
        %2041 = vmatpush1.msra.mxu0 %v325
        %2042 = vmatprep.subr.mxu0 %v358
        %2043 = vmatpush1.msra.mxu0 %v357
        %2044 = vmatprep.subr.mxu0 %v390
        %2045 = vmatpush1.msra.mxu0 %v389
        %2046 = vmatprep.subr.mxu0 %v422
        %2047 = vmatpush1.msra.mxu0 %v421
        %2048 = vmatprep.subr.mxu0 %v454
        %2049 = vmatpush1.msra.mxu0 %v453
        %2050 = vmatprep.subr.mxu0 %v486
        %2051 = vmatpush1.msra.mxu0 %v485
        %2052 = vmatprep.subr.mxu0 %v518
        %2053 = vmatpush1.msra.mxu0 %v517
        %2054 = vmatprep.subr.mxu0 %v550
        %2055 = vmatpush1.msra.mxu0 %v549
        %2056 = vmatprep.subr.mxu0 %v582
        %2057 = vmatpush1.msra.mxu0 %v581
        %2058 = vmatprep.subr.mxu0 %v614
        %2059 = vmatpush1.msra.mxu0 %v613
        %2060 = vmatprep.subr.mxu0 %v646
        %2061 = vmatpush1.msra.mxu0 %v645
        %2062 = vmatprep.subr.mxu0 %v678
        %2063 = vmatpush1.msra.mxu0 %v677
        %2064 = vmatprep.subr.mxu0 %v710
        %2065 = vmatpush1.msra.mxu0 %v709
        %2066 = vmatprep.subr.mxu0 %v742
        %2067 = vmatpush1.msra.mxu0 %v741
        %2068 = vmatprep.subr.mxu0 %v774
        %2069 = vmatpush1.msra.mxu0 %v773
        %2070 = vmatprep.subr.mxu0 %v806
        %2071 = vmatpush1.msra.mxu0 %v805
        %2072 = vmatprep.subr.mxu0 0.0
        %2073 = vmatpush1.msra.mxu0 0.0
        %2074 = vmatprep.subr.mxu0 0.0
        %2075 = vmatpush1.msra.mxu0 0.0
        %2076 = vmatprep.subr.mxu0 0.0
        %2077 = vmatpush1.msra.mxu0 0.0
        %2078 = vmatprep.subr.mxu0 0.0
        %2079 = vmatpush1.msra.mxu0 0.0
        %2080 = vmatprep.subr.mxu0 0.0
        %2081 = vmatpush1.msra.mxu0 0.0
        %2082 = vmatprep.subr.mxu0 0.0
        %2083 = vmatpush1.msra.mxu0 0.0
        %2084 = vmatprep.subr.mxu0 0.0
        %2085 = vmatpush1.msra.mxu0 0.0
        %2086 = vmatprep.subr.mxu0 0.0
        %2087 = vmatpush1.msra.mxu0 0.0
        %2088 = vmatprep.subr.mxu0 0.0
        %2089 = vmatpush1.msra.mxu0 0.0
        %2090 = vmatprep.subr.mxu0 0.0
        %2091 = vmatpush1.msra.mxu0 0.0
        %2092 = vmatprep.subr.mxu0 0.0
        %2093 = vmatpush1.msra.mxu0 0.0
        %2094 = vmatprep.subr.mxu0 0.0
        %2095 = vmatpush1.msra.mxu0 0.0
        %2096 = vmatprep.subr.mxu0 0.0
        %2097 = vmatpush1.msra.mxu0 0.0
        %2098 = vmatprep.subr.mxu0 0.0
        %2099 = vmatpush1.msra.mxu0 0.0
        %2100 = vmatprep.subr.mxu0 0.0
        %2101 = vmatpush1.msra.mxu0 0.0
        %2102 = vmatprep.subr.mxu0 0.0
        %2103 = vmatpush1.msra.mxu0 0.0
        %2104 = vmatprep.mubr.f32.mxu0 0.0
        %2105 = vmatmul.mubr.f32.gmra.mrb[0].mxu0 %v294
        %v2106 = vpop.f32.mrb[0].mxu0
        %v2107 = vadd.f32 %v938, %v2106
        %v2108 = vpop.f32.mrb[0].mxu0
        %v2109 = vadd.f32 %v942, %v2108
        %2110 = vdwg.mxu0
        %v2111 = vmax.f32 %v1042, 0.0
        %v2112 = vmax.f32 %v1044, 0.0
        %v2113 = vmax.f32 %v1113, 0.0
        %v2114 = vmax.f32 %v1115, 0.0
        %v2115 = vmax.f32 %v1184, 0.0
        %v2116 = vmax.f32 %v1186, 0.0
        %v2117 = vmax.f32 %v1255, 0.0
        %v2118 = vmax.f32 %v1257, 0.0
        %v2119 = vmax.f32 %v1326, 0.0
        %v2120 = vmax.f32 %v1328, 0.0
        %v2121 = vmax.f32 %v1397, 0.0
        %v2122 = vmax.f32 %v1399, 0.0
        %v2123 = vmax.f32 %v1468, 0.0
        %v2124 = vmax.f32 %v1470, 0.0
        %v2125 = vmax.f32 %v1539, 0.0
        %v2126 = vmax.f32 %v1541, 0.0
        %v2127 = vmax.f32 %v1610, 0.0
        %v2128 = vmax.f32 %v1612, 0.0
        %v2129 = vmax.f32 %v1681, 0.0
        %v2130 = vmax.f32 %v1683, 0.0
        %v2131 = vmax.f32 %v1752, 0.0
        %v2132 = vmax.f32 %v1754, 0.0
        %v2133 = vmax.f32 %v1823, 0.0
        %v2134 = vmax.f32 %v1825, 0.0
        %v2135 = vmax.f32 %v1894, 0.0
        %v2136 = vmax.f32 %v1896, 0.0
        %v2137 = vmax.f32 %v1965, 0.0
        %v2138 = vmax.f32 %v1967, 0.0
        %v2139 = vmax.f32 %v2036, 0.0
        %v2140 = vmax.f32 %v2038, 0.0
        %v2141 = vmax.f32 %v2107, 0.0
        %v2142 = vmax.f32 %v2109, 0.0
        %v2143 = vld [vmem:[#allocation8] sm:$0xff]
        %v2144 = vld [vmem:[#allocation8 + $0x8] sm:$0xff]
        %v2145 = vld [vmem:[#allocation8 + $0x10] sm:$0xff]
        %v2146 = vld [vmem:[#allocation8 + $0x18] sm:$0xff]
        %v2147 = vld [vmem:[#allocation8 + $0x20] sm:$0xff]
        %v2148 = vld [vmem:[#allocation8 + $0x28] sm:$0xff]
        %v2149 = vld [vmem:[#allocation8 + $0x30] sm:$0xff]
        %v2150 = vld [vmem:[#allocation8 + $0x38] sm:$0xff]
        %v2151 = vld [vmem:[#allocation8 + $0x40] sm:$0xff]
        %v2152 = vld [vmem:[#allocation8 + $0x48] sm:$0xff]
        %v2153 = vld [vmem:[#allocation8 + $0x50] sm:$0xff]
        %v2154 = vld [vmem:[#allocation8 + $0x58] sm:$0xff]
        %v2155 = vld [vmem:[#allocation8 + $0x60] sm:$0xff]
        %v2156 = vld [vmem:[#allocation8 + $0x68] sm:$0xff]
        %v2157 = vld [vmem:[#allocation8 + $0x70] sm:$0xff]
        %v2158 = vld [vmem:[#allocation8 + $0x78] sm:$0xff]
        %v2159 = vld [vmem:[#allocation8 + $0x80] sm:$0xff]
        %v2160 = vld [vmem:[#allocation8 + $0x88] sm:$0xff]
        %v2161 = vld [vmem:[#allocation8 + $0x90] sm:$0xff]
        %v2162 = vld [vmem:[#allocation8 + $0x98] sm:$0xff]
        %v2163 = vld [vmem:[#allocation8 + $0xa0] sm:$0xff]
        %v2164 = vld [vmem:[#allocation8 + $0xa8] sm:$0xff]
        %v2165 = vld [vmem:[#allocation8 + $0xb0] sm:$0xff]
        %v2166 = vld [vmem:[#allocation8 + $0xb8] sm:$0xff]
        %v2167 = vld [vmem:[#allocation8 + $0xc0] sm:$0xff]
        %v2168 = vld [vmem:[#allocation8 + $0xc8] sm:$0xff]
        %v2169 = vld [vmem:[#allocation8 + $0xd0] sm:$0xff]
        %v2170 = vld [vmem:[#allocation8 + $0xd8] sm:$0xff]
        %v2171 = vld [vmem:[#allocation8 + $0xe0] sm:$0xff]
        %v2172 = vld [vmem:[#allocation8 + $0xe8] sm:$0xff]
        %v2173 = vld [vmem:[#allocation8 + $0xf0] sm:$0xff]
        %v2174 = vld [vmem:[#allocation8 + $0xf8] sm:$0xff]
        %v2175 = vld [vmem:[#allocation8 + $0x100] sm:$0xff]
        %v2176 = vld [vmem:[#allocation8 + $0x108] sm:$0xff]
        %v2177 = vld [vmem:[#allocation8 + $0x110] sm:$0xff]
        %v2178 = vld [vmem:[#allocation8 + $0x118] sm:$0xff]
        %v2179 = vld [vmem:[#allocation8 + $0x120] sm:$0xff]
        %v2180 = vld [vmem:[#allocation8 + $0x128] sm:$0xff]
        %v2181 = vld [vmem:[#allocation8 + $0x130] sm:$0xff]
        %v2182 = vld [vmem:[#allocation8 + $0x138] sm:$0xff]
        %v2183 = vld [vmem:[#allocation8 + $0x140] sm:$0xff]
        %v2184 = vld [vmem:[#allocation8 + $0x148] sm:$0xff]
        %v2185 = vld [vmem:[#allocation8 + $0x150] sm:$0xff]
        %v2186 = vld [vmem:[#allocation8 + $0x158] sm:$0xff]
        %v2187 = vld [vmem:[#allocation8 + $0x160] sm:$0xff]
        %v2188 = vld [vmem:[#allocation8 + $0x168] sm:$0xff]
        %v2189 = vld [vmem:[#allocation8 + $0x170] sm:$0xff]
        %v2190 = vld [vmem:[#allocation8 + $0x178] sm:$0xff]
        %v2191 = vld [vmem:[#allocation8 + $0x180] sm:$0xff]
        %v2192 = vld [vmem:[#allocation8 + $0x188] sm:$0xff]
        %v2193 = vld [vmem:[#allocation8 + $0x190] sm:$0xff]
        %v2194 = vld [vmem:[#allocation8 + $0x198] sm:$0xff]
        %v2195 = vld [vmem:[#allocation8 + $0x1a0] sm:$0xff]
        %v2196 = vld [vmem:[#allocation8 + $0x1a8] sm:$0xff]
        %v2197 = vld [vmem:[#allocation8 + $0x1b0] sm:$0xff]
        %v2198 = vld [vmem:[#allocation8 + $0x1b8] sm:$0xff]
        %v2199 = vld [vmem:[#allocation8 + $0x1c0] sm:$0xff]
        %v2200 = vld [vmem:[#allocation8 + $0x1c8] sm:$0xff]
        %v2201 = vld [vmem:[#allocation8 + $0x1d0] sm:$0xff]
        %v2202 = vld [vmem:[#allocation8 + $0x1d8] sm:$0xff]
        %v2203 = vld [vmem:[#allocation8 + $0x1e0] sm:$0xff]
        %v2204 = vld [vmem:[#allocation8 + $0x1e8] sm:$0xff]
        %v2205 = vld [vmem:[#allocation8 + $0x1f0] sm:$0xff]
        %v2206 = vld [vmem:[#allocation8 + $0x1f8] sm:$0xff]
        %v2207 = vld [vmem:[#allocation8 + $0x200] sm:$0xff]
        %v2208 = vld [vmem:[#allocation8 + $0x208] sm:$0xff]
        %v2209 = vld [vmem:[#allocation8 + $0x210] sm:$0xff]
        %v2210 = vld [vmem:[#allocation8 + $0x218] sm:$0xff]
        %v2211 = vld [vmem:[#allocation8 + $0x220] sm:$0xff]
        %v2212 = vld [vmem:[#allocation8 + $0x228] sm:$0xff]
        %v2213 = vld [vmem:[#allocation8 + $0x230] sm:$0xff]
        %v2214 = vld [vmem:[#allocation8 + $0x238] sm:$0xff]
        %v2215 = vld [vmem:[#allocation8 + $0x240] sm:$0xff]
        %v2216 = vld [vmem:[#allocation8 + $0x248] sm:$0xff]
        %v2217 = vld [vmem:[#allocation8 + $0x250] sm:$0xff]
        %v2218 = vld [vmem:[#allocation8 + $0x258] sm:$0xff]
        %v2219 = vld [vmem:[#allocation8 + $0x260] sm:$0xff]
        %v2220 = vld [vmem:[#allocation8 + $0x268] sm:$0xff]
        %v2221 = vld [vmem:[#allocation8 + $0x270] sm:$0xff]
        %v2222 = vld [vmem:[#allocation8 + $0x278] sm:$0xff]
        %v2223 = vld [vmem:[#allocation8 + $0x280] sm:$0xff]
        %v2224 = vld [vmem:[#allocation8 + $0x288] sm:$0xff]
        %v2225 = vld [vmem:[#allocation8 + $0x290] sm:$0xff]
        %v2226 = vld [vmem:[#allocation8 + $0x298] sm:$0xff]
        %v2227 = vld [vmem:[#allocation8 + $0x2a0] sm:$0xff]
        %v2228 = vld [vmem:[#allocation8 + $0x2a8] sm:$0xff]
        %v2229 = vld [vmem:[#allocation8 + $0x2b0] sm:$0xff]
        %v2230 = vld [vmem:[#allocation8 + $0x2b8] sm:$0xff]
        %v2231 = vld [vmem:[#allocation8 + $0x2c0] sm:$0xff]
        %v2232 = vld [vmem:[#allocation8 + $0x2c8] sm:$0xff]
        %v2233 = vld [vmem:[#allocation8 + $0x2d0] sm:$0xff]
        %v2234 = vld [vmem:[#allocation8 + $0x2d8] sm:$0xff]
        %v2235 = vld [vmem:[#allocation8 + $0x2e0] sm:$0xff]
        %v2236 = vld [vmem:[#allocation8 + $0x2e8] sm:$0xff]
        %v2237 = vld [vmem:[#allocation8 + $0x2f0] sm:$0xff]
        %v2238 = vld [vmem:[#allocation8 + $0x2f8] sm:$0xff]
        %v2239 = vld [vmem:[#allocation8 + $0x300] sm:$0xff]
        %v2240 = vld [vmem:[#allocation8 + $0x308] sm:$0xff]
        %v2241 = vld [vmem:[#allocation8 + $0x310] sm:$0xff]
        %v2242 = vld [vmem:[#allocation8 + $0x318] sm:$0xff]
        %v2243 = vld [vmem:[#allocation8 + $0x320] sm:$0xff]
        %v2244 = vld [vmem:[#allocation8 + $0x328] sm:$0xff]
        %v2245 = vld [vmem:[#allocation8 + $0x330] sm:$0xff]
        %v2246 = vld [vmem:[#allocation8 + $0x338] sm:$0xff]
        %v2247 = vld [vmem:[#allocation8 + $0x340] sm:$0xff]
        %v2248 = vld [vmem:[#allocation8 + $0x348] sm:$0xff]
        %v2249 = vld [vmem:[#allocation8 + $0x350] sm:$0xff]
        %v2250 = vld [vmem:[#allocation8 + $0x358] sm:$0xff]
        %v2251 = vld [vmem:[#allocation8 + $0x360] sm:$0xff]
        %v2252 = vld [vmem:[#allocation8 + $0x368] sm:$0xff]
        %v2253 = vld [vmem:[#allocation8 + $0x370] sm:$0xff]
        %v2254 = vld [vmem:[#allocation8 + $0x378] sm:$0xff]
        %v2255 = vld [vmem:[#allocation8 + $0x380] sm:$0xff]
        %v2256 = vld [vmem:[#allocation8 + $0x388] sm:$0xff]
        %v2257 = vld [vmem:[#allocation8 + $0x390] sm:$0xff]
        %v2258 = vld [vmem:[#allocation8 + $0x398] sm:$0xff]
        %v2259 = vld [vmem:[#allocation8 + $0x3a0] sm:$0xff]
        %v2260 = vld [vmem:[#allocation8 + $0x3a8] sm:$0xff]
        %v2261 = vld [vmem:[#allocation8 + $0x3b0] sm:$0xff]
        %v2262 = vld [vmem:[#allocation8 + $0x3b8] sm:$0xff]
        %v2263 = vld [vmem:[#allocation8 + $0x3c0] sm:$0xff]
        %v2264 = vld [vmem:[#allocation8 + $0x3c8] sm:$0xff]
        %v2265 = vld [vmem:[#allocation8 + $0x3d0] sm:$0xff]
        %v2266 = vld [vmem:[#allocation8 + $0x3d8] sm:$0xff]
        %v2267 = vld [vmem:[#allocation8 + $0x3e0] sm:$0xff]
        %v2268 = vld [vmem:[#allocation8 + $0x3e8] sm:$0xff]
        %v2269 = vld [vmem:[#allocation8 + $0x3f0] sm:$0xff]
        %v2270 = vld [vmem:[#allocation8 + $0x3f8] sm:$0xff]
        %v2271 = vld [vmem:[#allocation8 + $0x400] sm:$0xff]
        %v2272 = vld [vmem:[#allocation8 + $0x408] sm:$0xff]
        %v2273 = vld [vmem:[#allocation8 + $0x410] sm:$0xff]
        %v2274 = vld [vmem:[#allocation8 + $0x418] sm:$0xff]
        %v2275 = vld [vmem:[#allocation8 + $0x420] sm:$0xff]
        %v2276 = vld [vmem:[#allocation8 + $0x428] sm:$0xff]
        %v2277 = vld [vmem:[#allocation8 + $0x430] sm:$0xff]
        %v2278 = vld [vmem:[#allocation8 + $0x438] sm:$0xff]
        %v2279 = vld [vmem:[#allocation8 + $0x440] sm:$0xff]
        %v2280 = vld [vmem:[#allocation8 + $0x448] sm:$0xff]
        %v2281 = vld [vmem:[#allocation8 + $0x450] sm:$0xff]
        %v2282 = vld [vmem:[#allocation8 + $0x458] sm:$0xff]
        %v2283 = vld [vmem:[#allocation8 + $0x460] sm:$0xff]
        %v2284 = vld [vmem:[#allocation8 + $0x468] sm:$0xff]
        %v2285 = vld [vmem:[#allocation8 + $0x470] sm:$0xff]
        %v2286 = vld [vmem:[#allocation8 + $0x478] sm:$0xff]
        %v2287 = vld [vmem:[#allocation8 + $0x480] sm:$0xff]
        %v2288 = vld [vmem:[#allocation8 + $0x488] sm:$0xff]
        %v2289 = vld [vmem:[#allocation8 + $0x490] sm:$0xff]
        %v2290 = vld [vmem:[#allocation8 + $0x498] sm:$0xff]
        %v2291 = vld [vmem:[#allocation8 + $0x4a0] sm:$0xff]
        %v2292 = vld [vmem:[#allocation8 + $0x4a8] sm:$0xff]
        %v2293 = vld [vmem:[#allocation8 + $0x4b0] sm:$0xff]
        %v2294 = vld [vmem:[#allocation8 + $0x4b8] sm:$0xff]
        %v2295 = vld [vmem:[#allocation8 + $0x4c0] sm:$0xff]
        %v2296 = vld [vmem:[#allocation8 + $0x4c8] sm:$0xff]
        %v2297 = vld [vmem:[#allocation8 + $0x4d0] sm:$0xff]
        %v2298 = vld [vmem:[#allocation8 + $0x4d8] sm:$0xff]
        %v2299 = vld [vmem:[#allocation8 + $0x4e0] sm:$0xff]
        %v2300 = vld [vmem:[#allocation8 + $0x4e8] sm:$0xff]
        %v2301 = vld [vmem:[#allocation8 + $0x4f0] sm:$0xff]
        %v2302 = vld [vmem:[#allocation8 + $0x4f8] sm:$0xff]
        %v2303 = vld [vmem:[#allocation8 + $0x500] sm:$0xff]
        %v2304 = vld [vmem:[#allocation8 + $0x508] sm:$0xff]
        %v2305 = vld [vmem:[#allocation8 + $0x510] sm:$0xff]
        %v2306 = vld [vmem:[#allocation8 + $0x518] sm:$0xff]
        %v2307 = vld [vmem:[#allocation8 + $0x520] sm:$0xff]
        %v2308 = vld [vmem:[#allocation8 + $0x528] sm:$0xff]
        %v2309 = vld [vmem:[#allocation8 + $0x530] sm:$0xff]
        %v2310 = vld [vmem:[#allocation8 + $0x538] sm:$0xff]
        %v2311 = vld [vmem:[#allocation8 + $0x540] sm:$0xff]
        %v2312 = vld [vmem:[#allocation8 + $0x548] sm:$0xff]
        %v2313 = vld [vmem:[#allocation8 + $0x550] sm:$0xff]
        %v2314 = vld [vmem:[#allocation8 + $0x558] sm:$0xff]
        %v2315 = vld [vmem:[#allocation8 + $0x560] sm:$0xff]
        %v2316 = vld [vmem:[#allocation8 + $0x568] sm:$0xff]
        %v2317 = vld [vmem:[#allocation8 + $0x570] sm:$0xff]
        %v2318 = vld [vmem:[#allocation8 + $0x578] sm:$0xff]
        %v2319 = vld [vmem:[#allocation8 + $0x580] sm:$0xff]
        %v2320 = vld [vmem:[#allocation8 + $0x588] sm:$0xff]
        %v2321 = vld [vmem:[#allocation8 + $0x590] sm:$0xff]
        %v2322 = vld [vmem:[#allocation8 + $0x598] sm:$0xff]
        %v2323 = vld [vmem:[#allocation8 + $0x5a0] sm:$0xff]
        %v2324 = vld [vmem:[#allocation8 + $0x5a8] sm:$0xff]
        %v2325 = vld [vmem:[#allocation8 + $0x5b0] sm:$0xff]
        %v2326 = vld [vmem:[#allocation8 + $0x5b8] sm:$0xff]
        %v2327 = vld [vmem:[#allocation8 + $0x5c0] sm:$0xff]
        %v2328 = vld [vmem:[#allocation8 + $0x5c8] sm:$0xff]
        %v2329 = vld [vmem:[#allocation8 + $0x5d0] sm:$0xff]
        %v2330 = vld [vmem:[#allocation8 + $0x5d8] sm:$0xff]
        %v2331 = vld [vmem:[#allocation8 + $0x5e0] sm:$0xff]
        %v2332 = vld [vmem:[#allocation8 + $0x5e8] sm:$0xff]
        %v2333 = vld [vmem:[#allocation8 + $0x5f0] sm:$0xff]
        %v2334 = vld [vmem:[#allocation8 + $0x5f8] sm:$0xff]
        %v2335 = vld [vmem:[#allocation8 + $0x600] sm:$0xff]
        %v2336 = vld [vmem:[#allocation8 + $0x608] sm:$0xff]
        %v2337 = vld [vmem:[#allocation8 + $0x610] sm:$0xff]
        %v2338 = vld [vmem:[#allocation8 + $0x618] sm:$0xff]
        %v2339 = vld [vmem:[#allocation8 + $0x620] sm:$0xff]
        %v2340 = vld [vmem:[#allocation8 + $0x628] sm:$0xff]
        %v2341 = vld [vmem:[#allocation8 + $0x630] sm:$0xff]
        %v2342 = vld [vmem:[#allocation8 + $0x638] sm:$0xff]
        %v2343 = vld [vmem:[#allocation8 + $0x640] sm:$0xff]
        %v2344 = vld [vmem:[#allocation8 + $0x648] sm:$0xff]
        %v2345 = vld [vmem:[#allocation8 + $0x650] sm:$0xff]
        %v2346 = vld [vmem:[#allocation8 + $0x658] sm:$0xff]
        %v2347 = vld [vmem:[#allocation8 + $0x660] sm:$0xff]
        %v2348 = vld [vmem:[#allocation8 + $0x668] sm:$0xff]
        %v2349 = vld [vmem:[#allocation8 + $0x670] sm:$0xff]
        %v2350 = vld [vmem:[#allocation8 + $0x678] sm:$0xff]
        %v2351 = vld [vmem:[#allocation8 + $0x680] sm:$0xff]
        %v2352 = vld [vmem:[#allocation8 + $0x688] sm:$0xff]
        %v2353 = vld [vmem:[#allocation8 + $0x690] sm:$0xff]
        %v2354 = vld [vmem:[#allocation8 + $0x698] sm:$0xff]
        %v2355 = vld [vmem:[#allocation8 + $0x6a0] sm:$0xff]
        %v2356 = vld [vmem:[#allocation8 + $0x6a8] sm:$0xff]
        %v2357 = vld [vmem:[#allocation8 + $0x6b0] sm:$0xff]
        %v2358 = vld [vmem:[#allocation8 + $0x6b8] sm:$0xff]
        %v2359 = vld [vmem:[#allocation8 + $0x6c0] sm:$0xff]
        %v2360 = vld [vmem:[#allocation8 + $0x6c8] sm:$0xff]
        %v2361 = vld [vmem:[#allocation8 + $0x6d0] sm:$0xff]
        %v2362 = vld [vmem:[#allocation8 + $0x6d8] sm:$0xff]
        %v2363 = vld [vmem:[#allocation8 + $0x6e0] sm:$0xff]
        %v2364 = vld [vmem:[#allocation8 + $0x6e8] sm:$0xff]
        %v2365 = vld [vmem:[#allocation8 + $0x6f0] sm:$0xff]
        %v2366 = vld [vmem:[#allocation8 + $0x6f8] sm:$0xff]
        %v2367 = vld [vmem:[#allocation8 + $0x700] sm:$0xff]
        %v2368 = vld [vmem:[#allocation8 + $0x708] sm:$0xff]
        %v2369 = vld [vmem:[#allocation8 + $0x710] sm:$0xff]
        %v2370 = vld [vmem:[#allocation8 + $0x718] sm:$0xff]
        %v2371 = vld [vmem:[#allocation8 + $0x720] sm:$0xff]
        %v2372 = vld [vmem:[#allocation8 + $0x728] sm:$0xff]
        %v2373 = vld [vmem:[#allocation8 + $0x730] sm:$0xff]
        %v2374 = vld [vmem:[#allocation8 + $0x738] sm:$0xff]
        %v2375 = vld [vmem:[#allocation8 + $0x740] sm:$0xff]
        %v2376 = vld [vmem:[#allocation8 + $0x748] sm:$0xff]
        %v2377 = vld [vmem:[#allocation8 + $0x750] sm:$0xff]
        %v2378 = vld [vmem:[#allocation8 + $0x758] sm:$0xff]
        %v2379 = vld [vmem:[#allocation8 + $0x760] sm:$0xff]
        %v2380 = vld [vmem:[#allocation8 + $0x768] sm:$0xff]
        %v2381 = vld [vmem:[#allocation8 + $0x770] sm:$0xff]
        %v2382 = vld [vmem:[#allocation8 + $0x778] sm:$0xff]
        %v2383 = vld [vmem:[#allocation8 + $0x780] sm:$0xff]
        %v2384 = vld [vmem:[#allocation8 + $0x788] sm:$0xff]
        %v2385 = vld [vmem:[#allocation8 + $0x790] sm:$0xff]
        %v2386 = vld [vmem:[#allocation8 + $0x798] sm:$0xff]
        %v2387 = vld [vmem:[#allocation8 + $0x7a0] sm:$0xff]
        %v2388 = vld [vmem:[#allocation8 + $0x7a8] sm:$0xff]
        %v2389 = vld [vmem:[#allocation8 + $0x7b0] sm:$0xff]
        %v2390 = vld [vmem:[#allocation8 + $0x7b8] sm:$0xff]
        %v2391 = vld [vmem:[#allocation8 + $0x7c0] sm:$0xff]
        %v2392 = vld [vmem:[#allocation8 + $0x7c8] sm:$0xff]
        %v2393 = vld [vmem:[#allocation8 + $0x7d0] sm:$0xff]
        %v2394 = vld [vmem:[#allocation8 + $0x7d8] sm:$0xff]
        %v2395 = vld [vmem:[#allocation8 + $0x7e0] sm:$0xff]
        %v2396 = vld [vmem:[#allocation8 + $0x7e8] sm:$0xff]
        %v2397 = vld [vmem:[#allocation8 + $0x7f0] sm:$0xff]
        %v2398 = vld [vmem:[#allocation8 + $0x7f8] sm:$0xff]
        %v2399 = vld [vmem:[#allocation8 + $0x800] sm:$0xff]
        %v2400 = vld [vmem:[#allocation8 + $0x808] sm:$0xff]
        %v2401 = vld [vmem:[#allocation8 + $0x810] sm:$0xff]
        %v2402 = vld [vmem:[#allocation8 + $0x818] sm:$0xff]
        %v2403 = vld [vmem:[#allocation8 + $0x820] sm:$0xff]
        %v2404 = vld [vmem:[#allocation8 + $0x828] sm:$0xff]
        %v2405 = vld [vmem:[#allocation8 + $0x830] sm:$0xff]
        %v2406 = vld [vmem:[#allocation8 + $0x838] sm:$0xff]
        %v2407 = vld [vmem:[#allocation8 + $0x840] sm:$0xff]
        %v2408 = vld [vmem:[#allocation8 + $0x848] sm:$0xff]
        %v2409 = vld [vmem:[#allocation8 + $0x850] sm:$0xff]
        %v2410 = vld [vmem:[#allocation8 + $0x858] sm:$0xff]
        %v2411 = vld [vmem:[#allocation8 + $0x860] sm:$0xff]
        %v2412 = vld [vmem:[#allocation8 + $0x868] sm:$0xff]
        %v2413 = vld [vmem:[#allocation8 + $0x870] sm:$0xff]
        %v2414 = vld [vmem:[#allocation8 + $0x878] sm:$0xff]
        %v2415 = vld [vmem:[#allocation8 + $0x880] sm:$0xff]
        %v2416 = vld [vmem:[#allocation8 + $0x888] sm:$0xff]
        %v2417 = vld [vmem:[#allocation8 + $0x890] sm:$0xff]
        %v2418 = vld [vmem:[#allocation8 + $0x898] sm:$0xff]
        %v2419 = vld [vmem:[#allocation8 + $0x8a0] sm:$0xff]
        %v2420 = vld [vmem:[#allocation8 + $0x8a8] sm:$0xff]
        %v2421 = vld [vmem:[#allocation8 + $0x8b0] sm:$0xff]
        %v2422 = vld [vmem:[#allocation8 + $0x8b8] sm:$0xff]
        %v2423 = vld [vmem:[#allocation8 + $0x8c0] sm:$0xff]
        %v2424 = vld [vmem:[#allocation8 + $0x8c8] sm:$0xff]
        %v2425 = vld [vmem:[#allocation8 + $0x8d0] sm:$0xff]
        %v2426 = vld [vmem:[#allocation8 + $0x8d8] sm:$0xff]
        %v2427 = vld [vmem:[#allocation8 + $0x8e0] sm:$0xff]
        %v2428 = vld [vmem:[#allocation8 + $0x8e8] sm:$0xff]
        %v2429 = vld [vmem:[#allocation8 + $0x8f0] sm:$0xff]
        %v2430 = vld [vmem:[#allocation8 + $0x8f8] sm:$0xff]
        %v2431 = vld [vmem:[#allocation8 + $0x900] sm:$0xff]
        %v2432 = vld [vmem:[#allocation8 + $0x908] sm:$0xff]
        %v2433 = vld [vmem:[#allocation8 + $0x910] sm:$0xff]
        %v2434 = vld [vmem:[#allocation8 + $0x918] sm:$0xff]
        %v2435 = vld [vmem:[#allocation8 + $0x920] sm:$0xff]
        %v2436 = vld [vmem:[#allocation8 + $0x928] sm:$0xff]
        %v2437 = vld [vmem:[#allocation8 + $0x930] sm:$0xff]
        %v2438 = vld [vmem:[#allocation8 + $0x938] sm:$0xff]
        %v2439 = vld [vmem:[#allocation8 + $0x940] sm:$0xff]
        %v2440 = vld [vmem:[#allocation8 + $0x948] sm:$0xff]
        %v2441 = vld [vmem:[#allocation8 + $0x950] sm:$0xff]
        %v2442 = vld [vmem:[#allocation8 + $0x958] sm:$0xff]
        %v2443 = vld [vmem:[#allocation8 + $0x960] sm:$0xff]
        %v2444 = vld [vmem:[#allocation8 + $0x968] sm:$0xff]
        %v2445 = vld [vmem:[#allocation8 + $0x970] sm:$0xff]
        %v2446 = vld [vmem:[#allocation8 + $0x978] sm:$0xff]
        %v2447 = vld [vmem:[#allocation8 + $0x980] sm:$0xff]
        %v2448 = vld [vmem:[#allocation8 + $0x988] sm:$0xff]
        %v2449 = vld [vmem:[#allocation8 + $0x990] sm:$0xff]
        %v2450 = vld [vmem:[#allocation8 + $0x998] sm:$0xff]
        %v2451 = vld [vmem:[#allocation8 + $0x9a0] sm:$0xff]
        %v2452 = vld [vmem:[#allocation8 + $0x9a8] sm:$0xff]
        %v2453 = vld [vmem:[#allocation8 + $0x9b0] sm:$0xff]
        %v2454 = vld [vmem:[#allocation8 + $0x9b8] sm:$0xff]
        %v2455 = vld [vmem:[#allocation8 + $0x9c0] sm:$0xff]
        %v2456 = vld [vmem:[#allocation8 + $0x9c8] sm:$0xff]
        %v2457 = vld [vmem:[#allocation8 + $0x9d0] sm:$0xff]
        %v2458 = vld [vmem:[#allocation8 + $0x9d8] sm:$0xff]
        %v2459 = vld [vmem:[#allocation8 + $0x9e0] sm:$0xff]
        %v2460 = vld [vmem:[#allocation8 + $0x9e8] sm:$0xff]
        %v2461 = vld [vmem:[#allocation8 + $0x9f0] sm:$0xff]
        %v2462 = vld [vmem:[#allocation8 + $0x9f8] sm:$0xff]
        %v2463 = vld [vmem:[#allocation8 + $0xa00] sm:$0xff]
        %v2464 = vld [vmem:[#allocation8 + $0xa08] sm:$0xff]
        %v2465 = vld [vmem:[#allocation8 + $0xa10] sm:$0xff]
        %v2466 = vld [vmem:[#allocation8 + $0xa18] sm:$0xff]
        %v2467 = vld [vmem:[#allocation8 + $0xa20] sm:$0xff]
        %v2468 = vld [vmem:[#allocation8 + $0xa28] sm:$0xff]
        %v2469 = vld [vmem:[#allocation8 + $0xa30] sm:$0xff]
        %v2470 = vld [vmem:[#allocation8 + $0xa38] sm:$0xff]
        %v2471 = vld [vmem:[#allocation8 + $0xa40] sm:$0xff]
        %v2472 = vld [vmem:[#allocation8 + $0xa48] sm:$0xff]
        %v2473 = vld [vmem:[#allocation8 + $0xa50] sm:$0xff]
        %v2474 = vld [vmem:[#allocation8 + $0xa58] sm:$0xff]
        %v2475 = vld [vmem:[#allocation8 + $0xa60] sm:$0xff]
        %v2476 = vld [vmem:[#allocation8 + $0xa68] sm:$0xff]
        %v2477 = vld [vmem:[#allocation8 + $0xa70] sm:$0xff]
        %v2478 = vld [vmem:[#allocation8 + $0xa78] sm:$0xff]
        %v2479 = vld [vmem:[#allocation8 + $0xa80] sm:$0xff]
        %v2480 = vld [vmem:[#allocation8 + $0xa88] sm:$0xff]
        %v2481 = vld [vmem:[#allocation8 + $0xa90] sm:$0xff]
        %v2482 = vld [vmem:[#allocation8 + $0xa98] sm:$0xff]
        %v2483 = vld [vmem:[#allocation8 + $0xaa0] sm:$0xff]
        %v2484 = vld [vmem:[#allocation8 + $0xaa8] sm:$0xff]
        %v2485 = vld [vmem:[#allocation8 + $0xab0] sm:$0xff]
        %v2486 = vld [vmem:[#allocation8 + $0xab8] sm:$0xff]
        %v2487 = vld [vmem:[#allocation8 + $0xac0] sm:$0xff]
        %v2488 = vld [vmem:[#allocation8 + $0xac8] sm:$0xff]
        %v2489 = vld [vmem:[#allocation8 + $0xad0] sm:$0xff]
        %v2490 = vld [vmem:[#allocation8 + $0xad8] sm:$0xff]
        %v2491 = vld [vmem:[#allocation8 + $0xae0] sm:$0xff]
        %v2492 = vld [vmem:[#allocation8 + $0xae8] sm:$0xff]
        %v2493 = vld [vmem:[#allocation8 + $0xaf0] sm:$0xff]
        %v2494 = vld [vmem:[#allocation8 + $0xaf8] sm:$0xff]
        %v2495 = vld [vmem:[#allocation8 + $0xb00] sm:$0xff]
        %v2496 = vld [vmem:[#allocation8 + $0xb08] sm:$0xff]
        %v2497 = vld [vmem:[#allocation8 + $0xb10] sm:$0xff]
        %v2498 = vld [vmem:[#allocation8 + $0xb18] sm:$0xff]
        %v2499 = vld [vmem:[#allocation8 + $0xb20] sm:$0xff]
        %v2500 = vld [vmem:[#allocation8 + $0xb28] sm:$0xff]
        %v2501 = vld [vmem:[#allocation8 + $0xb30] sm:$0xff]
        %v2502 = vld [vmem:[#allocation8 + $0xb38] sm:$0xff]
        %v2503 = vld [vmem:[#allocation8 + $0xb40] sm:$0xff]
        %v2504 = vld [vmem:[#allocation8 + $0xb48] sm:$0xff]
        %v2505 = vld [vmem:[#allocation8 + $0xb50] sm:$0xff]
        %v2506 = vld [vmem:[#allocation8 + $0xb58] sm:$0xff]
        %v2507 = vld [vmem:[#allocation8 + $0xb60] sm:$0xff]
        %v2508 = vld [vmem:[#allocation8 + $0xb68] sm:$0xff]
        %v2509 = vld [vmem:[#allocation8 + $0xb70] sm:$0xff]
        %v2510 = vld [vmem:[#allocation8 + $0xb78] sm:$0xff]
        %v2511 = vld [vmem:[#allocation8 + $0xb80] sm:$0xff]
        %v2512 = vld [vmem:[#allocation8 + $0xb88] sm:$0xff]
        %v2513 = vld [vmem:[#allocation8 + $0xb90] sm:$0xff]
        %v2514 = vld [vmem:[#allocation8 + $0xb98] sm:$0xff]
        %v2515 = vld [vmem:[#allocation8 + $0xba0] sm:$0xff]
        %v2516 = vld [vmem:[#allocation8 + $0xba8] sm:$0xff]
        %v2517 = vld [vmem:[#allocation8 + $0xbb0] sm:$0xff]
        %v2518 = vld [vmem:[#allocation8 + $0xbb8] sm:$0xff]
        %v2519 = vld [vmem:[#allocation8 + $0xbc0] sm:$0xff]
        %v2520 = vld [vmem:[#allocation8 + $0xbc8] sm:$0xff]
        %v2521 = vld [vmem:[#allocation8 + $0xbd0] sm:$0xff]
        %v2522 = vld [vmem:[#allocation8 + $0xbd8] sm:$0xff]
        %v2523 = vld [vmem:[#allocation8 + $0xbe0] sm:$0xff]
        %v2524 = vld [vmem:[#allocation8 + $0xbe8] sm:$0xff]
        %v2525 = vld [vmem:[#allocation8 + $0xbf0] sm:$0xff]
        %v2526 = vld [vmem:[#allocation8 + $0xbf8] sm:$0xff]
        %v2527 = vld [vmem:[#allocation8 + $0xc00] sm:$0xff]
        %v2528 = vld [vmem:[#allocation8 + $0xc08] sm:$0xff]
        %v2529 = vld [vmem:[#allocation8 + $0xc10] sm:$0xff]
        %v2530 = vld [vmem:[#allocation8 + $0xc18] sm:$0xff]
        %v2531 = vld [vmem:[#allocation8 + $0xc20] sm:$0xff]
        %v2532 = vld [vmem:[#allocation8 + $0xc28] sm:$0xff]
        %v2533 = vld [vmem:[#allocation8 + $0xc30] sm:$0xff]
        %v2534 = vld [vmem:[#allocation8 + $0xc38] sm:$0xff]
        %v2535 = vld [vmem:[#allocation8 + $0xc40] sm:$0xff]
        %v2536 = vld [vmem:[#allocation8 + $0xc48] sm:$0xff]
        %v2537 = vld [vmem:[#allocation8 + $0xc50] sm:$0xff]
        %v2538 = vld [vmem:[#allocation8 + $0xc58] sm:$0xff]
        %v2539 = vld [vmem:[#allocation8 + $0xc60] sm:$0xff]
        %v2540 = vld [vmem:[#allocation8 + $0xc68] sm:$0xff]
        %v2541 = vld [vmem:[#allocation8 + $0xc70] sm:$0xff]
        %v2542 = vld [vmem:[#allocation8 + $0xc78] sm:$0xff]
        %v2543 = vld [vmem:[#allocation8 + $0xc80] sm:$0xff]
        %v2544 = vld [vmem:[#allocation8 + $0xc88] sm:$0xff]
        %v2545 = vld [vmem:[#allocation8 + $0xc90] sm:$0xff]
        %v2546 = vld [vmem:[#allocation8 + $0xc98] sm:$0xff]
        %v2547 = vld [vmem:[#allocation8 + $0xca0] sm:$0xff]
        %v2548 = vld [vmem:[#allocation8 + $0xca8] sm:$0xff]
        %v2549 = vld [vmem:[#allocation8 + $0xcb0] sm:$0xff]
        %v2550 = vld [vmem:[#allocation8 + $0xcb8] sm:$0xff]
        %v2551 = vld [vmem:[#allocation8 + $0xcc0] sm:$0xff]
        %v2552 = vld [vmem:[#allocation8 + $0xcc8] sm:$0xff]
        %v2553 = vld [vmem:[#allocation8 + $0xcd0] sm:$0xff]
        %v2554 = vld [vmem:[#allocation8 + $0xcd8] sm:$0xff]
        %v2555 = vld [vmem:[#allocation8 + $0xce0] sm:$0xff]
        %v2556 = vld [vmem:[#allocation8 + $0xce8] sm:$0xff]
        %v2557 = vld [vmem:[#allocation8 + $0xcf0] sm:$0xff]
        %v2558 = vld [vmem:[#allocation8 + $0xcf8] sm:$0xff]
        %v2559 = vld [vmem:[#allocation8 + $0xd00] sm:$0xff]
        %v2560 = vld [vmem:[#allocation8 + $0xd08] sm:$0xff]
        %v2561 = vld [vmem:[#allocation8 + $0xd10] sm:$0xff]
        %v2562 = vld [vmem:[#allocation8 + $0xd18] sm:$0xff]
        %v2563 = vld [vmem:[#allocation8 + $0xd20] sm:$0xff]
        %v2564 = vld [vmem:[#allocation8 + $0xd28] sm:$0xff]
        %v2565 = vld [vmem:[#allocation8 + $0xd30] sm:$0xff]
        %v2566 = vld [vmem:[#allocation8 + $0xd38] sm:$0xff]
        %v2567 = vld [vmem:[#allocation8 + $0xd40] sm:$0xff]
        %v2568 = vld [vmem:[#allocation8 + $0xd48] sm:$0xff]
        %v2569 = vld [vmem:[#allocation8 + $0xd50] sm:$0xff]
        %v2570 = vld [vmem:[#allocation8 + $0xd58] sm:$0xff]
        %v2571 = vld [vmem:[#allocation8 + $0xd60] sm:$0xff]
        %v2572 = vld [vmem:[#allocation8 + $0xd68] sm:$0xff]
        %v2573 = vld [vmem:[#allocation8 + $0xd70] sm:$0xff]
        %v2574 = vld [vmem:[#allocation8 + $0xd78] sm:$0xff]
        %v2575 = vld [vmem:[#allocation8 + $0xd80] sm:$0xff]
        %v2576 = vld [vmem:[#allocation8 + $0xd88] sm:$0xff]
        %v2577 = vld [vmem:[#allocation8 + $0xd90] sm:$0xff]
        %v2578 = vld [vmem:[#allocation8 + $0xd98] sm:$0xff]
        %v2579 = vld [vmem:[#allocation8 + $0xda0] sm:$0xff]
        %v2580 = vld [vmem:[#allocation8 + $0xda8] sm:$0xff]
        %v2581 = vld [vmem:[#allocation8 + $0xdb0] sm:$0xff]
        %v2582 = vld [vmem:[#allocation8 + $0xdb8] sm:$0xff]
        %v2583 = vld [vmem:[#allocation8 + $0xdc0] sm:$0xff]
        %v2584 = vld [vmem:[#allocation8 + $0xdc8] sm:$0xff]
        %v2585 = vld [vmem:[#allocation8 + $0xdd0] sm:$0xff]
        %v2586 = vld [vmem:[#allocation8 + $0xdd8] sm:$0xff]
        %v2587 = vld [vmem:[#allocation8 + $0xde0] sm:$0xff]
        %v2588 = vld [vmem:[#allocation8 + $0xde8] sm:$0xff]
        %v2589 = vld [vmem:[#allocation8 + $0xdf0] sm:$0xff]
        %v2590 = vld [vmem:[#allocation8 + $0xdf8] sm:$0xff]
        %v2591 = vld [vmem:[#allocation8 + $0xe00] sm:$0xff]
        %v2592 = vld [vmem:[#allocation8 + $0xe08] sm:$0xff]
        %v2593 = vld [vmem:[#allocation8 + $0xe10] sm:$0xff]
        %v2594 = vld [vmem:[#allocation8 + $0xe18] sm:$0xff]
        %v2595 = vld [vmem:[#allocation8 + $0xe20] sm:$0xff]
        %v2596 = vld [vmem:[#allocation8 + $0xe28] sm:$0xff]
        %v2597 = vld [vmem:[#allocation8 + $0xe30] sm:$0xff]
        %v2598 = vld [vmem:[#allocation8 + $0xe38] sm:$0xff]
        %v2599 = vld [vmem:[#allocation8 + $0xe40] sm:$0xff]
        %v2600 = vld [vmem:[#allocation8 + $0xe48] sm:$0xff]
        %v2601 = vld [vmem:[#allocation8 + $0xe50] sm:$0xff]
        %v2602 = vld [vmem:[#allocation8 + $0xe58] sm:$0xff]
        %v2603 = vld [vmem:[#allocation8 + $0xe60] sm:$0xff]
        %v2604 = vld [vmem:[#allocation8 + $0xe68] sm:$0xff]
        %v2605 = vld [vmem:[#allocation8 + $0xe70] sm:$0xff]
        %v2606 = vld [vmem:[#allocation8 + $0xe78] sm:$0xff]
        %v2607 = vld [vmem:[#allocation8 + $0xe80] sm:$0xff]
        %v2608 = vld [vmem:[#allocation8 + $0xe88] sm:$0xff]
        %v2609 = vld [vmem:[#allocation8 + $0xe90] sm:$0xff]
        %v2610 = vld [vmem:[#allocation8 + $0xe98] sm:$0xff]
        %v2611 = vld [vmem:[#allocation8 + $0xea0] sm:$0xff]
        %v2612 = vld [vmem:[#allocation8 + $0xea8] sm:$0xff]
        %v2613 = vld [vmem:[#allocation8 + $0xeb0] sm:$0xff]
        %v2614 = vld [vmem:[#allocation8 + $0xeb8] sm:$0xff]
        %v2615 = vld [vmem:[#allocation8 + $0xec0] sm:$0xff]
        %v2616 = vld [vmem:[#allocation8 + $0xec8] sm:$0xff]
        %v2617 = vld [vmem:[#allocation8 + $0xed0] sm:$0xff]
        %v2618 = vld [vmem:[#allocation8 + $0xed8] sm:$0xff]
        %v2619 = vld [vmem:[#allocation8 + $0xee0] sm:$0xff]
        %v2620 = vld [vmem:[#allocation8 + $0xee8] sm:$0xff]
        %v2621 = vld [vmem:[#allocation8 + $0xef0] sm:$0xff]
        %v2622 = vld [vmem:[#allocation8 + $0xef8] sm:$0xff]
        %v2623 = vld [vmem:[#allocation8 + $0xf00] sm:$0xff]
        %v2624 = vld [vmem:[#allocation8 + $0xf08] sm:$0xff]
        %v2625 = vld [vmem:[#allocation8 + $0xf10] sm:$0xff]
        %v2626 = vld [vmem:[#allocation8 + $0xf18] sm:$0xff]
        %v2627 = vld [vmem:[#allocation8 + $0xf20] sm:$0xff]
        %v2628 = vld [vmem:[#allocation8 + $0xf28] sm:$0xff]
        %v2629 = vld [vmem:[#allocation8 + $0xf30] sm:$0xff]
        %v2630 = vld [vmem:[#allocation8 + $0xf38] sm:$0xff]
        %v2631 = vld [vmem:[#allocation8 + $0xf40] sm:$0xff]
        %v2632 = vld [vmem:[#allocation8 + $0xf48] sm:$0xff]
        %v2633 = vld [vmem:[#allocation8 + $0xf50] sm:$0xff]
        %v2634 = vld [vmem:[#allocation8 + $0xf58] sm:$0xff]
        %v2635 = vld [vmem:[#allocation8 + $0xf60] sm:$0xff]
        %v2636 = vld [vmem:[#allocation8 + $0xf68] sm:$0xff]
        %v2637 = vld [vmem:[#allocation8 + $0xf70] sm:$0xff]
        %v2638 = vld [vmem:[#allocation8 + $0xf78] sm:$0xff]
        %v2639 = vld [vmem:[#allocation8 + $0xf80] sm:$0xff]
        %v2640 = vld [vmem:[#allocation8 + $0xf88] sm:$0xff]
        %v2641 = vld [vmem:[#allocation8 + $0xf90] sm:$0xff]
        %v2642 = vld [vmem:[#allocation8 + $0xf98] sm:$0xff]
        %v2643 = vld [vmem:[#allocation8 + $0xfa0] sm:$0xff]
        %v2644 = vld [vmem:[#allocation8 + $0xfa8] sm:$0xff]
        %v2645 = vld [vmem:[#allocation8 + $0xfb0] sm:$0xff]
        %v2646 = vld [vmem:[#allocation8 + $0xfb8] sm:$0xff]
        %v2647 = vld [vmem:[#allocation8 + $0xfc0] sm:$0xff]
        %v2648 = vld [vmem:[#allocation8 + $0xfc8] sm:$0xff]
        %v2649 = vld [vmem:[#allocation8 + $0xfd0] sm:$0xff]
        %v2650 = vld [vmem:[#allocation8 + $0xfd8] sm:$0xff]
        %v2651 = vld [vmem:[#allocation8 + $0xfe0] sm:$0xff]
        %v2652 = vld [vmem:[#allocation8 + $0xfe8] sm:$0xff]
        %v2653 = vld [vmem:[#allocation8 + $0xff0] sm:$0xff]
        %v2654 = vld [vmem:[#allocation8 + $0xff8] sm:$0xff]
        %v2655 = vld [vmem:[#allocation10] sm:$0x1]
        %v2657 = vlaneseq
        %v2658 = vshrl.u32 %v2657, 7
        %v2659 = vsub.s32 0, %v2658
        %v2660 = vrot.slane %v2655, %v2659
        %2662 = vmatprep.subr.mxu0 0.0
        %2663 = vmatpush1.msra.mxu0 %v2143
        %2664 = vmatprep.subr.mxu0 0.0
        %2665 = vmatpush1.msra.mxu0 %v2144
        %2666 = vmatprep.subr.mxu0 0.0
        %2667 = vmatpush1.msra.mxu0 %v2145
        %2668 = vmatprep.subr.mxu0 0.0
        %2669 = vmatpush1.msra.mxu0 %v2146
        %2670 = vmatprep.subr.mxu0 0.0
        %2671 = vmatpush1.msra.mxu0 %v2147
        %2672 = vmatprep.subr.mxu0 0.0
        %2673 = vmatpush1.msra.mxu0 %v2148
        %2674 = vmatprep.subr.mxu0 0.0
        %2675 = vmatpush1.msra.mxu0 %v2149
        %2676 = vmatprep.subr.mxu0 0.0
        %2677 = vmatpush1.msra.mxu0 %v2150
        %2678 = vmatprep.subr.mxu0 0.0
        %2679 = vmatpush1.msra.mxu0 %v2151
        %2680 = vmatprep.subr.mxu0 0.0
        %2681 = vmatpush1.msra.mxu0 %v2152
        %2682 = vmatprep.subr.mxu0 0.0
        %2683 = vmatpush1.msra.mxu0 %v2153
        %2684 = vmatprep.subr.mxu0 0.0
        %2685 = vmatpush1.msra.mxu0 %v2154
        %2686 = vmatprep.subr.mxu0 0.0
        %2687 = vmatpush1.msra.mxu0 %v2155
        %2688 = vmatprep.subr.mxu0 0.0
        %2689 = vmatpush1.msra.mxu0 %v2156
        %2690 = vmatprep.subr.mxu0 0.0
        %2691 = vmatpush1.msra.mxu0 %v2157
        %2692 = vmatprep.subr.mxu0 0.0
        %2693 = vmatpush1.msra.mxu0 %v2158
        %2694 = vmatprep.subr.mxu0 0.0
        %2695 = vmatpush1.msra.mxu0 %v2159
        %2696 = vmatprep.subr.mxu0 0.0
        %2697 = vmatpush1.msra.mxu0 %v2160
        %2698 = vmatprep.subr.mxu0 0.0
        %2699 = vmatpush1.msra.mxu0 %v2161
        %2700 = vmatprep.subr.mxu0 0.0
        %2701 = vmatpush1.msra.mxu0 %v2162
        %2702 = vmatprep.subr.mxu0 0.0
        %2703 = vmatpush1.msra.mxu0 %v2163
        %2704 = vmatprep.subr.mxu0 0.0
        %2705 = vmatpush1.msra.mxu0 %v2164
        %2706 = vmatprep.subr.mxu0 0.0
        %2707 = vmatpush1.msra.mxu0 %v2165
        %2708 = vmatprep.subr.mxu0 0.0
        %2709 = vmatpush1.msra.mxu0 %v2166
        %2710 = vmatprep.subr.mxu0 0.0
        %2711 = vmatpush1.msra.mxu0 %v2167
        %2712 = vmatprep.subr.mxu0 0.0
        %2713 = vmatpush1.msra.mxu0 %v2168
        %2714 = vmatprep.subr.mxu0 0.0
        %2715 = vmatpush1.msra.mxu0 %v2169
        %2716 = vmatprep.subr.mxu0 0.0
        %2717 = vmatpush1.msra.mxu0 %v2170
        %2718 = vmatprep.subr.mxu0 0.0
        %2719 = vmatpush1.msra.mxu0 %v2171
        %2720 = vmatprep.subr.mxu0 0.0
        %2721 = vmatpush1.msra.mxu0 %v2172
        %2722 = vmatprep.subr.mxu0 0.0
        %2723 = vmatpush1.msra.mxu0 %v2173
        %2724 = vmatprep.subr.mxu0 0.0
        %2725 = vmatpush1.msra.mxu0 %v2174
        %2726 = vmatprep.mubr.f32.mxu0 %v2112
        %2727 = vmatmul.mubr.f32.gmra.mrb[0].mxu0 %v2111
        %v2728 = vpop.f32.mrb[0].mxu0
        %v2729 = vadd.f32 %v2660, %v2728
        %v2730 = vpop.f32.mrb[0].mxu0
        %2731 = vdwg.mxu0
        %2732 = vmatprep.subr.mxu0 0.0
        %2733 = vmatpush1.msra.mxu0 %v2175
        %2734 = vmatprep.subr.mxu0 0.0
        %2735 = vmatpush1.msra.mxu0 %v2176
        %2736 = vmatprep.subr.mxu0 0.0
        %2737 = vmatpush1.msra.mxu0 %v2177
        %2738 = vmatprep.subr.mxu0 0.0
        %2739 = vmatpush1.msra.mxu0 %v2178
        %2740 = vmatprep.subr.mxu0 0.0
        %2741 = vmatpush1.msra.mxu0 %v2179
        %2742 = vmatprep.subr.mxu0 0.0
        %2743 = vmatpush1.msra.mxu0 %v2180
        %2744 = vmatprep.subr.mxu0 0.0
        %2745 = vmatpush1.msra.mxu0 %v2181
        %2746 = vmatprep.subr.mxu0 0.0
        %2747 = vmatpush1.msra.mxu0 %v2182
        %2748 = vmatprep.subr.mxu0 0.0
        %2749 = vmatpush1.msra.mxu0 %v2183
        %2750 = vmatprep.subr.mxu0 0.0
        %2751 = vmatpush1.msra.mxu0 %v2184
        %2752 = vmatprep.subr.mxu0 0.0
        %2753 = vmatpush1.msra.mxu0 %v2185
        %2754 = vmatprep.subr.mxu0 0.0
        %2755 = vmatpush1.msra.mxu0 %v2186
        %2756 = vmatprep.subr.mxu0 0.0
        %2757 = vmatpush1.msra.mxu0 %v2187
        %2758 = vmatprep.subr.mxu0 0.0
        %2759 = vmatpush1.msra.mxu0 %v2188
        %2760 = vmatprep.subr.mxu0 0.0
        %2761 = vmatpush1.msra.mxu0 %v2189
        %2762 = vmatprep.subr.mxu0 0.0
        %2763 = vmatpush1.msra.mxu0 %v2190
        %2764 = vmatprep.subr.mxu0 0.0
        %2765 = vmatpush1.msra.mxu0 %v2191
        %2766 = vmatprep.subr.mxu0 0.0
        %2767 = vmatpush1.msra.mxu0 %v2192
        %2768 = vmatprep.subr.mxu0 0.0
        %2769 = vmatpush1.msra.mxu0 %v2193
        %2770 = vmatprep.subr.mxu0 0.0
        %2771 = vmatpush1.msra.mxu0 %v2194
        %2772 = vmatprep.subr.mxu0 0.0
        %2773 = vmatpush1.msra.mxu0 %v2195
        %2774 = vmatprep.subr.mxu0 0.0
        %2775 = vmatpush1.msra.mxu0 %v2196
        %2776 = vmatprep.subr.mxu0 0.0
        %2777 = vmatpush1.msra.mxu0 %v2197
        %2778 = vmatprep.subr.mxu0 0.0
        %2779 = vmatpush1.msra.mxu0 %v2198
        %2780 = vmatprep.subr.mxu0 0.0
        %2781 = vmatpush1.msra.mxu0 %v2199
        %2782 = vmatprep.subr.mxu0 0.0
        %2783 = vmatpush1.msra.mxu0 %v2200
        %2784 = vmatprep.subr.mxu0 0.0
        %2785 = vmatpush1.msra.mxu0 %v2201
        %2786 = vmatprep.subr.mxu0 0.0
        %2787 = vmatpush1.msra.mxu0 %v2202
        %2788 = vmatprep.subr.mxu0 0.0
        %2789 = vmatpush1.msra.mxu0 %v2203
        %2790 = vmatprep.subr.mxu0 0.0
        %2791 = vmatpush1.msra.mxu0 %v2204
        %2792 = vmatprep.subr.mxu0 0.0
        %2793 = vmatpush1.msra.mxu0 %v2205
        %2794 = vmatprep.subr.mxu0 0.0
        %2795 = vmatpush1.msra.mxu0 %v2206
        %2796 = vmatprep.mubr.f32.mxu0 %v2114
        %2797 = vmatmul.mubr.f32.gmra.mrb[0].mxu0 %v2113
        %v2798 = vpop.f32.mrb[0].mxu0
        %v2799 = vadd.f32 %v2729, %v2798
        %v2800 = vpop.f32.mrb[0].mxu0
        %2801 = vdwg.mxu0
        %2802 = vmatprep.subr.mxu0 0.0
        %2803 = vmatpush1.msra.mxu0 %v2207
        %2804 = vmatprep.subr.mxu0 0.0
        %2805 = vmatpush1.msra.mxu0 %v2208
        %2806 = vmatprep.subr.mxu0 0.0
        %2807 = vmatpush1.msra.mxu0 %v2209
        %2808 = vmatprep.subr.mxu0 0.0
        %2809 = vmatpush1.msra.mxu0 %v2210
        %2810 = vmatprep.subr.mxu0 0.0
        %2811 = vmatpush1.msra.mxu0 %v2211
        %2812 = vmatprep.subr.mxu0 0.0
        %2813 = vmatpush1.msra.mxu0 %v2212
        %2814 = vmatprep.subr.mxu0 0.0
        %2815 = vmatpush1.msra.mxu0 %v2213
        %2816 = vmatprep.subr.mxu0 0.0
        %2817 = vmatpush1.msra.mxu0 %v2214
        %2818 = vmatprep.subr.mxu0 0.0
        %2819 = vmatpush1.msra.mxu0 %v2215
        %2820 = vmatprep.subr.mxu0 0.0
        %2821 = vmatpush1.msra.mxu0 %v2216
        %2822 = vmatprep.subr.mxu0 0.0
        %2823 = vmatpush1.msra.mxu0 %v2217
        %2824 = vmatprep.subr.mxu0 0.0
        %2825 = vmatpush1.msra.mxu0 %v2218
        %2826 = vmatprep.subr.mxu0 0.0
        %2827 = vmatpush1.msra.mxu0 %v2219
        %2828 = vmatprep.subr.mxu0 0.0
        %2829 = vmatpush1.msra.mxu0 %v2220
        %2830 = vmatprep.subr.mxu0 0.0
        %2831 = vmatpush1.msra.mxu0 %v2221
        %2832 = vmatprep.subr.mxu0 0.0
        %2833 = vmatpush1.msra.mxu0 %v2222
        %2834 = vmatprep.subr.mxu0 0.0
        %2835 = vmatpush1.msra.mxu0 %v2223
        %2836 = vmatprep.subr.mxu0 0.0
        %2837 = vmatpush1.msra.mxu0 %v2224
        %2838 = vmatprep.subr.mxu0 0.0
        %2839 = vmatpush1.msra.mxu0 %v2225
        %2840 = vmatprep.subr.mxu0 0.0
        %2841 = vmatpush1.msra.mxu0 %v2226
        %2842 = vmatprep.subr.mxu0 0.0
        %2843 = vmatpush1.msra.mxu0 %v2227
        %2844 = vmatprep.subr.mxu0 0.0
        %2845 = vmatpush1.msra.mxu0 %v2228
        %2846 = vmatprep.subr.mxu0 0.0
        %2847 = vmatpush1.msra.mxu0 %v2229
        %2848 = vmatprep.subr.mxu0 0.0
        %2849 = vmatpush1.msra.mxu0 %v2230
        %2850 = vmatprep.subr.mxu0 0.0
        %2851 = vmatpush1.msra.mxu0 %v2231
        %2852 = vmatprep.subr.mxu0 0.0
        %2853 = vmatpush1.msra.mxu0 %v2232
        %2854 = vmatprep.subr.mxu0 0.0
        %2855 = vmatpush1.msra.mxu0 %v2233
        %2856 = vmatprep.subr.mxu0 0.0
        %2857 = vmatpush1.msra.mxu0 %v2234
        %2858 = vmatprep.subr.mxu0 0.0
        %2859 = vmatpush1.msra.mxu0 %v2235
        %2860 = vmatprep.subr.mxu0 0.0
        %2861 = vmatpush1.msra.mxu0 %v2236
        %2862 = vmatprep.subr.mxu0 0.0
        %2863 = vmatpush1.msra.mxu0 %v2237
        %2864 = vmatprep.subr.mxu0 0.0
        %2865 = vmatpush1.msra.mxu0 %v2238
        %2866 = vmatprep.mubr.f32.mxu0 %v2116
        %2867 = vmatmul.mubr.f32.gmra.mrb[0].mxu0 %v2115
        %v2868 = vpop.f32.mrb[0].mxu0
        %v2869 = vadd.f32 %v2799, %v2868
        %v2870 = vpop.f32.mrb[0].mxu0
        %2871 = vdwg.mxu0
        %2872 = vmatprep.subr.mxu0 0.0
        %2873 = vmatpush1.msra.mxu0 %v2239
        %2874 = vmatprep.subr.mxu0 0.0
        %2875 = vmatpush1.msra.mxu0 %v2240
        %2876 = vmatprep.subr.mxu0 0.0
        %2877 = vmatpush1.msra.mxu0 %v2241
        %2878 = vmatprep.subr.mxu0 0.0
        %2879 = vmatpush1.msra.mxu0 %v2242
        %2880 = vmatprep.subr.mxu0 0.0
        %2881 = vmatpush1.msra.mxu0 %v2243
        %2882 = vmatprep.subr.mxu0 0.0
        %2883 = vmatpush1.msra.mxu0 %v2244
        %2884 = vmatprep.subr.mxu0 0.0
        %2885 = vmatpush1.msra.mxu0 %v2245
        %2886 = vmatprep.subr.mxu0 0.0
        %2887 = vmatpush1.msra.mxu0 %v2246
        %2888 = vmatprep.subr.mxu0 0.0
        %2889 = vmatpush1.msra.mxu0 %v2247
        %2890 = vmatprep.subr.mxu0 0.0
        %2891 = vmatpush1.msra.mxu0 %v2248
        %2892 = vmatprep.subr.mxu0 0.0
        %2893 = vmatpush1.msra.mxu0 %v2249
        %2894 = vmatprep.subr.mxu0 0.0
        %2895 = vmatpush1.msra.mxu0 %v2250
        %2896 = vmatprep.subr.mxu0 0.0
        %2897 = vmatpush1.msra.mxu0 %v2251
        %2898 = vmatprep.subr.mxu0 0.0
        %2899 = vmatpush1.msra.mxu0 %v2252
        %2900 = vmatprep.subr.mxu0 0.0
        %2901 = vmatpush1.msra.mxu0 %v2253
        %2902 = vmatprep.subr.mxu0 0.0
        %2903 = vmatpush1.msra.mxu0 %v2254
        %2904 = vmatprep.subr.mxu0 0.0
        %2905 = vmatpush1.msra.mxu0 %v2255
        %2906 = vmatprep.subr.mxu0 0.0
        %2907 = vmatpush1.msra.mxu0 %v2256
        %2908 = vmatprep.subr.mxu0 0.0
        %2909 = vmatpush1.msra.mxu0 %v2257
        %2910 = vmatprep.subr.mxu0 0.0
        %2911 = vmatpush1.msra.mxu0 %v2258
        %2912 = vmatprep.subr.mxu0 0.0
        %2913 = vmatpush1.msra.mxu0 %v2259
        %2914 = vmatprep.subr.mxu0 0.0
        %2915 = vmatpush1.msra.mxu0 %v2260
        %2916 = vmatprep.subr.mxu0 0.0
        %2917 = vmatpush1.msra.mxu0 %v2261
        %2918 = vmatprep.subr.mxu0 0.0
        %2919 = vmatpush1.msra.mxu0 %v2262
        %2920 = vmatprep.subr.mxu0 0.0
        %2921 = vmatpush1.msra.mxu0 %v2263
        %2922 = vmatprep.subr.mxu0 0.0
        %2923 = vmatpush1.msra.mxu0 %v2264
        %2924 = vmatprep.subr.mxu0 0.0
        %2925 = vmatpush1.msra.mxu0 %v2265
        %2926 = vmatprep.subr.mxu0 0.0
        %2927 = vmatpush1.msra.mxu0 %v2266
        %2928 = vmatprep.subr.mxu0 0.0
        %2929 = vmatpush1.msra.mxu0 %v2267
        %2930 = vmatprep.subr.mxu0 0.0
        %2931 = vmatpush1.msra.mxu0 %v2268
        %2932 = vmatprep.subr.mxu0 0.0
        %2933 = vmatpush1.msra.mxu0 %v2269
        %2934 = vmatprep.subr.mxu0 0.0
        %2935 = vmatpush1.msra.mxu0 %v2270
        %2936 = vmatprep.mubr.f32.mxu0 %v2118
        %2937 = vmatmul.mubr.f32.gmra.mrb[0].mxu0 %v2117
        %v2938 = vpop.f32.mrb[0].mxu0
        %v2939 = vadd.f32 %v2869, %v2938
        %v2940 = vpop.f32.mrb[0].mxu0
        %2941 = vdwg.mxu0
        %2942 = vmatprep.subr.mxu0 0.0
        %2943 = vmatpush1.msra.mxu0 %v2271
        %2944 = vmatprep.subr.mxu0 0.0
        %2945 = vmatpush1.msra.mxu0 %v2272
        %2946 = vmatprep.subr.mxu0 0.0
        %2947 = vmatpush1.msra.mxu0 %v2273
        %2948 = vmatprep.subr.mxu0 0.0
        %2949 = vmatpush1.msra.mxu0 %v2274
        %2950 = vmatprep.subr.mxu0 0.0
        %2951 = vmatpush1.msra.mxu0 %v2275
        %2952 = vmatprep.subr.mxu0 0.0
        %2953 = vmatpush1.msra.mxu0 %v2276
        %2954 = vmatprep.subr.mxu0 0.0
        %2955 = vmatpush1.msra.mxu0 %v2277
        %2956 = vmatprep.subr.mxu0 0.0
        %2957 = vmatpush1.msra.mxu0 %v2278
        %2958 = vmatprep.subr.mxu0 0.0
        %2959 = vmatpush1.msra.mxu0 %v2279
        %2960 = vmatprep.subr.mxu0 0.0
        %2961 = vmatpush1.msra.mxu0 %v2280
        %2962 = vmatprep.subr.mxu0 0.0
        %2963 = vmatpush1.msra.mxu0 %v2281
        %2964 = vmatprep.subr.mxu0 0.0
        %2965 = vmatpush1.msra.mxu0 %v2282
        %2966 = vmatprep.subr.mxu0 0.0
        %2967 = vmatpush1.msra.mxu0 %v2283
        %2968 = vmatprep.subr.mxu0 0.0
        %2969 = vmatpush1.msra.mxu0 %v2284
        %2970 = vmatprep.subr.mxu0 0.0
        %2971 = vmatpush1.msra.mxu0 %v2285
        %2972 = vmatprep.subr.mxu0 0.0
        %2973 = vmatpush1.msra.mxu0 %v2286
        %2974 = vmatprep.subr.mxu0 0.0
        %2975 = vmatpush1.msra.mxu0 %v2287
        %2976 = vmatprep.subr.mxu0 0.0
        %2977 = vmatpush1.msra.mxu0 %v2288
        %2978 = vmatprep.subr.mxu0 0.0
        %2979 = vmatpush1.msra.mxu0 %v2289
        %2980 = vmatprep.subr.mxu0 0.0
        %2981 = vmatpush1.msra.mxu0 %v2290
        %2982 = vmatprep.subr.mxu0 0.0
        %2983 = vmatpush1.msra.mxu0 %v2291
        %2984 = vmatprep.subr.mxu0 0.0
        %2985 = vmatpush1.msra.mxu0 %v2292
        %2986 = vmatprep.subr.mxu0 0.0
        %2987 = vmatpush1.msra.mxu0 %v2293
        %2988 = vmatprep.subr.mxu0 0.0
        %2989 = vmatpush1.msra.mxu0 %v2294
        %2990 = vmatprep.subr.mxu0 0.0
        %2991 = vmatpush1.msra.mxu0 %v2295
        %2992 = vmatprep.subr.mxu0 0.0
        %2993 = vmatpush1.msra.mxu0 %v2296
        %2994 = vmatprep.subr.mxu0 0.0
        %2995 = vmatpush1.msra.mxu0 %v2297
        %2996 = vmatprep.subr.mxu0 0.0
        %2997 = vmatpush1.msra.mxu0 %v2298
        %2998 = vmatprep.subr.mxu0 0.0
        %2999 = vmatpush1.msra.mxu0 %v2299
        %3000 = vmatprep.subr.mxu0 0.0
        %3001 = vmatpush1.msra.mxu0 %v2300
        %3002 = vmatprep.subr.mxu0 0.0
        %3003 = vmatpush1.msra.mxu0 %v2301
        %3004 = vmatprep.subr.mxu0 0.0
        %3005 = vmatpush1.msra.mxu0 %v2302
        %3006 = vmatprep.mubr.f32.mxu0 %v2120
        %3007 = vmatmul.mubr.f32.gmra.mrb[0].mxu0 %v2119
        %v3008 = vpop.f32.mrb[0].mxu0
        %v3009 = vadd.f32 %v2939, %v3008
        %v3010 = vpop.f32.mrb[0].mxu0
        %3011 = vdwg.mxu0
        %3012 = vmatprep.subr.mxu0 0.0
        %3013 = vmatpush1.msra.mxu0 %v2303
        %3014 = vmatprep.subr.mxu0 0.0
        %3015 = vmatpush1.msra.mxu0 %v2304
        %3016 = vmatprep.subr.mxu0 0.0
        %3017 = vmatpush1.msra.mxu0 %v2305
        %3018 = vmatprep.subr.mxu0 0.0
        %3019 = vmatpush1.msra.mxu0 %v2306
        %3020 = vmatprep.subr.mxu0 0.0
        %3021 = vmatpush1.msra.mxu0 %v2307
        %3022 = vmatprep.subr.mxu0 0.0
        %3023 = vmatpush1.msra.mxu0 %v2308
        %3024 = vmatprep.subr.mxu0 0.0
        %3025 = vmatpush1.msra.mxu0 %v2309
        %3026 = vmatprep.subr.mxu0 0.0
        %3027 = vmatpush1.msra.mxu0 %v2310
        %3028 = vmatprep.subr.mxu0 0.0
        %3029 = vmatpush1.msra.mxu0 %v2311
        %3030 = vmatprep.subr.mxu0 0.0
        %3031 = vmatpush1.msra.mxu0 %v2312
        %3032 = vmatprep.subr.mxu0 0.0
        %3033 = vmatpush1.msra.mxu0 %v2313
        %3034 = vmatprep.subr.mxu0 0.0
        %3035 = vmatpush1.msra.mxu0 %v2314
        %3036 = vmatprep.subr.mxu0 0.0
        %3037 = vmatpush1.msra.mxu0 %v2315
        %3038 = vmatprep.subr.mxu0 0.0
        %3039 = vmatpush1.msra.mxu0 %v2316
        %3040 = vmatprep.subr.mxu0 0.0
        %3041 = vmatpush1.msra.mxu0 %v2317
        %3042 = vmatprep.subr.mxu0 0.0
        %3043 = vmatpush1.msra.mxu0 %v2318
        %3044 = vmatprep.subr.mxu0 0.0
        %3045 = vmatpush1.msra.mxu0 %v2319
        %3046 = vmatprep.subr.mxu0 0.0
        %3047 = vmatpush1.msra.mxu0 %v2320
        %3048 = vmatprep.subr.mxu0 0.0
        %3049 = vmatpush1.msra.mxu0 %v2321
        %3050 = vmatprep.subr.mxu0 0.0
        %3051 = vmatpush1.msra.mxu0 %v2322
        %3052 = vmatprep.subr.mxu0 0.0
        %3053 = vmatpush1.msra.mxu0 %v2323
        %3054 = vmatprep.subr.mxu0 0.0
        %3055 = vmatpush1.msra.mxu0 %v2324
        %3056 = vmatprep.subr.mxu0 0.0
        %3057 = vmatpush1.msra.mxu0 %v2325
        %3058 = vmatprep.subr.mxu0 0.0
        %3059 = vmatpush1.msra.mxu0 %v2326
        %3060 = vmatprep.subr.mxu0 0.0
        %3061 = vmatpush1.msra.mxu0 %v2327
        %3062 = vmatprep.subr.mxu0 0.0
        %3063 = vmatpush1.msra.mxu0 %v2328
        %3064 = vmatprep.subr.mxu0 0.0
        %3065 = vmatpush1.msra.mxu0 %v2329
        %3066 = vmatprep.subr.mxu0 0.0
        %3067 = vmatpush1.msra.mxu0 %v2330
        %3068 = vmatprep.subr.mxu0 0.0
        %3069 = vmatpush1.msra.mxu0 %v2331
        %3070 = vmatprep.subr.mxu0 0.0
        %3071 = vmatpush1.msra.mxu0 %v2332
        %3072 = vmatprep.subr.mxu0 0.0
        %3073 = vmatpush1.msra.mxu0 %v2333
        %3074 = vmatprep.subr.mxu0 0.0
        %3075 = vmatpush1.msra.mxu0 %v2334
        %3076 = vmatprep.mubr.f32.mxu0 %v2122
        %3077 = vmatmul.mubr.f32.gmra.mrb[0].mxu0 %v2121
        %v3078 = vpop.f32.mrb[0].mxu0
        %v3079 = vadd.f32 %v3009, %v3078
        %v3080 = vpop.f32.mrb[0].mxu0
        %3081 = vdwg.mxu0
        %3082 = vmatprep.subr.mxu0 0.0
        %3083 = vmatpush1.msra.mxu0 %v2335
        %3084 = vmatprep.subr.mxu0 0.0
        %3085 = vmatpush1.msra.mxu0 %v2336
        %3086 = vmatprep.subr.mxu0 0.0
        %3087 = vmatpush1.msra.mxu0 %v2337
        %3088 = vmatprep.subr.mxu0 0.0
        %3089 = vmatpush1.msra.mxu0 %v2338
        %3090 = vmatprep.subr.mxu0 0.0
        %3091 = vmatpush1.msra.mxu0 %v2339
        %3092 = vmatprep.subr.mxu0 0.0
        %3093 = vmatpush1.msra.mxu0 %v2340
        %3094 = vmatprep.subr.mxu0 0.0
        %3095 = vmatpush1.msra.mxu0 %v2341
        %3096 = vmatprep.subr.mxu0 0.0
        %3097 = vmatpush1.msra.mxu0 %v2342
        %3098 = vmatprep.subr.mxu0 0.0
        %3099 = vmatpush1.msra.mxu0 %v2343
        %3100 = vmatprep.subr.mxu0 0.0
        %3101 = vmatpush1.msra.mxu0 %v2344
        %3102 = vmatprep.subr.mxu0 0.0
        %3103 = vmatpush1.msra.mxu0 %v2345
        %3104 = vmatprep.subr.mxu0 0.0
        %3105 = vmatpush1.msra.mxu0 %v2346
        %3106 = vmatprep.subr.mxu0 0.0
        %3107 = vmatpush1.msra.mxu0 %v2347
        %3108 = vmatprep.subr.mxu0 0.0
        %3109 = vmatpush1.msra.mxu0 %v2348
        %3110 = vmatprep.subr.mxu0 0.0
        %3111 = vmatpush1.msra.mxu0 %v2349
        %3112 = vmatprep.subr.mxu0 0.0
        %3113 = vmatpush1.msra.mxu0 %v2350
        %3114 = vmatprep.subr.mxu0 0.0
        %3115 = vmatpush1.msra.mxu0 %v2351
        %3116 = vmatprep.subr.mxu0 0.0
        %3117 = vmatpush1.msra.mxu0 %v2352
        %3118 = vmatprep.subr.mxu0 0.0
        %3119 = vmatpush1.msra.mxu0 %v2353
        %3120 = vmatprep.subr.mxu0 0.0
        %3121 = vmatpush1.msra.mxu0 %v2354
        %3122 = vmatprep.subr.mxu0 0.0
        %3123 = vmatpush1.msra.mxu0 %v2355
        %3124 = vmatprep.subr.mxu0 0.0
        %3125 = vmatpush1.msra.mxu0 %v2356
        %3126 = vmatprep.subr.mxu0 0.0
        %3127 = vmatpush1.msra.mxu0 %v2357
        %3128 = vmatprep.subr.mxu0 0.0
        %3129 = vmatpush1.msra.mxu0 %v2358
        %3130 = vmatprep.subr.mxu0 0.0
        %3131 = vmatpush1.msra.mxu0 %v2359
        %3132 = vmatprep.subr.mxu0 0.0
        %3133 = vmatpush1.msra.mxu0 %v2360
        %3134 = vmatprep.subr.mxu0 0.0
        %3135 = vmatpush1.msra.mxu0 %v2361
        %3136 = vmatprep.subr.mxu0 0.0
        %3137 = vmatpush1.msra.mxu0 %v2362
        %3138 = vmatprep.subr.mxu0 0.0
        %3139 = vmatpush1.msra.mxu0 %v2363
        %3140 = vmatprep.subr.mxu0 0.0
        %3141 = vmatpush1.msra.mxu0 %v2364
        %3142 = vmatprep.subr.mxu0 0.0
        %3143 = vmatpush1.msra.mxu0 %v2365
        %3144 = vmatprep.subr.mxu0 0.0
        %3145 = vmatpush1.msra.mxu0 %v2366
        %3146 = vmatprep.mubr.f32.mxu0 %v2124
        %3147 = vmatmul.mubr.f32.gmra.mrb[0].mxu0 %v2123
        %v3148 = vpop.f32.mrb[0].mxu0
        %v3149 = vadd.f32 %v3079, %v3148
        %v3150 = vpop.f32.mrb[0].mxu0
        %3151 = vdwg.mxu0
        %3152 = vmatprep.subr.mxu0 0.0
        %3153 = vmatpush1.msra.mxu0 %v2367
        %3154 = vmatprep.subr.mxu0 0.0
        %3155 = vmatpush1.msra.mxu0 %v2368
        %3156 = vmatprep.subr.mxu0 0.0
        %3157 = vmatpush1.msra.mxu0 %v2369
        %3158 = vmatprep.subr.mxu0 0.0
        %3159 = vmatpush1.msra.mxu0 %v2370
        %3160 = vmatprep.subr.mxu0 0.0
        %3161 = vmatpush1.msra.mxu0 %v2371
        %3162 = vmatprep.subr.mxu0 0.0
        %3163 = vmatpush1.msra.mxu0 %v2372
        %3164 = vmatprep.subr.mxu0 0.0
        %3165 = vmatpush1.msra.mxu0 %v2373
        %3166 = vmatprep.subr.mxu0 0.0
        %3167 = vmatpush1.msra.mxu0 %v2374
        %3168 = vmatprep.subr.mxu0 0.0
        %3169 = vmatpush1.msra.mxu0 %v2375
        %3170 = vmatprep.subr.mxu0 0.0
        %3171 = vmatpush1.msra.mxu0 %v2376
        %3172 = vmatprep.subr.mxu0 0.0
        %3173 = vmatpush1.msra.mxu0 %v2377
        %3174 = vmatprep.subr.mxu0 0.0
        %3175 = vmatpush1.msra.mxu0 %v2378
        %3176 = vmatprep.subr.mxu0 0.0
        %3177 = vmatpush1.msra.mxu0 %v2379
        %3178 = vmatprep.subr.mxu0 0.0
        %3179 = vmatpush1.msra.mxu0 %v2380
        %3180 = vmatprep.subr.mxu0 0.0
        %3181 = vmatpush1.msra.mxu0 %v2381
        %3182 = vmatprep.subr.mxu0 0.0
        %3183 = vmatpush1.msra.mxu0 %v2382
        %3184 = vmatprep.subr.mxu0 0.0
        %3185 = vmatpush1.msra.mxu0 %v2383
        %3186 = vmatprep.subr.mxu0 0.0
        %3187 = vmatpush1.msra.mxu0 %v2384
        %3188 = vmatprep.subr.mxu0 0.0
        %3189 = vmatpush1.msra.mxu0 %v2385
        %3190 = vmatprep.subr.mxu0 0.0
        %3191 = vmatpush1.msra.mxu0 %v2386
        %3192 = vmatprep.subr.mxu0 0.0
        %3193 = vmatpush1.msra.mxu0 %v2387
        %3194 = vmatprep.subr.mxu0 0.0
        %3195 = vmatpush1.msra.mxu0 %v2388
        %3196 = vmatprep.subr.mxu0 0.0
        %3197 = vmatpush1.msra.mxu0 %v2389
        %3198 = vmatprep.subr.mxu0 0.0
        %3199 = vmatpush1.msra.mxu0 %v2390
        %3200 = vmatprep.subr.mxu0 0.0
        %3201 = vmatpush1.msra.mxu0 %v2391
        %3202 = vmatprep.subr.mxu0 0.0
        %3203 = vmatpush1.msra.mxu0 %v2392
        %3204 = vmatprep.subr.mxu0 0.0
        %3205 = vmatpush1.msra.mxu0 %v2393
        %3206 = vmatprep.subr.mxu0 0.0
        %3207 = vmatpush1.msra.mxu0 %v2394
        %3208 = vmatprep.subr.mxu0 0.0
        %3209 = vmatpush1.msra.mxu0 %v2395
        %3210 = vmatprep.subr.mxu0 0.0
        %3211 = vmatpush1.msra.mxu0 %v2396
        %3212 = vmatprep.subr.mxu0 0.0
        %3213 = vmatpush1.msra.mxu0 %v2397
        %3214 = vmatprep.subr.mxu0 0.0
        %3215 = vmatpush1.msra.mxu0 %v2398
        %3216 = vmatprep.mubr.f32.mxu0 %v2126
        %3217 = vmatmul.mubr.f32.gmra.mrb[0].mxu0 %v2125
        %v3218 = vpop.f32.mrb[0].mxu0
        %v3219 = vadd.f32 %v3149, %v3218
        %v3220 = vpop.f32.mrb[0].mxu0
        %3221 = vdwg.mxu0
        %3222 = vmatprep.subr.mxu0 0.0
        %3223 = vmatpush1.msra.mxu0 %v2399
        %3224 = vmatprep.subr.mxu0 0.0
        %3225 = vmatpush1.msra.mxu0 %v2400
        %3226 = vmatprep.subr.mxu0 0.0
        %3227 = vmatpush1.msra.mxu0 %v2401
        %3228 = vmatprep.subr.mxu0 0.0
        %3229 = vmatpush1.msra.mxu0 %v2402
        %3230 = vmatprep.subr.mxu0 0.0
        %3231 = vmatpush1.msra.mxu0 %v2403
        %3232 = vmatprep.subr.mxu0 0.0
        %3233 = vmatpush1.msra.mxu0 %v2404
        %3234 = vmatprep.subr.mxu0 0.0
        %3235 = vmatpush1.msra.mxu0 %v2405
        %3236 = vmatprep.subr.mxu0 0.0
        %3237 = vmatpush1.msra.mxu0 %v2406
        %3238 = vmatprep.subr.mxu0 0.0
        %3239 = vmatpush1.msra.mxu0 %v2407
        %3240 = vmatprep.subr.mxu0 0.0
        %3241 = vmatpush1.msra.mxu0 %v2408
        %3242 = vmatprep.subr.mxu0 0.0
        %3243 = vmatpush1.msra.mxu0 %v2409
        %3244 = vmatprep.subr.mxu0 0.0
        %3245 = vmatpush1.msra.mxu0 %v2410
        %3246 = vmatprep.subr.mxu0 0.0
        %3247 = vmatpush1.msra.mxu0 %v2411
        %3248 = vmatprep.subr.mxu0 0.0
        %3249 = vmatpush1.msra.mxu0 %v2412
        %3250 = vmatprep.subr.mxu0 0.0
        %3251 = vmatpush1.msra.mxu0 %v2413
        %3252 = vmatprep.subr.mxu0 0.0
        %3253 = vmatpush1.msra.mxu0 %v2414
        %3254 = vmatprep.subr.mxu0 0.0
        %3255 = vmatpush1.msra.mxu0 %v2415
        %3256 = vmatprep.subr.mxu0 0.0
        %3257 = vmatpush1.msra.mxu0 %v2416
        %3258 = vmatprep.subr.mxu0 0.0
        %3259 = vmatpush1.msra.mxu0 %v2417
        %3260 = vmatprep.subr.mxu0 0.0
        %3261 = vmatpush1.msra.mxu0 %v2418
        %3262 = vmatprep.subr.mxu0 0.0
        %3263 = vmatpush1.msra.mxu0 %v2419
        %3264 = vmatprep.subr.mxu0 0.0
        %3265 = vmatpush1.msra.mxu0 %v2420
        %3266 = vmatprep.subr.mxu0 0.0
        %3267 = vmatpush1.msra.mxu0 %v2421
        %3268 = vmatprep.subr.mxu0 0.0
        %3269 = vmatpush1.msra.mxu0 %v2422
        %3270 = vmatprep.subr.mxu0 0.0
        %3271 = vmatpush1.msra.mxu0 %v2423
        %3272 = vmatprep.subr.mxu0 0.0
        %3273 = vmatpush1.msra.mxu0 %v2424
        %3274 = vmatprep.subr.mxu0 0.0
        %3275 = vmatpush1.msra.mxu0 %v2425
        %3276 = vmatprep.subr.mxu0 0.0
        %3277 = vmatpush1.msra.mxu0 %v2426
        %3278 = vmatprep.subr.mxu0 0.0
        %3279 = vmatpush1.msra.mxu0 %v2427
        %3280 = vmatprep.subr.mxu0 0.0
        %3281 = vmatpush1.msra.mxu0 %v2428
        %3282 = vmatprep.subr.mxu0 0.0
        %3283 = vmatpush1.msra.mxu0 %v2429
        %3284 = vmatprep.subr.mxu0 0.0
        %3285 = vmatpush1.msra.mxu0 %v2430
        %3286 = vmatprep.mubr.f32.mxu0 %v2128
        %3287 = vmatmul.mubr.f32.gmra.mrb[0].mxu0 %v2127
        %v3288 = vpop.f32.mrb[0].mxu0
        %v3289 = vadd.f32 %v3219, %v3288
        %v3290 = vpop.f32.mrb[0].mxu0
        %3291 = vdwg.mxu0
        %3292 = vmatprep.subr.mxu0 0.0
        %3293 = vmatpush1.msra.mxu0 %v2431
        %3294 = vmatprep.subr.mxu0 0.0
        %3295 = vmatpush1.msra.mxu0 %v2432
        %3296 = vmatprep.subr.mxu0 0.0
        %3297 = vmatpush1.msra.mxu0 %v2433
        %3298 = vmatprep.subr.mxu0 0.0
        %3299 = vmatpush1.msra.mxu0 %v2434
        %3300 = vmatprep.subr.mxu0 0.0
        %3301 = vmatpush1.msra.mxu0 %v2435
        %3302 = vmatprep.subr.mxu0 0.0
        %3303 = vmatpush1.msra.mxu0 %v2436
        %3304 = vmatprep.subr.mxu0 0.0
        %3305 = vmatpush1.msra.mxu0 %v2437
        %3306 = vmatprep.subr.mxu0 0.0
        %3307 = vmatpush1.msra.mxu0 %v2438
        %3308 = vmatprep.subr.mxu0 0.0
        %3309 = vmatpush1.msra.mxu0 %v2439
        %3310 = vmatprep.subr.mxu0 0.0
        %3311 = vmatpush1.msra.mxu0 %v2440
        %3312 = vmatprep.subr.mxu0 0.0
        %3313 = vmatpush1.msra.mxu0 %v2441
        %3314 = vmatprep.subr.mxu0 0.0
        %3315 = vmatpush1.msra.mxu0 %v2442
        %3316 = vmatprep.subr.mxu0 0.0
        %3317 = vmatpush1.msra.mxu0 %v2443
        %3318 = vmatprep.subr.mxu0 0.0
        %3319 = vmatpush1.msra.mxu0 %v2444
        %3320 = vmatprep.subr.mxu0 0.0
        %3321 = vmatpush1.msra.mxu0 %v2445
        %3322 = vmatprep.subr.mxu0 0.0
        %3323 = vmatpush1.msra.mxu0 %v2446
        %3324 = vmatprep.subr.mxu0 0.0
        %3325 = vmatpush1.msra.mxu0 %v2447
        %3326 = vmatprep.subr.mxu0 0.0
        %3327 = vmatpush1.msra.mxu0 %v2448
        %3328 = vmatprep.subr.mxu0 0.0
        %3329 = vmatpush1.msra.mxu0 %v2449
        %3330 = vmatprep.subr.mxu0 0.0
        %3331 = vmatpush1.msra.mxu0 %v2450
        %3332 = vmatprep.subr.mxu0 0.0
        %3333 = vmatpush1.msra.mxu0 %v2451
        %3334 = vmatprep.subr.mxu0 0.0
        %3335 = vmatpush1.msra.mxu0 %v2452
        %3336 = vmatprep.subr.mxu0 0.0
        %3337 = vmatpush1.msra.mxu0 %v2453
        %3338 = vmatprep.subr.mxu0 0.0
        %3339 = vmatpush1.msra.mxu0 %v2454
        %3340 = vmatprep.subr.mxu0 0.0
        %3341 = vmatpush1.msra.mxu0 %v2455
        %3342 = vmatprep.subr.mxu0 0.0
        %3343 = vmatpush1.msra.mxu0 %v2456
        %3344 = vmatprep.subr.mxu0 0.0
        %3345 = vmatpush1.msra.mxu0 %v2457
        %3346 = vmatprep.subr.mxu0 0.0
        %3347 = vmatpush1.msra.mxu0 %v2458
        %3348 = vmatprep.subr.mxu0 0.0
        %3349 = vmatpush1.msra.mxu0 %v2459
        %3350 = vmatprep.subr.mxu0 0.0
        %3351 = vmatpush1.msra.mxu0 %v2460
        %3352 = vmatprep.subr.mxu0 0.0
        %3353 = vmatpush1.msra.mxu0 %v2461
        %3354 = vmatprep.subr.mxu0 0.0
        %3355 = vmatpush1.msra.mxu0 %v2462
        %3356 = vmatprep.mubr.f32.mxu0 %v2130
        %3357 = vmatmul.mubr.f32.gmra.mrb[0].mxu0 %v2129
        %v3358 = vpop.f32.mrb[0].mxu0
        %v3359 = vadd.f32 %v3289, %v3358
        %v3360 = vpop.f32.mrb[0].mxu0
        %3361 = vdwg.mxu0
        %3362 = vmatprep.subr.mxu0 0.0
        %3363 = vmatpush1.msra.mxu0 %v2463
        %3364 = vmatprep.subr.mxu0 0.0
        %3365 = vmatpush1.msra.mxu0 %v2464
        %3366 = vmatprep.subr.mxu0 0.0
        %3367 = vmatpush1.msra.mxu0 %v2465
        %3368 = vmatprep.subr.mxu0 0.0
        %3369 = vmatpush1.msra.mxu0 %v2466
        %3370 = vmatprep.subr.mxu0 0.0
        %3371 = vmatpush1.msra.mxu0 %v2467
        %3372 = vmatprep.subr.mxu0 0.0
        %3373 = vmatpush1.msra.mxu0 %v2468
        %3374 = vmatprep.subr.mxu0 0.0
        %3375 = vmatpush1.msra.mxu0 %v2469
        %3376 = vmatprep.subr.mxu0 0.0
        %3377 = vmatpush1.msra.mxu0 %v2470
        %3378 = vmatprep.subr.mxu0 0.0
        %3379 = vmatpush1.msra.mxu0 %v2471
        %3380 = vmatprep.subr.mxu0 0.0
        %3381 = vmatpush1.msra.mxu0 %v2472
        %3382 = vmatprep.subr.mxu0 0.0
        %3383 = vmatpush1.msra.mxu0 %v2473
        %3384 = vmatprep.subr.mxu0 0.0
        %3385 = vmatpush1.msra.mxu0 %v2474
        %3386 = vmatprep.subr.mxu0 0.0
        %3387 = vmatpush1.msra.mxu0 %v2475
        %3388 = vmatprep.subr.mxu0 0.0
        %3389 = vmatpush1.msra.mxu0 %v2476
        %3390 = vmatprep.subr.mxu0 0.0
        %3391 = vmatpush1.msra.mxu0 %v2477
        %3392 = vmatprep.subr.mxu0 0.0
        %3393 = vmatpush1.msra.mxu0 %v2478
        %3394 = vmatprep.subr.mxu0 0.0
        %3395 = vmatpush1.msra.mxu0 %v2479
        %3396 = vmatprep.subr.mxu0 0.0
        %3397 = vmatpush1.msra.mxu0 %v2480
        %3398 = vmatprep.subr.mxu0 0.0
        %3399 = vmatpush1.msra.mxu0 %v2481
        %3400 = vmatprep.subr.mxu0 0.0
        %3401 = vmatpush1.msra.mxu0 %v2482
        %3402 = vmatprep.subr.mxu0 0.0
        %3403 = vmatpush1.msra.mxu0 %v2483
        %3404 = vmatprep.subr.mxu0 0.0
        %3405 = vmatpush1.msra.mxu0 %v2484
        %3406 = vmatprep.subr.mxu0 0.0
        %3407 = vmatpush1.msra.mxu0 %v2485
        %3408 = vmatprep.subr.mxu0 0.0
        %3409 = vmatpush1.msra.mxu0 %v2486
        %3410 = vmatprep.subr.mxu0 0.0
        %3411 = vmatpush1.msra.mxu0 %v2487
        %3412 = vmatprep.subr.mxu0 0.0
        %3413 = vmatpush1.msra.mxu0 %v2488
        %3414 = vmatprep.subr.mxu0 0.0
        %3415 = vmatpush1.msra.mxu0 %v2489
        %3416 = vmatprep.subr.mxu0 0.0
        %3417 = vmatpush1.msra.mxu0 %v2490
        %3418 = vmatprep.subr.mxu0 0.0
        %3419 = vmatpush1.msra.mxu0 %v2491
        %3420 = vmatprep.subr.mxu0 0.0
        %3421 = vmatpush1.msra.mxu0 %v2492
        %3422 = vmatprep.subr.mxu0 0.0
        %3423 = vmatpush1.msra.mxu0 %v2493
        %3424 = vmatprep.subr.mxu0 0.0
        %3425 = vmatpush1.msra.mxu0 %v2494
        %3426 = vmatprep.mubr.f32.mxu0 %v2132
        %3427 = vmatmul.mubr.f32.gmra.mrb[0].mxu0 %v2131
        %v3428 = vpop.f32.mrb[0].mxu0
        %v3429 = vadd.f32 %v3359, %v3428
        %v3430 = vpop.f32.mrb[0].mxu0
        %3431 = vdwg.mxu0
        %3432 = vmatprep.subr.mxu0 0.0
        %3433 = vmatpush1.msra.mxu0 %v2495
        %3434 = vmatprep.subr.mxu0 0.0
        %3435 = vmatpush1.msra.mxu0 %v2496
        %3436 = vmatprep.subr.mxu0 0.0
        %3437 = vmatpush1.msra.mxu0 %v2497
        %3438 = vmatprep.subr.mxu0 0.0
        %3439 = vmatpush1.msra.mxu0 %v2498
        %3440 = vmatprep.subr.mxu0 0.0
        %3441 = vmatpush1.msra.mxu0 %v2499
        %3442 = vmatprep.subr.mxu0 0.0
        %3443 = vmatpush1.msra.mxu0 %v2500
        %3444 = vmatprep.subr.mxu0 0.0
        %3445 = vmatpush1.msra.mxu0 %v2501
        %3446 = vmatprep.subr.mxu0 0.0
        %3447 = vmatpush1.msra.mxu0 %v2502
        %3448 = vmatprep.subr.mxu0 0.0
        %3449 = vmatpush1.msra.mxu0 %v2503
        %3450 = vmatprep.subr.mxu0 0.0
        %3451 = vmatpush1.msra.mxu0 %v2504
        %3452 = vmatprep.subr.mxu0 0.0
        %3453 = vmatpush1.msra.mxu0 %v2505
        %3454 = vmatprep.subr.mxu0 0.0
        %3455 = vmatpush1.msra.mxu0 %v2506
        %3456 = vmatprep.subr.mxu0 0.0
        %3457 = vmatpush1.msra.mxu0 %v2507
        %3458 = vmatprep.subr.mxu0 0.0
        %3459 = vmatpush1.msra.mxu0 %v2508
        %3460 = vmatprep.subr.mxu0 0.0
        %3461 = vmatpush1.msra.mxu0 %v2509
        %3462 = vmatprep.subr.mxu0 0.0
        %3463 = vmatpush1.msra.mxu0 %v2510
        %3464 = vmatprep.subr.mxu0 0.0
        %3465 = vmatpush1.msra.mxu0 %v2511
        %3466 = vmatprep.subr.mxu0 0.0
        %3467 = vmatpush1.msra.mxu0 %v2512
        %3468 = vmatprep.subr.mxu0 0.0
        %3469 = vmatpush1.msra.mxu0 %v2513
        %3470 = vmatprep.subr.mxu0 0.0
        %3471 = vmatpush1.msra.mxu0 %v2514
        %3472 = vmatprep.subr.mxu0 0.0
        %3473 = vmatpush1.msra.mxu0 %v2515
        %3474 = vmatprep.subr.mxu0 0.0
        %3475 = vmatpush1.msra.mxu0 %v2516
        %3476 = vmatprep.subr.mxu0 0.0
        %3477 = vmatpush1.msra.mxu0 %v2517
        %3478 = vmatprep.subr.mxu0 0.0
        %3479 = vmatpush1.msra.mxu0 %v2518
        %3480 = vmatprep.subr.mxu0 0.0
        %3481 = vmatpush1.msra.mxu0 %v2519
        %3482 = vmatprep.subr.mxu0 0.0
        %3483 = vmatpush1.msra.mxu0 %v2520
        %3484 = vmatprep.subr.mxu0 0.0
        %3485 = vmatpush1.msra.mxu0 %v2521
        %3486 = vmatprep.subr.mxu0 0.0
        %3487 = vmatpush1.msra.mxu0 %v2522
        %3488 = vmatprep.subr.mxu0 0.0
        %3489 = vmatpush1.msra.mxu0 %v2523
        %3490 = vmatprep.subr.mxu0 0.0
        %3491 = vmatpush1.msra.mxu0 %v2524
        %3492 = vmatprep.subr.mxu0 0.0
        %3493 = vmatpush1.msra.mxu0 %v2525
        %3494 = vmatprep.subr.mxu0 0.0
        %3495 = vmatpush1.msra.mxu0 %v2526
        %3496 = vmatprep.mubr.f32.mxu0 %v2134
        %3497 = vmatmul.mubr.f32.gmra.mrb[0].mxu0 %v2133
        %v3498 = vpop.f32.mrb[0].mxu0
        %v3499 = vadd.f32 %v3429, %v3498
        %v3500 = vpop.f32.mrb[0].mxu0
        %3501 = vdwg.mxu0
        %3502 = vmatprep.subr.mxu0 0.0
        %3503 = vmatpush1.msra.mxu0 %v2527
        %3504 = vmatprep.subr.mxu0 0.0
        %3505 = vmatpush1.msra.mxu0 %v2528
        %3506 = vmatprep.subr.mxu0 0.0
        %3507 = vmatpush1.msra.mxu0 %v2529
        %3508 = vmatprep.subr.mxu0 0.0
        %3509 = vmatpush1.msra.mxu0 %v2530
        %3510 = vmatprep.subr.mxu0 0.0
        %3511 = vmatpush1.msra.mxu0 %v2531
        %3512 = vmatprep.subr.mxu0 0.0
        %3513 = vmatpush1.msra.mxu0 %v2532
        %3514 = vmatprep.subr.mxu0 0.0
        %3515 = vmatpush1.msra.mxu0 %v2533
        %3516 = vmatprep.subr.mxu0 0.0
        %3517 = vmatpush1.msra.mxu0 %v2534
        %3518 = vmatprep.subr.mxu0 0.0
        %3519 = vmatpush1.msra.mxu0 %v2535
        %3520 = vmatprep.subr.mxu0 0.0
        %3521 = vmatpush1.msra.mxu0 %v2536
        %3522 = vmatprep.subr.mxu0 0.0
        %3523 = vmatpush1.msra.mxu0 %v2537
        %3524 = vmatprep.subr.mxu0 0.0
        %3525 = vmatpush1.msra.mxu0 %v2538
        %3526 = vmatprep.subr.mxu0 0.0
        %3527 = vmatpush1.msra.mxu0 %v2539
        %3528 = vmatprep.subr.mxu0 0.0
        %3529 = vmatpush1.msra.mxu0 %v2540
        %3530 = vmatprep.subr.mxu0 0.0
        %3531 = vmatpush1.msra.mxu0 %v2541
        %3532 = vmatprep.subr.mxu0 0.0
        %3533 = vmatpush1.msra.mxu0 %v2542
        %3534 = vmatprep.subr.mxu0 0.0
        %3535 = vmatpush1.msra.mxu0 %v2543
        %3536 = vmatprep.subr.mxu0 0.0
        %3537 = vmatpush1.msra.mxu0 %v2544
        %3538 = vmatprep.subr.mxu0 0.0
        %3539 = vmatpush1.msra.mxu0 %v2545
        %3540 = vmatprep.subr.mxu0 0.0
        %3541 = vmatpush1.msra.mxu0 %v2546
        %3542 = vmatprep.subr.mxu0 0.0
        %3543 = vmatpush1.msra.mxu0 %v2547
        %3544 = vmatprep.subr.mxu0 0.0
        %3545 = vmatpush1.msra.mxu0 %v2548
        %3546 = vmatprep.subr.mxu0 0.0
        %3547 = vmatpush1.msra.mxu0 %v2549
        %3548 = vmatprep.subr.mxu0 0.0
        %3549 = vmatpush1.msra.mxu0 %v2550
        %3550 = vmatprep.subr.mxu0 0.0
        %3551 = vmatpush1.msra.mxu0 %v2551
        %3552 = vmatprep.subr.mxu0 0.0
        %3553 = vmatpush1.msra.mxu0 %v2552
        %3554 = vmatprep.subr.mxu0 0.0
        %3555 = vmatpush1.msra.mxu0 %v2553
        %3556 = vmatprep.subr.mxu0 0.0
        %3557 = vmatpush1.msra.mxu0 %v2554
        %3558 = vmatprep.subr.mxu0 0.0
        %3559 = vmatpush1.msra.mxu0 %v2555
        %3560 = vmatprep.subr.mxu0 0.0
        %3561 = vmatpush1.msra.mxu0 %v2556
        %3562 = vmatprep.subr.mxu0 0.0
        %3563 = vmatpush1.msra.mxu0 %v2557
        %3564 = vmatprep.subr.mxu0 0.0
        %3565 = vmatpush1.msra.mxu0 %v2558
        %3566 = vmatprep.mubr.f32.mxu0 %v2136
        %3567 = vmatmul.mubr.f32.gmra.mrb[0].mxu0 %v2135
        %v3568 = vpop.f32.mrb[0].mxu0
        %v3569 = vadd.f32 %v3499, %v3568
        %v3570 = vpop.f32.mrb[0].mxu0
        %3571 = vdwg.mxu0
        %3572 = vmatprep.subr.mxu0 0.0
        %3573 = vmatpush1.msra.mxu0 %v2559
        %3574 = vmatprep.subr.mxu0 0.0
        %3575 = vmatpush1.msra.mxu0 %v2560
        %3576 = vmatprep.subr.mxu0 0.0
        %3577 = vmatpush1.msra.mxu0 %v2561
        %3578 = vmatprep.subr.mxu0 0.0
        %3579 = vmatpush1.msra.mxu0 %v2562
        %3580 = vmatprep.subr.mxu0 0.0
        %3581 = vmatpush1.msra.mxu0 %v2563
        %3582 = vmatprep.subr.mxu0 0.0
        %3583 = vmatpush1.msra.mxu0 %v2564
        %3584 = vmatprep.subr.mxu0 0.0
        %3585 = vmatpush1.msra.mxu0 %v2565
        %3586 = vmatprep.subr.mxu0 0.0
        %3587 = vmatpush1.msra.mxu0 %v2566
        %3588 = vmatprep.subr.mxu0 0.0
        %3589 = vmatpush1.msra.mxu0 %v2567
        %3590 = vmatprep.subr.mxu0 0.0
        %3591 = vmatpush1.msra.mxu0 %v2568
        %3592 = vmatprep.subr.mxu0 0.0
        %3593 = vmatpush1.msra.mxu0 %v2569
        %3594 = vmatprep.subr.mxu0 0.0
        %3595 = vmatpush1.msra.mxu0 %v2570
        %3596 = vmatprep.subr.mxu0 0.0
        %3597 = vmatpush1.msra.mxu0 %v2571
        %3598 = vmatprep.subr.mxu0 0.0
        %3599 = vmatpush1.msra.mxu0 %v2572
        %3600 = vmatprep.subr.mxu0 0.0
        %3601 = vmatpush1.msra.mxu0 %v2573
        %3602 = vmatprep.subr.mxu0 0.0
        %3603 = vmatpush1.msra.mxu0 %v2574
        %3604 = vmatprep.subr.mxu0 0.0
        %3605 = vmatpush1.msra.mxu0 %v2575
        %3606 = vmatprep.subr.mxu0 0.0
        %3607 = vmatpush1.msra.mxu0 %v2576
        %3608 = vmatprep.subr.mxu0 0.0
        %3609 = vmatpush1.msra.mxu0 %v2577
        %3610 = vmatprep.subr.mxu0 0.0
        %3611 = vmatpush1.msra.mxu0 %v2578
        %3612 = vmatprep.subr.mxu0 0.0
        %3613 = vmatpush1.msra.mxu0 %v2579
        %3614 = vmatprep.subr.mxu0 0.0
        %3615 = vmatpush1.msra.mxu0 %v2580
        %3616 = vmatprep.subr.mxu0 0.0
        %3617 = vmatpush1.msra.mxu0 %v2581
        %3618 = vmatprep.subr.mxu0 0.0
        %3619 = vmatpush1.msra.mxu0 %v2582
        %3620 = vmatprep.subr.mxu0 0.0
        %3621 = vmatpush1.msra.mxu0 %v2583
        %3622 = vmatprep.subr.mxu0 0.0
        %3623 = vmatpush1.msra.mxu0 %v2584
        %3624 = vmatprep.subr.mxu0 0.0
        %3625 = vmatpush1.msra.mxu0 %v2585
        %3626 = vmatprep.subr.mxu0 0.0
        %3627 = vmatpush1.msra.mxu0 %v2586
        %3628 = vmatprep.subr.mxu0 0.0
        %3629 = vmatpush1.msra.mxu0 %v2587
        %3630 = vmatprep.subr.mxu0 0.0
        %3631 = vmatpush1.msra.mxu0 %v2588
        %3632 = vmatprep.subr.mxu0 0.0
        %3633 = vmatpush1.msra.mxu0 %v2589
        %3634 = vmatprep.subr.mxu0 0.0
        %3635 = vmatpush1.msra.mxu0 %v2590
        %3636 = vmatprep.mubr.f32.mxu0 %v2138
        %3637 = vmatmul.mubr.f32.gmra.mrb[0].mxu0 %v2137
        %v3638 = vpop.f32.mrb[0].mxu0
        %v3639 = vadd.f32 %v3569, %v3638
        %v3640 = vpop.f32.mrb[0].mxu0
        %3641 = vdwg.mxu0
        %3642 = vmatprep.subr.mxu0 0.0
        %3643 = vmatpush1.msra.mxu0 %v2591
        %3644 = vmatprep.subr.mxu0 0.0
        %3645 = vmatpush1.msra.mxu0 %v2592
        %3646 = vmatprep.subr.mxu0 0.0
        %3647 = vmatpush1.msra.mxu0 %v2593
        %3648 = vmatprep.subr.mxu0 0.0
        %3649 = vmatpush1.msra.mxu0 %v2594
        %3650 = vmatprep.subr.mxu0 0.0
        %3651 = vmatpush1.msra.mxu0 %v2595
        %3652 = vmatprep.subr.mxu0 0.0
        %3653 = vmatpush1.msra.mxu0 %v2596
        %3654 = vmatprep.subr.mxu0 0.0
        %3655 = vmatpush1.msra.mxu0 %v2597
        %3656 = vmatprep.subr.mxu0 0.0
        %3657 = vmatpush1.msra.mxu0 %v2598
        %3658 = vmatprep.subr.mxu0 0.0
        %3659 = vmatpush1.msra.mxu0 %v2599
        %3660 = vmatprep.subr.mxu0 0.0
        %3661 = vmatpush1.msra.mxu0 %v2600
        %3662 = vmatprep.subr.mxu0 0.0
        %3663 = vmatpush1.msra.mxu0 %v2601
        %3664 = vmatprep.subr.mxu0 0.0
        %3665 = vmatpush1.msra.mxu0 %v2602
        %3666 = vmatprep.subr.mxu0 0.0
        %3667 = vmatpush1.msra.mxu0 %v2603
        %3668 = vmatprep.subr.mxu0 0.0
        %3669 = vmatpush1.msra.mxu0 %v2604
        %3670 = vmatprep.subr.mxu0 0.0
        %3671 = vmatpush1.msra.mxu0 %v2605
        %3672 = vmatprep.subr.mxu0 0.0
        %3673 = vmatpush1.msra.mxu0 %v2606
        %3674 = vmatprep.subr.mxu0 0.0
        %3675 = vmatpush1.msra.mxu0 %v2607
        %3676 = vmatprep.subr.mxu0 0.0
        %3677 = vmatpush1.msra.mxu0 %v2608
        %3678 = vmatprep.subr.mxu0 0.0
        %3679 = vmatpush1.msra.mxu0 %v2609
        %3680 = vmatprep.subr.mxu0 0.0
        %3681 = vmatpush1.msra.mxu0 %v2610
        %3682 = vmatprep.subr.mxu0 0.0
        %3683 = vmatpush1.msra.mxu0 %v2611
        %3684 = vmatprep.subr.mxu0 0.0
        %3685 = vmatpush1.msra.mxu0 %v2612
        %3686 = vmatprep.subr.mxu0 0.0
        %3687 = vmatpush1.msra.mxu0 %v2613
        %3688 = vmatprep.subr.mxu0 0.0
        %3689 = vmatpush1.msra.mxu0 %v2614
        %3690 = vmatprep.subr.mxu0 0.0
        %3691 = vmatpush1.msra.mxu0 %v2615
        %3692 = vmatprep.subr.mxu0 0.0
        %3693 = vmatpush1.msra.mxu0 %v2616
        %3694 = vmatprep.subr.mxu0 0.0
        %3695 = vmatpush1.msra.mxu0 %v2617
        %3696 = vmatprep.subr.mxu0 0.0
        %3697 = vmatpush1.msra.mxu0 %v2618
        %3698 = vmatprep.subr.mxu0 0.0
        %3699 = vmatpush1.msra.mxu0 %v2619
        %3700 = vmatprep.subr.mxu0 0.0
        %3701 = vmatpush1.msra.mxu0 %v2620
        %3702 = vmatprep.subr.mxu0 0.0
        %3703 = vmatpush1.msra.mxu0 %v2621
        %3704 = vmatprep.subr.mxu0 0.0
        %3705 = vmatpush1.msra.mxu0 %v2622
        %3706 = vmatprep.mubr.f32.mxu0 %v2140
        %3707 = vmatmul.mubr.f32.gmra.mrb[0].mxu0 %v2139
        %v3708 = vpop.f32.mrb[0].mxu0
        %v3709 = vadd.f32 %v3639, %v3708
        %v3710 = vpop.f32.mrb[0].mxu0
        %3711 = vdwg.mxu0
        %3712 = vmatprep.subr.mxu0 0.0
        %3713 = vmatpush1.msra.mxu0 %v2623
        %3714 = vmatprep.subr.mxu0 0.0
        %3715 = vmatpush1.msra.mxu0 %v2624
        %3716 = vmatprep.subr.mxu0 0.0
        %3717 = vmatpush1.msra.mxu0 %v2625
        %3718 = vmatprep.subr.mxu0 0.0
        %3719 = vmatpush1.msra.mxu0 %v2626
        %3720 = vmatprep.subr.mxu0 0.0
        %3721 = vmatpush1.msra.mxu0 %v2627
        %3722 = vmatprep.subr.mxu0 0.0
        %3723 = vmatpush1.msra.mxu0 %v2628
        %3724 = vmatprep.subr.mxu0 0.0
        %3725 = vmatpush1.msra.mxu0 %v2629
        %3726 = vmatprep.subr.mxu0 0.0
        %3727 = vmatpush1.msra.mxu0 %v2630
        %3728 = vmatprep.subr.mxu0 0.0
        %3729 = vmatpush1.msra.mxu0 %v2631
        %3730 = vmatprep.subr.mxu0 0.0
        %3731 = vmatpush1.msra.mxu0 %v2632
        %3732 = vmatprep.subr.mxu0 0.0
        %3733 = vmatpush1.msra.mxu0 %v2633
        %3734 = vmatprep.subr.mxu0 0.0
        %3735 = vmatpush1.msra.mxu0 %v2634
        %3736 = vmatprep.subr.mxu0 0.0
        %3737 = vmatpush1.msra.mxu0 %v2635
        %3738 = vmatprep.subr.mxu0 0.0
        %3739 = vmatpush1.msra.mxu0 %v2636
        %3740 = vmatprep.subr.mxu0 0.0
        %3741 = vmatpush1.msra.mxu0 %v2637
        %3742 = vmatprep.subr.mxu0 0.0
        %3743 = vmatpush1.msra.mxu0 %v2638
        %3744 = vmatprep.subr.mxu0 0.0
        %3745 = vmatpush1.msra.mxu0 %v2639
        %3746 = vmatprep.subr.mxu0 0.0
        %3747 = vmatpush1.msra.mxu0 %v2640
        %3748 = vmatprep.subr.mxu0 0.0
        %3749 = vmatpush1.msra.mxu0 %v2641
        %3750 = vmatprep.subr.mxu0 0.0
        %3751 = vmatpush1.msra.mxu0 %v2642
        %3752 = vmatprep.subr.mxu0 0.0
        %3753 = vmatpush1.msra.mxu0 %v2643
        %3754 = vmatprep.subr.mxu0 0.0
        %3755 = vmatpush1.msra.mxu0 %v2644
        %3756 = vmatprep.subr.mxu0 0.0
        %3757 = vmatpush1.msra.mxu0 %v2645
        %3758 = vmatprep.subr.mxu0 0.0
        %3759 = vmatpush1.msra.mxu0 %v2646
        %3760 = vmatprep.subr.mxu0 0.0
        %3761 = vmatpush1.msra.mxu0 %v2647
        %3762 = vmatprep.subr.mxu0 0.0
        %3763 = vmatpush1.msra.mxu0 %v2648
        %3764 = vmatprep.subr.mxu0 0.0
        %3765 = vmatpush1.msra.mxu0 %v2649
        %3766 = vmatprep.subr.mxu0 0.0
        %3767 = vmatpush1.msra.mxu0 %v2650
        %3768 = vmatprep.subr.mxu0 0.0
        %3769 = vmatpush1.msra.mxu0 %v2651
        %3770 = vmatprep.subr.mxu0 0.0
        %3771 = vmatpush1.msra.mxu0 %v2652
        %3772 = vmatprep.subr.mxu0 0.0
        %3773 = vmatpush1.msra.mxu0 %v2653
        %3774 = vmatprep.subr.mxu0 0.0
        %3775 = vmatpush1.msra.mxu0 %v2654
        %3776 = vmatprep.mubr.f32.mxu0 %v2142
        %3777 = vmatmul.mubr.f32.gmra.mrb[0].mxu0 %v2141
        %v3778 = vpop.f32.mrb[0].mxu0
        %v3779 = vadd.f32 %v3709, %v3778
        %v3780 = vpop.f32.mrb[0].mxu0
        %3781 = vdwg.mxu0
        %v3782 = vmax.f32 %v3779, 0.0
        %3783 = vst [vmem:[%s293] sm:$0xff] %v3782
        %s3784 = sand.u32 %s142, 1
        %s3785 = scalar_lea.sflag [#allocation4], %s3784
        %s3786 = sand.u32 %s142, 1
        %s3787 = smul.addr %s3786, 8
        %s3788 = scalar_lea.vmem [#allocation11], %s3787
        // Predicated region
        $region61: #{tpu_custom_call.1} parent=39 // pred_check
          %p3789 = pneg %p152
        $region62: #{tpu_custom_call.1} parent=39 // pred_check_branch
          %3791 = sbr.rel (%p3789) target = $region64
        $region63: #{tpu_custom_call.1} parent=39 // pred_region
          %s3793 = ssub.s32 128, 128
          %3794 = vsyncadd %s3785, %s3793
          %s3795 = smul.addr %s24, 128
          %s3796 = scalar_lea.hbm %s5, %s3795
          %s3798 = sshll.u32 %s3788, 4
          %s3799 = int_to_ptr.vmem [resolvable:$true] %s3798
          %3801 = dma.vmem_to_hbm [thread:$0]  %s3799, 128, %s3796, %s3785
        $region64: #{tpu_custom_call.1} parent=39 // pred_fallthru
          _
      $region40: #{tpu_custom_call.1} parent=5 // pred_fallthru
        _
      %p3802 = scmp.le.s32.totalorder 2, %s19
      // Predicated region
      $region65: #{tpu_custom_call.1} parent=5 // pred_check
        %p3803 = pneg %p3802
      $region66: #{tpu_custom_call.1} parent=5 // pred_check_branch
        %3805 = sbr.rel (%p3803) target = $region68
      $region67: #{tpu_custom_call.1} parent=5 // pred_region
        %s3806 = ssub.s32 %s19, 2
        // Predicated region
        $region69: #{tpu_custom_call.1} parent=67 // pred_check
          %p3807 = pneg %p158
        $region70: #{tpu_custom_call.1} parent=67 // pred_check_branch
          %3809 = sbr.rel (%p3807) target = $region72
        $region71: #{tpu_custom_call.1} parent=67 // pred_region
          %s3810 = sand.u32 %s143, 1
          %s3811 = scalar_lea.sflag [#allocation4], %s3810
          %s3812 = sand.u32 %s143, 1
          %s3813 = smul.addr %s3812, 8
          %s3814 = scalar_lea.vmem [#allocation11], %s3813
          %3815 = dma.done %s3811, 128
        $region72: #{tpu_custom_call.1} parent=67 // pred_fallthru
          _
      $region68: #{tpu_custom_call.1} parent=5 // pred_fallthru
        _
    $region6: #{tpu_custom_call.1} parent=1 // loop_footer
      %s23 = sadd.s32 1, %s19
    $region7: #{tpu_custom_call.1} parent=1 // loop_footer_branch
      %18 = sbr.rel target = $region3
    $region8: #{tpu_custom_call.1} parent=1 // loop_exit
      _
    %3816 = vsyncpa [#allocation3], 1
    %s3817 = scalar_lea.sflag [#allocation3], 1
    %3818 = vsyncpa %s3817, 1
    %3819 = vsyncpa [#allocation6], 1
    %3820 = vsyncpa [#allocation9], 1
    %3821 = vsyncpa [#allocation4], 1
    %s3822 = scalar_lea.sflag [#allocation4], 1
    %3823 = vsyncpa %s3822, 1

</llo_original>
